<compile_context>
chip_gen: v7x
topology: tpu7x:2x2x1
jax: 0.10.0
libtpu: 0.0.40
codegen_flags: <defaults>
</compile_context>

<pallas_src>
import functools

import jax
import jax.numpy as jnp
from jax.experimental import pallas as pl
from jax.experimental.pallas import tpu as pltpu


# ------------------------------ fused kernel --------------------------------

def _fmod(a, m):
    return a - m * jnp.floor(a * (1.0 / m))


def _fused_aug_kernel(p_ref, x_ref, ly_ref, rxt_ref, gy_ref, gxt_ref, o_ref,
                      *, bt, C, H, W):
    """Per grid step: `bt` images. For each image:
         y1_c = Ly @ x_c @ Rx^T          (crop+resize, hflip folded into Rx)
         y2   = color_jitter(y1) [+ grayscale]
         out_c = Gy @ y2_c @ Gx^T        (gaussian blur, reflect padding)
       params (SMEM, flat): per image 8 floats:
         [brightness, contrast, saturation, hue_shift, gray_flag, 0, 0, 0]
    """
    blk = pl.program_id(0)
    f32 = jnp.float32
    bf16 = jnp.bfloat16

    for k in range(bt):                       # static unroll over images in block
        base = (blk * bt + k) * 8
        bright = p_ref[base + 0]
        contrast = p_ref[base + 1]
        sat = p_ref[base + 2]
        hue_shift = p_ref[base + 3]
        gray_flag = p_ref[base + 4]

        ly = ly_ref[k, :, :]                  # (H, H)  bf16
        rxt = rxt_ref[k, :, :]                # (W, W)  bf16
        gy = gy_ref[k, :, :]                  # (H, H)  bf16
        gxt = gxt_ref[k, :, :]                # (W, W)  bf16

        # ---- crop / resize / flip (MXU) -----------------------------------
        # stacked right-multiply over channels: (C*H, W) @ (W, W)
        xk = jnp.concatenate([x_ref[k, c, :, :] for c in range(C)], axis=0)
        t = jnp.dot(xk, rxt, preferred_element_type=f32)          # (C*H, W) f32
        chans = []
        for c in range(C):
            tc = t[c * H:(c + 1) * H, :].astype(bf16)
            chans.append(jnp.dot(ly, tc, preferred_element_type=f32))
        r, g, b = chans                                            # (H, W) f32 each

        # ---- ColorJitter + RandomGrayscale (VPU, f32) ----------------------
        # brightness
        r = jnp.clip(r * bright, 0.0, 1.0)
        g = jnp.clip(g * bright, 0.0, 1.0)
        b = jnp.clip(b * bright, 0.0, 1.0)

        # contrast (torchvision-style blend with mean grayscale)
        # TODO(synk): kornia's adjust_contrast differs slightly in some versions.
        gray = 0.299 * r + 0.587 * g + 0.114 * b
        off = (1.0 - contrast) * jnp.mean(gray)
        r = jnp.clip(contrast * r + off, 0.0, 1.0)
        g = jnp.clip(contrast * g + off, 0.0, 1.0)
        b = jnp.clip(contrast * b + off, 0.0, 1.0)

        # saturation (blend with per-pixel luminance)
        gray = 0.299 * r + 0.587 * g + 0.114 * b
        r = jnp.clip(sat * r + (1.0 - sat) * gray, 0.0, 1.0)
        g = jnp.clip(sat * g + (1.0 - sat) * gray, 0.0, 1.0)
        b = jnp.clip(sat * b + (1.0 - sat) * gray, 0.0, 1.0)

        # hue: RGB -> HSV, shift hue (fraction of a turn), HSV -> RGB
        # TODO(synk): kornia parameterizes hue in radians; fraction-of-circle here.
        maxc = jnp.maximum(r, jnp.maximum(g, b))
        minc = jnp.minimum(r, jnp.minimum(g, b))
        v = maxc
        delta = maxc - minc
        safe_delta = jnp.where(delta > 0.0, delta, 1.0)
        inv_delta = pl.reciprocal(safe_delta, approx=True)
        safe_max = jnp.where(maxc > 0.0, maxc, 1.0)
        s = jnp.where(maxc > 0.0, delta * pl.reciprocal(safe_max, approx=True), 0.0)
        rc = (g - b) * inv_delta
        gc = (b - r) * inv_delta + 2.0
        bc = (r - g) * inv_delta + 4.0
        h = jnp.where(maxc == r, rc, jnp.where(maxc == g, gc, bc))
        h = _fmod(h, 6.0) * (1.0 / 6.0)
        h = jnp.where(delta > 0.0, h, 0.0)
        h = _fmod(h + hue_shift, 1.0)

        h6 = h * 6.0
        i = jnp.floor(h6)
        f = h6 - i
        p_ = v * (1.0 - s)
        q_ = v * (1.0 - s * f)
        t_ = v * (1.0 - s * (1.0 - f))
        i = _fmod(i, 6.0)
        r2 = jnp.where(i < 1.0, v, jnp.where(i < 2.0, q_, jnp.where(i < 3.0, p_,
             jnp.where(i < 4.0, p_, jnp.where(i < 5.0, t_, v)))))
        g2 = jnp.where(i < 1.0, t_, jnp.where(i < 2.0, v, jnp.where(i < 3.0, v,
             jnp.where(i < 4.0, q_, jnp.where(i < 5.0, p_, p_)))))
        b2 = jnp.where(i < 1.0, p_, jnp.where(i < 2.0, p_, jnp.where(i < 3.0, t_,
             jnp.where(i < 4.0, v, jnp.where(i < 5.0, v, q_)))))

        # random grayscale
        lum = 0.299 * r2 + 0.587 * g2 + 0.114 * b2
        is_gray = gray_flag > 0.5
        r2 = jnp.where(is_gray, lum, r2)
        g2 = jnp.where(is_gray, lum, g2)
        b2 = jnp.where(is_gray, lum, b2)

        # ---- Gaussian blur (MXU, reflect-padded Toeplitz matrices) ---------
        # TODO(synk): could be gk shifted-adds via pltpu.roll instead of dense matmul.
        y2 = jnp.concatenate([r2, g2, b2], axis=0).astype(bf16)    # (C*H, W)
        tb = jnp.dot(y2, gxt, preferred_element_type=f32)          # (C*H, W) f32
        for c in range(C):
            tbc = tb[c * H:(c + 1) * H, :].astype(bf16)
            out_c = jnp.dot(gy, tbc, preferred_element_type=f32)
            o_ref[k, c, :, :] = out_c.astype(o_ref.dtype)


def fused_augment(x, Ly, RxT, Gy, GxT, params, *, block_b):
    B, C, H, W = x.shape
    assert B % block_b == 0
    nb = B // block_b
    bf16 = jnp.bfloat16
    kernel = functools.partial(_fused_aug_kernel, bt=block_b, C=C, H=H, W=W)
    return pl.pallas_call(
        kernel,
        out_shape=jax.ShapeDtypeStruct((B, C, H, W), jnp.float32),
        grid=(nb,),
        in_specs=[
            pl.BlockSpec(memory_space=pltpu.MemorySpace.SMEM),          # params (B*8,)
            pl.BlockSpec((block_b, C, H, W), lambda i: (i, 0, 0, 0)),   # image
            pl.BlockSpec((block_b, H, H), lambda i: (i, 0, 0)),         # Ly
            pl.BlockSpec((block_b, W, W), lambda i: (i, 0, 0)),         # Rx^T
            pl.BlockSpec((block_b, H, H), lambda i: (i, 0, 0)),         # Gy
            pl.BlockSpec((block_b, W, W), lambda i: (i, 0, 0)),         # Gx^T
        ],
        out_specs=pl.BlockSpec((block_b, C, H, W), lambda i: (i, 0, 0, 0)),
        compiler_params=pltpu.CompilerParams(
            dimension_semantics=("parallel",)),
    )(params, x.astype(bf16), Ly.astype(bf16), RxT.astype(bf16),
      Gy.astype(bf16), GxT.astype(bf16))


# ------------------------------ glue (plain JAX) ----------------------------

def _bilinear_matrix(start, length, out_size, in_size):
    """(out_size, in_size) bilinear interpolation matrix for crop [start, start+length)."""
    i = jnp.arange(out_size, dtype=jnp.float32)
    src = start + (i + 0.5) * (length / out_size) - 0.5
    src = jnp.clip(src, 0.0, in_size - 1.0)
    f0 = jnp.floor(src)
    frac = src - f0
    i0 = jnp.clip(f0.astype(jnp.int32), 0, in_size - 1)
    i1 = jnp.clip(i0 + 1, 0, in_size - 1)
    return ((1.0 - frac)[:, None] * jax.nn.one_hot(i0, in_size, dtype=jnp.float32)
            + frac[:, None] * jax.nn.one_hot(i1, in_size, dtype=jnp.float32))


def _gaussian_blur_matrix(sigma, ksize, n):
    """(n, n) Toeplitz matrix for 1-D gaussian blur with reflect padding."""
    half = ksize // 2
    xs = jnp.arange(ksize, dtype=jnp.float32) - half
    w = jnp.exp(-0.5 * (xs / sigma) ** 2)
    w = w / jnp.sum(w)
    idx = jnp.arange(n)[:, None] + (jnp.arange(ksize) - half)[None, :]
    idx = jnp.where(idx < 0, -idx, idx)
    idx = jnp.where(idx >= n, 2 * n - 2 - idx, idx)
    rows = jnp.broadcast_to(jnp.arange(n)[:, None], (n, ksize))
    return jnp.zeros((n, n), jnp.float32).at[rows, idx].add(
        jnp.broadcast_to(w[None, :], (n, ksize)))


def augmentation_forward(x, key, Aw=1.0):
    """Pallas implementation of Augmentation.forward (stochastic Kornia pipeline)."""
    B, C, H, W = x.shape
    assert C == 3 and H == W, "expects square RGB images"
    org_size = H
    gk = int(org_size * 0.1)
    if gk % 2 == 0:
        gk += 1

    ks = jax.random.split(key, 13)

    # ---- RandomResizedCrop (p = 1.0*Aw) -------------------------------------
    scale = jax.random.uniform(ks[0], (B,), minval=0.08, maxval=1.0)
    log_ratio = jax.random.uniform(ks[1], (B,), minval=jnp.log(3.0 / 4.0),
                                   maxval=jnp.log(4.0 / 3.0))
    ratio = jnp.exp(log_ratio)
    area = scale * H * W
    cw = jnp.clip(jnp.sqrt(area * ratio), 1.0, float(W))
    ch = jnp.clip(jnp.sqrt(area / ratio), 1.0, float(H))
    y0 = jax.random.uniform(ks[2], (B,)) * (H - ch)
    x0 = jax.random.uniform(ks[3], (B,)) * (W - cw)
    crop_p = jax.random.uniform(ks[4], (B,)) < (1.0 * Aw)
    Ly = jax.vmap(lambda s, l: _bilinear_matrix(s, l, H, H))(y0, ch)
    Rx = jax.vmap(lambda s, l: _bilinear_matrix(s, l, W, W))(x0, cw)
    eye = jnp.eye(H, dtype=jnp.float32)
    Ly = jnp.where(crop_p[:, None, None], Ly, eye)
    Rx = jnp.where(crop_p[:, None, None], Rx, eye)

    # ---- RandomHorizontalFlip (p = 0.5*Aw), folded into Rx ------------------
    flip = jax.random.uniform(ks[5], (B,)) < (0.5 * Aw)
    Rx = jnp.where(flip[:, None, None], Rx[:, ::-1, :], Rx)
    RxT = jnp.swapaxes(Rx, -1, -2)

    # ---- ColorJitter (p = 0.8*Aw) + RandomGrayscale (p = 0.2*Aw) ------------
    # TODO(synk): kornia applies the 4 jitter sub-ops in a random order; fixed order here.
    apply_cj = jax.random.uniform(ks[6], (B,)) < (0.8 * Aw)
    bright = jax.random.uniform(ks[7], (B,), minval=0.6, maxval=1.4)
    contrast = jax.random.uniform(ks[8], (B,), minval=0.2, maxval=1.8)
    sat = jax.random.uniform(ks[9], (B,), minval=0.2, maxval=1.8)
    hue = jax.random.uniform(ks[10], (B,), minval=-0.2, maxval=0.2)
    bright = jnp.where(apply_cj, bright, 1.0)
    contrast = jnp.where(apply_cj, contrast, 1.0)
    sat = jnp.where(apply_cj, sat, 1.0)
    hue = jnp.where(apply_cj, hue, 0.0)
    gray_flag = (jax.random.uniform(ks[11], (B,)) < (0.2 * Aw)).astype(jnp.float32)

    zeros = jnp.zeros((B,), jnp.float32)
    params = jnp.stack(
        [bright, contrast, sat, hue, gray_flag, zeros, zeros, zeros],
        axis=1).reshape(-1)                              # flat 1-D SMEM layout (B*8,)

    # ---- RandomGaussianBlur (p = 0.5*Aw), kernel (gk, gk), sigma U(0.1, 2.0) -
    kb1, kb2 = jax.random.split(ks[12])
    apply_blur = jax.random.uniform(kb1, (B,)) < (0.5 * Aw)
    sigma = jax.random.uniform(kb2, (B,), minval=0.1, maxval=2.0)
    Gy = jax.vmap(lambda s: _gaussian_blur_matrix(s, gk, H))(sigma)
    Gx = jax.vmap(lambda s: _gaussian_blur_matrix(s, gk, W))(sigma)
    Gy = jnp.where(apply_blur[:, None, None], Gy, eye)
    Gx = jnp.where(apply_blur[:, None, None], Gx, eye)
    GxT = jnp.swapaxes(Gx, -1, -2)

    # per-grid-step image block (amortizes ~0.35 us/step overhead)
    block_b = 8 if B % 8 == 0 else (4 if B % 4 == 0 else (2 if B % 2 == 0 else 1))
    return fused_augment(x, Ly, RxT, Gy, GxT, params, block_b=block_b)


# ----------------------------------- main -----------------------------------

if __name__ == "__main__":
    key = jax.random.PRNGKey(0)
    k_data, k_aug = jax.random.split(key)

    B, C, H, W = 2, 3, 32, 32   # org_size = 32 -> gaussian kernel size 3
    x = jax.random.uniform(k_data, (B, C, H, W), dtype=jnp.float32)

    aug = jax.jit(augmentation_forward)
    out = aug(x, k_aug, 1.0)
    out = jax.block_until_ready(out)

    assert out.shape == (B, C, H, W) and out.dtype == jnp.float32
    assert bool(jnp.all(jnp.isfinite(out)))
    print("KERNEL_OK")
</pallas_src>

<mosaic_0001>
module attributes {stable_mosaic.version = 11 : i64} {
  func.func @_fused_aug_kernel(%arg0: i32, %arg1: memref<16xf32, #tpu.memory_space<smem>>, %arg2: memref<2x3x32x32xbf16, #tpu.memory_space<vmem>>, %arg3: memref<2x32x32xbf16, #tpu.memory_space<vmem>>, %arg4: memref<2x32x32xbf16, #tpu.memory_space<vmem>>, %arg5: memref<2x32x32xbf16, #tpu.memory_space<vmem>>, %arg6: memref<2x32x32xbf16, #tpu.memory_space<vmem>>, %arg7: memref<2x3x32x32xf32, #tpu.memory_space<vmem>>) attributes {dimension_semantics = [#tpu.dimension_semantics<parallel>], iteration_bounds = array<i64: 1>, scalar_prefetch = 0 : i64, scratch_operands = 0 : i64, tpu.core_type = #tpu.core_type<tc>, window_params = [{transform_indices = @transform_0, window_bounds = array<i64: 16>}, {transform_indices = @transform_1, window_bounds = array<i64: 2, 3, 32, 32>}, {transform_indices = @transform_2, window_bounds = array<i64: 2, 32, 32>}, {transform_indices = @transform_3, window_bounds = array<i64: 2, 32, 32>}, {transform_indices = @transform_4, window_bounds = array<i64: 2, 32, 32>}, {transform_indices = @transform_5, window_bounds = array<i64: 2, 32, 32>}, {transform_indices = @transform_6, window_bounds = array<i64: 2, 3, 32, 32>}]} {
    %c2_i32 = arith.constant 2 : i32
    %0 = arith.muli %arg0, %c2_i32 : i32
    %c0_i32 = arith.constant 0 : i32
    %1 = arith.addi %0, %c0_i32 : i32
    %c8_i32 = arith.constant 8 : i32
    %2 = arith.muli %1, %c8_i32 : i32
    %c0_i32_0 = arith.constant 0 : i32
    %3 = arith.addi %2, %c0_i32_0 : i32
    %4 = arith.index_cast %3 : i32 to index
    %5 = memref.load %arg1[%4] : memref<16xf32, #tpu.memory_space<smem>>
    %c1_i32 = arith.constant 1 : i32
    %6 = arith.addi %2, %c1_i32 : i32
    %7 = arith.index_cast %6 : i32 to index
    %8 = memref.load %arg1[%7] : memref<16xf32, #tpu.memory_space<smem>>
    %c2_i32_1 = arith.constant 2 : i32
    %9 = arith.addi %2, %c2_i32_1 : i32
    %10 = arith.index_cast %9 : i32 to index
    %11 = memref.load %arg1[%10] : memref<16xf32, #tpu.memory_space<smem>>
    %c3_i32 = arith.constant 3 : i32
    %12 = arith.addi %2, %c3_i32 : i32
    %13 = arith.index_cast %12 : i32 to index
    %14 = memref.load %arg1[%13] : memref<16xf32, #tpu.memory_space<smem>>
    %c4_i32 = arith.constant 4 : i32
    %15 = arith.addi %2, %c4_i32 : i32
    %16 = arith.index_cast %15 : i32 to index
    %17 = memref.load %arg1[%16] : memref<16xf32, #tpu.memory_space<smem>>
    %c0 = arith.constant 0 : index
    %c0_2 = arith.constant 0 : index
    %c0_3 = arith.constant 0 : index
    %18 = vector.load %arg3[%c0, %c0_2, %c0_3] : memref<2x32x32xbf16, #tpu.memory_space<vmem>>, vector<1x32x32xbf16>
    %19 = vector.shape_cast %18 : vector<1x32x32xbf16> to vector<32x32xbf16>
    %c0_4 = arith.constant 0 : index
    %c0_5 = arith.constant 0 : index
    %c0_6 = arith.constant 0 : index
    %20 = vector.load %arg4[%c0_4, %c0_5, %c0_6] : memref<2x32x32xbf16, #tpu.memory_space<vmem>>, vector<1x32x32xbf16>
    %21 = vector.shape_cast %20 : vector<1x32x32xbf16> to vector<32x32xbf16>
    %c0_7 = arith.constant 0 : index
    %c0_8 = arith.constant 0 : index
    %c0_9 = arith.constant 0 : index
    %22 = vector.load %arg5[%c0_7, %c0_8, %c0_9] : memref<2x32x32xbf16, #tpu.memory_space<vmem>>, vector<1x32x32xbf16>
    %23 = vector.shape_cast %22 : vector<1x32x32xbf16> to vector<32x32xbf16>
    %c0_10 = arith.constant 0 : index
    %c0_11 = arith.constant 0 : index
    %c0_12 = arith.constant 0 : index
    %24 = vector.load %arg6[%c0_10, %c0_11, %c0_12] : memref<2x32x32xbf16, #tpu.memory_space<vmem>>, vector<1x32x32xbf16>
    %25 = vector.shape_cast %24 : vector<1x32x32xbf16> to vector<32x32xbf16>
    %c0_13 = arith.constant 0 : index
    %c0_14 = arith.constant 0 : index
    %c0_15 = arith.constant 0 : index
    %c0_16 = arith.constant 0 : index
    %26 = vector.load %arg2[%c0_13, %c0_14, %c0_15, %c0_16] : memref<2x3x32x32xbf16, #tpu.memory_space<vmem>>, vector<1x1x32x32xbf16>
    %27 = vector.shape_cast %26 : vector<1x1x32x32xbf16> to vector<32x32xbf16>
    %c0_17 = arith.constant 0 : index
    %c1 = arith.constant 1 : index
    %c0_18 = arith.constant 0 : index
    %c0_19 = arith.constant 0 : index
    %28 = vector.load %arg2[%c0_17, %c1, %c0_18, %c0_19] : memref<2x3x32x32xbf16, #tpu.memory_space<vmem>>, vector<1x1x32x32xbf16>
    %29 = vector.shape_cast %28 : vector<1x1x32x32xbf16> to vector<32x32xbf16>
    %c0_20 = arith.constant 0 : index
    %c2 = arith.constant 2 : index
    %c0_21 = arith.constant 0 : index
    %c0_22 = arith.constant 0 : index
    %30 = vector.load %arg2[%c0_20, %c2, %c0_21, %c0_22] : memref<2x3x32x32xbf16, #tpu.memory_space<vmem>>, vector<1x1x32x32xbf16>
    %31 = vector.shape_cast %30 : vector<1x1x32x32xbf16> to vector<32x32xbf16>
    %32 = tpu.concatenate %27, %29, %31 in 0 : vector<32x32xbf16>, vector<32x32xbf16>, vector<32x32xbf16> -> vector<96x32xbf16>
    %cst = arith.constant dense<0.000000e+00> : vector<96x32xf32>
    %33 = tpu.matmul %32, %21, %cst {dimension_numbers = #tpu.dot_dimension_numbers<[1], [0], [0], [1], [0, 0, 1, 1], [], []>} : vector<96x32xbf16>, vector<32x32xbf16>, vector<96x32xf32> -> vector<96x32xf32>
    %34 = vector.extract_strided_slice %33 {offsets = [0, 0], sizes = [32, 32], strides = [1, 1]} : vector<96x32xf32> to vector<32x32xf32>
    %35 = arith.truncf %34 : vector<32x32xf32> to vector<32x32xbf16>
    %cst_23 = arith.constant dense<0.000000e+00> : vector<32x32xf32>
    %36 = tpu.matmul %19, %35, %cst_23 {dimension_numbers = #tpu.dot_dimension_numbers<[1], [0], [0], [1], [0, 0, 1, 1], [], []>} : vector<32x32xbf16>, vector<32x32xbf16>, vector<32x32xf32> -> vector<32x32xf32>
    %37 = vector.extract_strided_slice %33 {offsets = [32, 0], sizes = [32, 32], strides = [1, 1]} : vector<96x32xf32> to vector<32x32xf32>
    %38 = arith.truncf %37 : vector<32x32xf32> to vector<32x32xbf16>
    %cst_24 = arith.constant dense<0.000000e+00> : vector<32x32xf32>
    %39 = tpu.matmul %19, %38, %cst_24 {dimension_numbers = #tpu.dot_dimension_numbers<[1], [0], [0], [1], [0, 0, 1, 1], [], []>} : vector<32x32xbf16>, vector<32x32xbf16>, vector<32x32xf32> -> vector<32x32xf32>
    %40 = vector.extract_strided_slice %33 {offsets = [64, 0], sizes = [32, 32], strides = [1, 1]} : vector<96x32xf32> to vector<32x32xf32>
    %41 = arith.truncf %40 : vector<32x32xf32> to vector<32x32xbf16>
    %cst_25 = arith.constant dense<0.000000e+00> : vector<32x32xf32>
    %42 = tpu.matmul %19, %41, %cst_25 {dimension_numbers = #tpu.dot_dimension_numbers<[1], [0], [0], [1], [0, 0, 1, 1], [], []>} : vector<32x32xbf16>, vector<32x32xbf16>, vector<32x32xf32> -> vector<32x32xf32>
    %43 = vector.broadcast %5 : f32 to vector<32x32xf32>
    %44 = arith.mulf %36, %43 : vector<32x32xf32>
    %cst_26 = arith.constant 0.000000e+00 : f32
    %cst_27 = arith.constant 1.000000e+00 : f32
    %45 = vector.broadcast %cst_26 : f32 to vector<32x32xf32>
    %46 = arith.maximumf %45, %44 : vector<32x32xf32>
    %47 = vector.broadcast %cst_27 : f32 to vector<32x32xf32>
    %48 = arith.minimumf %47, %46 : vector<32x32xf32>
    %49 = vector.broadcast %5 : f32 to vector<32x32xf32>
    %50 = arith.mulf %39, %49 : vector<32x32xf32>
    %cst_28 = arith.constant 0.000000e+00 : f32
    %cst_29 = arith.constant 1.000000e+00 : f32
    %51 = vector.broadcast %cst_28 : f32 to vector<32x32xf32>
    %52 = arith.maximumf %51, %50 : vector<32x32xf32>
    %53 = vector.broadcast %cst_29 : f32 to vector<32x32xf32>
    %54 = arith.minimumf %53, %52 : vector<32x32xf32>
    %55 = vector.broadcast %5 : f32 to vector<32x32xf32>
    %56 = arith.mulf %42, %55 : vector<32x32xf32>
    %cst_30 = arith.constant 0.000000e+00 : f32
    %cst_31 = arith.constant 1.000000e+00 : f32
    %57 = vector.broadcast %cst_30 : f32 to vector<32x32xf32>
    %58 = arith.maximumf %57, %56 : vector<32x32xf32>
    %59 = vector.broadcast %cst_31 : f32 to vector<32x32xf32>
    %60 = arith.minimumf %59, %58 : vector<32x32xf32>
    %cst_32 = arith.constant 2.990000e-01 : f32
    %61 = vector.broadcast %cst_32 : f32 to vector<32x32xf32>
    %62 = arith.mulf %61, %48 : vector<32x32xf32>
    %cst_33 = arith.constant 5.870000e-01 : f32
    %63 = vector.broadcast %cst_33 : f32 to vector<32x32xf32>
    %64 = arith.mulf %63, %54 : vector<32x32xf32>
    %65 = arith.addf %62, %64 : vector<32x32xf32>
    %cst_34 = arith.constant 1.140000e-01 : f32
    %66 = vector.broadcast %cst_34 : f32 to vector<32x32xf32>
    %67 = arith.mulf %66, %60 : vector<32x32xf32>
    %68 = arith.addf %65, %67 : vector<32x32xf32>
    %cst_35 = arith.constant 1.000000e+00 : f32
    %69 = arith.subf %cst_35, %8 : f32
    %70 = vector.shape_cast %68 : vector<32x32xf32> to vector<1x32x32xf32>
    %cst_36 = arith.constant dense<0.000000e+00> : vector<1xf32>
    %71 = vector.multi_reduction <add>, %70, %cst_36 [1, 2] : vector<1x32x32xf32> to vector<1xf32>
    %72 = vector.shape_cast %71 : vector<1xf32> to vector<1x1x1xf32>
    %73 = vector.extract %72[0, 0, 0] : f32 from vector<1x1x1xf32>
    %cst_37 = arith.constant 1.024000e+03 : f32
    %74 = arith.divf %73, %cst_37 : f32
    %75 = arith.mulf %69, %74 : f32
    %76 = vector.broadcast %8 : f32 to vector<32x32xf32>
    %77 = arith.mulf %76, %48 : vector<32x32xf32>
    %78 = vector.broadcast %75 : f32 to vector<32x32xf32>
    %79 = arith.addf %77, %78 : vector<32x32xf32>
    %cst_38 = arith.constant 0.000000e+00 : f32
    %cst_39 = arith.constant 1.000000e+00 : f32
    %80 = vector.broadcast %cst_38 : f32 to vector<32x32xf32>
    %81 = arith.maximumf %80, %79 : vector<32x32xf32>
    %82 = vector.broadcast %cst_39 : f32 to vector<32x32xf32>
    %83 = arith.minimumf %82, %81 : vector<32x32xf32>
    %84 = vector.broadcast %8 : f32 to vector<32x32xf32>
    %85 = arith.mulf %84, %54 : vector<32x32xf32>
    %86 = vector.broadcast %75 : f32 to vector<32x32xf32>
    %87 = arith.addf %85, %86 : vector<32x32xf32>
    %cst_40 = arith.constant 0.000000e+00 : f32
    %cst_41 = arith.constant 1.000000e+00 : f32
    %88 = vector.broadcast %cst_40 : f32 to vector<32x32xf32>
    %89 = arith.maximumf %88, %87 : vector<32x32xf32>
    %90 = vector.broadcast %cst_41 : f32 to vector<32x32xf32>
    %91 = arith.minimumf %90, %89 : vector<32x32xf32>
    %92 = vector.broadcast %8 : f32 to vector<32x32xf32>
    %93 = arith.mulf %92, %60 : vector<32x32xf32>
    %94 = vector.broadcast %75 : f32 to vector<32x32xf32>
    %95 = arith.addf %93, %94 : vector<32x32xf32>
    %cst_42 = arith.constant 0.000000e+00 : f32
    %cst_43 = arith.constant 1.000000e+00 : f32
    %96 = vector.broadcast %cst_42 : f32 to vector<32x32xf32>
    %97 = arith.maximumf %96, %95 : vector<32x32xf32>
    %98 = vector.broadcast %cst_43 : f32 to vector<32x32xf32>
    %99 = arith.minimumf %98, %97 : vector<32x32xf32>
    %cst_44 = arith.constant 2.990000e-01 : f32
    %100 = vector.broadcast %cst_44 : f32 to vector<32x32xf32>
    %101 = arith.mulf %100, %83 : vector<32x32xf32>
    %cst_45 = arith.constant 5.870000e-01 : f32
    %102 = vector.broadcast %cst_45 : f32 to vector<32x32xf32>
    %103 = arith.mulf %102, %91 : vector<32x32xf32>
    %104 = arith.addf %101, %103 : vector<32x32xf32>
    %cst_46 = arith.constant 1.140000e-01 : f32
    %105 = vector.broadcast %cst_46 : f32 to vector<32x32xf32>
    %106 = arith.mulf %105, %99 : vector<32x32xf32>
    %107 = arith.addf %104, %106 : vector<32x32xf32>
    %108 = vector.broadcast %11 : f32 to vector<32x32xf32>
    %109 = arith.mulf %108, %83 : vector<32x32xf32>
    %cst_47 = arith.constant 1.000000e+00 : f32
    %110 = arith.subf %cst_47, %11 : f32
    %111 = vector.broadcast %110 : f32 to vector<32x32xf32>
    %112 = arith.mulf %111, %107 : vector<32x32xf32>
    %113 = arith.addf %109, %112 : vector<32x32xf32>
    %cst_48 = arith.constant 0.000000e+00 : f32
    %cst_49 = arith.constant 1.000000e+00 : f32
    %114 = vector.broadcast %cst_48 : f32 to vector<32x32xf32>
    %115 = arith.maximumf %114, %113 : vector<32x32xf32>
    %116 = vector.broadcast %cst_49 : f32 to vector<32x32xf32>
    %117 = arith.minimumf %116, %115 : vector<32x32xf32>
    %118 = vector.broadcast %11 : f32 to vector<32x32xf32>
    %119 = arith.mulf %118, %91 : vector<32x32xf32>
    %cst_50 = arith.constant 1.000000e+00 : f32
    %120 = arith.subf %cst_50, %11 : f32
    %121 = vector.broadcast %120 : f32 to vector<32x32xf32>
    %122 = arith.mulf %121, %107 : vector<32x32xf32>
    %123 = arith.addf %119, %122 : vector<32x32xf32>
    %cst_51 = arith.constant 0.000000e+00 : f32
    %cst_52 = arith.constant 1.000000e+00 : f32
    %124 = vector.broadcast %cst_51 : f32 to vector<32x32xf32>
    %125 = arith.maximumf %124, %123 : vector<32x32xf32>
    %126 = vector.broadcast %cst_52 : f32 to vector<32x32xf32>
    %127 = arith.minimumf %126, %125 : vector<32x32xf32>
    %128 = vector.broadcast %11 : f32 to vector<32x32xf32>
    %129 = arith.mulf %128, %99 : vector<32x32xf32>
    %cst_53 = arith.constant 1.000000e+00 : f32
    %130 = arith.subf %cst_53, %11 : f32
    %131 = vector.broadcast %130 : f32 to vector<32x32xf32>
    %132 = arith.mulf %131, %107 : vector<32x32xf32>
    %133 = arith.addf %129, %132 : vector<32x32xf32>
    %cst_54 = arith.constant 0.000000e+00 : f32
    %cst_55 = arith.constant 1.000000e+00 : f32
    %134 = vector.broadcast %cst_54 : f32 to vector<32x32xf32>
    %135 = arith.maximumf %134, %133 : vector<32x32xf32>
    %136 = vector.broadcast %cst_55 : f32 to vector<32x32xf32>
    %137 = arith.minimumf %136, %135 : vector<32x32xf32>
    %138 = arith.maximumf %127, %137 : vector<32x32xf32>
    %139 = arith.maximumf %117, %138 : vector<32x32xf32>
    %140 = arith.minimumf %127, %137 : vector<32x32xf32>
    %141 = arith.minimumf %117, %140 : vector<32x32xf32>
    %142 = arith.subf %139, %141 : vector<32x32xf32>
    %cst_56 = arith.constant 0.000000e+00 : f32
    %143 = vector.broadcast %cst_56 : f32 to vector<32x32xf32>
    %144 = arith.cmpf ogt, %142, %143 : vector<32x32xf32>
    %cst_57 = arith.constant 1.000000e+00 : f32
    %145 = vector.broadcast %cst_57 : f32 to vector<32x32xf32>
    %146 = arith.select %144, %142, %145 : vector<32x32xi1>, vector<32x32xf32>
    %147 = tpu.reciprocal %146 {approx = true} : vector<32x32xf32> -> vector<32x32xf32>
    %cst_58 = arith.constant 0.000000e+00 : f32
    %148 = vector.broadcast %cst_58 : f32 to vector<32x32xf32>
    %149 = arith.cmpf ogt, %139, %148 : vector<32x32xf32>
    %cst_59 = arith.constant 1.000000e+00 : f32
    %150 = vector.broadcast %cst_59 : f32 to vector<32x32xf32>
    %151 = arith.select %149, %139, %150 : vector<32x32xi1>, vector<32x32xf32>
    %cst_60 = arith.constant 0.000000e+00 : f32
    %152 = vector.broadcast %cst_60 : f32 to vector<32x32xf32>
    %153 = arith.cmpf ogt, %139, %152 : vector<32x32xf32>
    %154 = tpu.reciprocal %151 {approx = true} : vector<32x32xf32> -> vector<32x32xf32>
    %155 = arith.mulf %142, %154 : vector<32x32xf32>
    %cst_61 = arith.constant 0.000000e+00 : f32
    %156 = vector.broadcast %cst_61 : f32 to vector<32x32xf32>
    %157 = arith.select %153, %155, %156 : vector<32x32xi1>, vector<32x32xf32>
    %158 = arith.subf %127, %137 : vector<32x32xf32>
    %159 = arith.mulf %158, %147 : vector<32x32xf32>
    %160 = arith.subf %137, %117 : vector<32x32xf32>
    %161 = arith.mulf %160, %147 : vector<32x32xf32>
    %cst_62 = arith.constant 2.000000e+00 : f32
    %162 = vector.broadcast %cst_62 : f32 to vector<32x32xf32>
    %163 = arith.addf %161, %162 : vector<32x32xf32>
    %164 = arith.subf %117, %127 : vector<32x32xf32>
    %165 = arith.mulf %164, %147 : vector<32x32xf32>
    %cst_63 = arith.constant 4.000000e+00 : f32
    %166 = vector.broadcast %cst_63 : f32 to vector<32x32xf32>
    %167 = arith.addf %165, %166 : vector<32x32xf32>
    %168 = arith.cmpf oeq, %139, %117 : vector<32x32xf32>
    %169 = arith.cmpf oeq, %139, %127 : vector<32x32xf32>
    %170 = arith.select %169, %163, %167 : vector<32x32xi1>, vector<32x32xf32>
    %171 = arith.select %168, %159, %170 : vector<32x32xi1>, vector<32x32xf32>
    %cst_64 = arith.constant 0.166666672 : f32
    %172 = vector.broadcast %cst_64 : f32 to vector<32x32xf32>
    %173 = arith.mulf %171, %172 : vector<32x32xf32>
    %174 = math.floor %173 : vector<32x32xf32>
    %cst_65 = arith.constant 6.000000e+00 : f32
    %175 = vector.broadcast %cst_65 : f32 to vector<32x32xf32>
    %176 = arith.mulf %175, %174 : vector<32x32xf32>
    %177 = arith.subf %171, %176 : vector<32x32xf32>
    %cst_66 = arith.constant 0.166666672 : f32
    %178 = vector.broadcast %cst_66 : f32 to vector<32x32xf32>
    %179 = arith.mulf %177, %178 : vector<32x32xf32>
    %cst_67 = arith.constant 0.000000e+00 : f32
    %180 = vector.broadcast %cst_67 : f32 to vector<32x32xf32>
    %181 = arith.cmpf ogt, %142, %180 : vector<32x32xf32>
    %cst_68 = arith.constant 0.000000e+00 : f32
    %182 = vector.broadcast %cst_68 : f32 to vector<32x32xf32>
    %183 = arith.select %181, %179, %182 : vector<32x32xi1>, vector<32x32xf32>
    %184 = vector.broadcast %14 : f32 to vector<32x32xf32>
    %185 = arith.addf %183, %184 : vector<32x32xf32>
    %cst_69 = arith.constant 1.000000e+00 : f32
    %186 = vector.broadcast %cst_69 : f32 to vector<32x32xf32>
    %187 = arith.mulf %185, %186 : vector<32x32xf32>
    %188 = math.floor %187 : vector<32x32xf32>
    %cst_70 = arith.constant 1.000000e+00 : f32
    %189 = vector.broadcast %cst_70 : f32 to vector<32x32xf32>
    %190 = arith.mulf %189, %188 : vector<32x32xf32>
    %191 = arith.subf %185, %190 : vector<32x32xf32>
    %cst_71 = arith.constant 6.000000e+00 : f32
    %192 = vector.broadcast %cst_71 : f32 to vector<32x32xf32>
    %193 = arith.mulf %191, %192 : vector<32x32xf32>
    %194 = math.floor %193 : vector<32x32xf32>
    %195 = arith.subf %193, %194 : vector<32x32xf32>
    %cst_72 = arith.constant 1.000000e+00 : f32
    %196 = vector.broadcast %cst_72 : f32 to vector<32x32xf32>
    %197 = arith.subf %196, %157 : vector<32x32xf32>
    %198 = arith.mulf %139, %197 : vector<32x32xf32>
    %199 = arith.mulf %157, %195 : vector<32x32xf32>
    %cst_73 = arith.constant 1.000000e+00 : f32
    %200 = vector.broadcast %cst_73 : f32 to vector<32x32xf32>
    %201 = arith.subf %200, %199 : vector<32x32xf32>
    %202 = arith.mulf %139, %201 : vector<32x32xf32>
    %cst_74 = arith.constant 1.000000e+00 : f32
    %203 = vector.broadcast %cst_74 : f32 to vector<32x32xf32>
    %204 = arith.subf %203, %195 : vector<32x32xf32>
    %205 = arith.mulf %157, %204 : vector<32x32xf32>
    %cst_75 = arith.constant 1.000000e+00 : f32
    %206 = vector.broadcast %cst_75 : f32 to vector<32x32xf32>
    %207 = arith.subf %206, %205 : vector<32x32xf32>
    %208 = arith.mulf %139, %207 : vector<32x32xf32>
    %cst_76 = arith.constant 0.166666672 : f32
    %209 = vector.broadcast %cst_76 : f32 to vector<32x32xf32>
    %210 = arith.mulf %194, %209 : vector<32x32xf32>
    %211 = math.floor %210 : vector<32x32xf32>
    %cst_77 = arith.constant 6.000000e+00 : f32
    %212 = vector.broadcast %cst_77 : f32 to vector<32x32xf32>
    %213 = arith.mulf %212, %211 : vector<32x32xf32>
    %214 = arith.subf %194, %213 : vector<32x32xf32>
    %cst_78 = arith.constant 1.000000e+00 : f32
    %215 = vector.broadcast %cst_78 : f32 to vector<32x32xf32>
    %216 = arith.cmpf olt, %214, %215 : vector<32x32xf32>
    %cst_79 = arith.constant 2.000000e+00 : f32
    %217 = vector.broadcast %cst_79 : f32 to vector<32x32xf32>
    %218 = arith.cmpf olt, %214, %217 : vector<32x32xf32>
    %cst_80 = arith.constant 3.000000e+00 : f32
    %219 = vector.broadcast %cst_80 : f32 to vector<32x32xf32>
    %220 = arith.cmpf olt, %214, %219 : vector<32x32xf32>
    %cst_81 = arith.constant 4.000000e+00 : f32
    %221 = vector.broadcast %cst_81 : f32 to vector<32x32xf32>
    %222 = arith.cmpf olt, %214, %221 : vector<32x32xf32>
    %cst_82 = arith.constant 5.000000e+00 : f32
    %223 = vector.broadcast %cst_82 : f32 to vector<32x32xf32>
    %224 = arith.cmpf olt, %214, %223 : vector<32x32xf32>
    %225 = arith.select %224, %208, %139 : vector<32x32xi1>, vector<32x32xf32>
    %226 = arith.select %222, %198, %225 : vector<32x32xi1>, vector<32x32xf32>
    %227 = arith.select %220, %198, %226 : vector<32x32xi1>, vector<32x32xf32>
    %228 = arith.select %218, %202, %227 : vector<32x32xi1>, vector<32x32xf32>
    %229 = arith.select %216, %139, %228 : vector<32x32xi1>, vector<32x32xf32>
    %cst_83 = arith.constant 1.000000e+00 : f32
    %230 = vector.broadcast %cst_83 : f32 to vector<32x32xf32>
    %231 = arith.cmpf olt, %214, %230 : vector<32x32xf32>
    %cst_84 = arith.constant 2.000000e+00 : f32
    %232 = vector.broadcast %cst_84 : f32 to vector<32x32xf32>
    %233 = arith.cmpf olt, %214, %232 : vector<32x32xf32>
    %cst_85 = arith.constant 3.000000e+00 : f32
    %234 = vector.broadcast %cst_85 : f32 to vector<32x32xf32>
    %235 = arith.cmpf olt, %214, %234 : vector<32x32xf32>
    %cst_86 = arith.constant 4.000000e+00 : f32
    %236 = vector.broadcast %cst_86 : f32 to vector<32x32xf32>
    %237 = arith.cmpf olt, %214, %236 : vector<32x32xf32>
    %cst_87 = arith.constant 5.000000e+00 : f32
    %238 = vector.broadcast %cst_87 : f32 to vector<32x32xf32>
    %239 = arith.cmpf olt, %214, %238 : vector<32x32xf32>
    %240 = arith.select %239, %198, %198 : vector<32x32xi1>, vector<32x32xf32>
    %241 = arith.select %237, %202, %240 : vector<32x32xi1>, vector<32x32xf32>
    %242 = arith.select %235, %139, %241 : vector<32x32xi1>, vector<32x32xf32>
    %243 = arith.select %233, %139, %242 : vector<32x32xi1>, vector<32x32xf32>
    %244 = arith.select %231, %208, %243 : vector<32x32xi1>, vector<32x32xf32>
    %cst_88 = arith.constant 1.000000e+00 : f32
    %245 = vector.broadcast %cst_88 : f32 to vector<32x32xf32>
    %246 = arith.cmpf olt, %214, %245 : vector<32x32xf32>
    %cst_89 = arith.constant 2.000000e+00 : f32
    %247 = vector.broadcast %cst_89 : f32 to vector<32x32xf32>
    %248 = arith.cmpf olt, %214, %247 : vector<32x32xf32>
    %cst_90 = arith.constant 3.000000e+00 : f32
    %249 = vector.broadcast %cst_90 : f32 to vector<32x32xf32>
    %250 = arith.cmpf olt, %214, %249 : vector<32x32xf32>
    %cst_91 = arith.constant 4.000000e+00 : f32
    %251 = vector.broadcast %cst_91 : f32 to vector<32x32xf32>
    %252 = arith.cmpf olt, %214, %251 : vector<32x32xf32>
    %cst_92 = arith.constant 5.000000e+00 : f32
    %253 = vector.broadcast %cst_92 : f32 to vector<32x32xf32>
    %254 = arith.cmpf olt, %214, %253 : vector<32x32xf32>
    %255 = arith.select %254, %139, %202 : vector<32x32xi1>, vector<32x32xf32>
    %256 = arith.select %252, %139, %255 : vector<32x32xi1>, vector<32x32xf32>
    %257 = arith.select %250, %208, %256 : vector<32x32xi1>, vector<32x32xf32>
    %258 = arith.select %248, %198, %257 : vector<32x32xi1>, vector<32x32xf32>
    %259 = arith.select %246, %198, %258 : vector<32x32xi1>, vector<32x32xf32>
    %cst_93 = arith.constant 2.990000e-01 : f32
    %260 = vector.broadcast %cst_93 : f32 to vector<32x32xf32>
    %261 = arith.mulf %260, %229 : vector<32x32xf32>
    %cst_94 = arith.constant 5.870000e-01 : f32
    %262 = vector.broadcast %cst_94 : f32 to vector<32x32xf32>
    %263 = arith.mulf %262, %244 : vector<32x32xf32>
    %264 = arith.addf %261, %263 : vector<32x32xf32>
    %cst_95 = arith.constant 1.140000e-01 : f32
    %265 = vector.broadcast %cst_95 : f32 to vector<32x32xf32>
    %266 = arith.mulf %265, %259 : vector<32x32xf32>
    %267 = arith.addf %264, %266 : vector<32x32xf32>
    %cst_96 = arith.constant 5.000000e-01 : f32
    %268 = arith.cmpf ogt, %17, %cst_96 : f32
    %269 = arith.select %268, %267, %229 : vector<32x32xf32>
    %270 = arith.select %268, %267, %244 : vector<32x32xf32>
    %271 = arith.select %268, %267, %259 : vector<32x32xf32>
    %272 = tpu.concatenate %269, %270, %271 in 0 : vector<32x32xf32>, vector<32x32xf32>, vector<32x32xf32> -> vector<96x32xf32>
    %273 = arith.truncf %272 : vector<96x32xf32> to vector<96x32xbf16>
    %cst_97 = arith.constant dense<0.000000e+00> : vector<96x32xf32>
    %274 = tpu.matmul %273, %25, %cst_97 {dimension_numbers = #tpu.dot_dimension_numbers<[1], [0], [0], [1], [0, 0, 1, 1], [], []>} : vector<96x32xbf16>, vector<32x32xbf16>, vector<96x32xf32> -> vector<96x32xf32>
    %275 = vector.extract_strided_slice %274 {offsets = [0, 0], sizes = [32, 32], strides = [1, 1]} : vector<96x32xf32> to vector<32x32xf32>
    %276 = arith.truncf %275 : vector<32x32xf32> to vector<32x32xbf16>
    %cst_98 = arith.constant dense<0.000000e+00> : vector<32x32xf32>
    %277 = tpu.matmul %23, %276, %cst_98 {dimension_numbers = #tpu.dot_dimension_numbers<[1], [0], [0], [1], [0, 0, 1, 1], [], []>} : vector<32x32xbf16>, vector<32x32xbf16>, vector<32x32xf32> -> vector<32x32xf32>
    %c0_99 = arith.constant 0 : index
    %c0_100 = arith.constant 0 : index
    %c0_101 = arith.constant 0 : index
    %c0_102 = arith.constant 0 : index
    %278 = vector.load %arg7[%c0_99, %c0_100, %c0_101, %c0_102] : memref<2x3x32x32xf32, #tpu.memory_space<vmem>>, vector<1x1x32x32xf32>
    %279 = vector.shape_cast %278 : vector<1x1x32x32xf32> to vector<32x32xf32>
    %280 = vector.shape_cast %277 : vector<32x32xf32> to vector<1x1x32x32xf32>
    tpu.vector_store %arg7[%c0_99, %c0_100, %c0_101, %c0_102], %280 {strides = array<i32>} : memref<2x3x32x32xf32, #tpu.memory_space<vmem>>, vector<1x1x32x32xf32>,
    %281 = vector.extract_strided_slice %274 {offsets = [32, 0], sizes = [32, 32], strides = [1, 1]} : vector<96x32xf32> to vector<32x32xf32>
    %282 = arith.truncf %281 : vector<32x32xf32> to vector<32x32xbf16>
    %cst_103 = arith.constant dense<0.000000e+00> : vector<32x32xf32>
    %283 = tpu.matmul %23, %282, %cst_103 {dimension_numbers = #tpu.dot_dimension_numbers<[1], [0], [0], [1], [0, 0, 1, 1], [], []>} : vector<32x32xbf16>, vector<32x32xbf16>, vector<32x32xf32> -> vector<32x32xf32>
    %c0_104 = arith.constant 0 : index
    %c1_105 = arith.constant 1 : index
    %c0_106 = arith.constant 0 : index
    %c0_107 = arith.constant 0 : index
    %284 = vector.load %arg7[%c0_104, %c1_105, %c0_106, %c0_107] : memref<2x3x32x32xf32, #tpu.memory_space<vmem>>, vector<1x1x32x32xf32>
    %285 = vector.shape_cast %284 : vector<1x1x32x32xf32> to vector<32x32xf32>
    %286 = vector.shape_cast %283 : vector<32x32xf32> to vector<1x1x32x32xf32>
    tpu.vector_store %arg7[%c0_104, %c1_105, %c0_106, %c0_107], %286 {strides = array<i32>} : memref<2x3x32x32xf32, #tpu.memory_space<vmem>>, vector<1x1x32x32xf32>,
    %287 = vector.extract_strided_slice %274 {offsets = [64, 0], sizes = [32, 32], strides = [1, 1]} : vector<96x32xf32> to vector<32x32xf32>
    %288 = arith.truncf %287 : vector<32x32xf32> to vector<32x32xbf16>
    %cst_108 = arith.constant dense<0.000000e+00> : vector<32x32xf32>
    %289 = tpu.matmul %23, %288, %cst_108 {dimension_numbers = #tpu.dot_dimension_numbers<[1], [0], [0], [1], [0, 0, 1, 1], [], []>} : vector<32x32xbf16>, vector<32x32xbf16>, vector<32x32xf32> -> vector<32x32xf32>
    %c0_109 = arith.constant 0 : index
    %c2_110 = arith.constant 2 : index
    %c0_111 = arith.constant 0 : index
    %c0_112 = arith.constant 0 : index
    %290 = vector.load %arg7[%c0_109, %c2_110, %c0_111, %c0_112] : memref<2x3x32x32xf32, #tpu.memory_space<vmem>>, vector<1x1x32x32xf32>
    %291 = vector.shape_cast %290 : vector<1x1x32x32xf32> to vector<32x32xf32>
    %292 = vector.shape_cast %289 : vector<32x32xf32> to vector<1x1x32x32xf32>
    tpu.vector_store %arg7[%c0_109, %c2_110, %c0_111, %c0_112], %292 {strides = array<i32>} : memref<2x3x32x32xf32, #tpu.memory_space<vmem>>, vector<1x1x32x32xf32>,
    %c2_i32_113 = arith.constant 2 : i32
    %293 = arith.muli %arg0, %c2_i32_113 : i32
    %c1_i32_114 = arith.constant 1 : i32
    %294 = arith.addi %293, %c1_i32_114 : i32
    %c8_i32_115 = arith.constant 8 : i32
    %295 = arith.muli %294, %c8_i32_115 : i32
    %c0_i32_116 = arith.constant 0 : i32
    %296 = arith.addi %295, %c0_i32_116 : i32
    %297 = arith.index_cast %296 : i32 to index
    %298 = memref.load %arg1[%297] : memref<16xf32, #tpu.memory_space<smem>>
    %c1_i32_117 = arith.constant 1 : i32
    %299 = arith.addi %295, %c1_i32_117 : i32
    %300 = arith.index_cast %299 : i32 to index
    %301 = memref.load %arg1[%300] : memref<16xf32, #tpu.memory_space<smem>>
    %c2_i32_118 = arith.constant 2 : i32
    %302 = arith.addi %295, %c2_i32_118 : i32
    %303 = arith.index_cast %302 : i32 to index
    %304 = memref.load %arg1[%303] : memref<16xf32, #tpu.memory_space<smem>>
    %c3_i32_119 = arith.constant 3 : i32
    %305 = arith.addi %295, %c3_i32_119 : i32
    %306 = arith.index_cast %305 : i32 to index
    %307 = memref.load %arg1[%306] : memref<16xf32, #tpu.memory_space<smem>>
    %c4_i32_120 = arith.constant 4 : i32
    %308 = arith.addi %295, %c4_i32_120 : i32
    %309 = arith.index_cast %308 : i32 to index
    %310 = memref.load %arg1[%309] : memref<16xf32, #tpu.memory_space<smem>>
    %c1_121 = arith.constant 1 : index
    %c0_122 = arith.constant 0 : index
    %c0_123 = arith.constant 0 : index
    %311 = vector.load %arg3[%c1_121, %c0_122, %c0_123] : memref<2x32x32xbf16, #tpu.memory_space<vmem>>, vector<1x32x32xbf16>
    %312 = vector.shape_cast %311 : vector<1x32x32xbf16> to vector<32x32xbf16>
    %c1_124 = arith.constant 1 : index
    %c0_125 = arith.constant 0 : index
    %c0_126 = arith.constant 0 : index
    %313 = vector.load %arg4[%c1_124, %c0_125, %c0_126] : memref<2x32x32xbf16, #tpu.memory_space<vmem>>, vector<1x32x32xbf16>
    %314 = vector.shape_cast %313 : vector<1x32x32xbf16> to vector<32x32xbf16>
    %c1_127 = arith.constant 1 : index
    %c0_128 = arith.constant 0 : index
    %c0_129 = arith.constant 0 : index
    %315 = vector.load %arg5[%c1_127, %c0_128, %c0_129] : memref<2x32x32xbf16, #tpu.memory_space<vmem>>, vector<1x32x32xbf16>
    %316 = vector.shape_cast %315 : vector<1x32x32xbf16> to vector<32x32xbf16>
    %c1_130 = arith.constant 1 : index
    %c0_131 = arith.constant 0 : index
    %c0_132 = arith.constant 0 : index
    %317 = vector.load %arg6[%c1_130, %c0_131, %c0_132] : memref<2x32x32xbf16, #tpu.memory_space<vmem>>, vector<1x32x32xbf16>
    %318 = vector.shape_cast %317 : vector<1x32x32xbf16> to vector<32x32xbf16>
    %c1_133 = arith.constant 1 : index
    %c0_134 = arith.constant 0 : index
    %c0_135 = arith.constant 0 : index
    %c0_136 = arith.constant 0 : index
    %319 = vector.load %arg2[%c1_133, %c0_134, %c0_135, %c0_136] : memref<2x3x32x32xbf16, #tpu.memory_space<vmem>>, vector<1x1x32x32xbf16>
    %320 = vector.shape_cast %319 : vector<1x1x32x32xbf16> to vector<32x32xbf16>
    %c1_137 = arith.constant 1 : index
    %c1_138 = arith.constant 1 : index
    %c0_139 = arith.constant 0 : index
    %c0_140 = arith.constant 0 : index
    %321 = vector.load %arg2[%c1_137, %c1_138, %c0_139, %c0_140] : memref<2x3x32x32xbf16, #tpu.memory_space<vmem>>, vector<1x1x32x32xbf16>
    %322 = vector.shape_cast %321 : vector<1x1x32x32xbf16> to vector<32x32xbf16>
    %c1_141 = arith.constant 1 : index
    %c2_142 = arith.constant 2 : index
    %c0_143 = arith.constant 0 : index
    %c0_144 = arith.constant 0 : index
    %323 = vector.load %arg2[%c1_141, %c2_142, %c0_143, %c0_144] : memref<2x3x32x32xbf16, #tpu.memory_space<vmem>>, vector<1x1x32x32xbf16>
    %324 = vector.shape_cast %323 : vector<1x1x32x32xbf16> to vector<32x32xbf16>
    %325 = tpu.concatenate %320, %322, %324 in 0 : vector<32x32xbf16>, vector<32x32xbf16>, vector<32x32xbf16> -> vector<96x32xbf16>
    %cst_145 = arith.constant dense<0.000000e+00> : vector<96x32xf32>
    %326 = tpu.matmul %325, %314, %cst_145 {dimension_numbers = #tpu.dot_dimension_numbers<[1], [0], [0], [1], [0, 0, 1, 1], [], []>} : vector<96x32xbf16>, vector<32x32xbf16>, vector<96x32xf32> -> vector<96x32xf32>
    %327 = vector.extract_strided_slice %326 {offsets = [0, 0], sizes = [32, 32], strides = [1, 1]} : vector<96x32xf32> to vector<32x32xf32>
    %328 = arith.truncf %327 : vector<32x32xf32> to vector<32x32xbf16>
    %cst_146 = arith.constant dense<0.000000e+00> : vector<32x32xf32>
    %329 = tpu.matmul %312, %328, %cst_146 {dimension_numbers = #tpu.dot_dimension_numbers<[1], [0], [0], [1], [0, 0, 1, 1], [], []>} : vector<32x32xbf16>, vector<32x32xbf16>, vector<32x32xf32> -> vector<32x32xf32>
    %330 = vector.extract_strided_slice %326 {offsets = [32, 0], sizes = [32, 32], strides = [1, 1]} : vector<96x32xf32> to vector<32x32xf32>
    %331 = arith.truncf %330 : vector<32x32xf32> to vector<32x32xbf16>
    %cst_147 = arith.constant dense<0.000000e+00> : vector<32x32xf32>
    %332 = tpu.matmul %312, %331, %cst_147 {dimension_numbers = #tpu.dot_dimension_numbers<[1], [0], [0], [1], [0, 0, 1, 1], [], []>} : vector<32x32xbf16>, vector<32x32xbf16>, vector<32x32xf32> -> vector<32x32xf32>
    %333 = vector.extract_strided_slice %326 {offsets = [64, 0], sizes = [32, 32], strides = [1, 1]} : vector<96x32xf32> to vector<32x32xf32>
    %334 = arith.truncf %333 : vector<32x32xf32> to vector<32x32xbf16>
    %cst_148 = arith.constant dense<0.000000e+00> : vector<32x32xf32>
    %335 = tpu.matmul %312, %334, %cst_148 {dimension_numbers = #tpu.dot_dimension_numbers<[1], [0], [0], [1], [0, 0, 1, 1], [], []>} : vector<32x32xbf16>, vector<32x32xbf16>, vector<32x32xf32> -> vector<32x32xf32>
    %336 = vector.broadcast %298 : f32 to vector<32x32xf32>
    %337 = arith.mulf %329, %336 : vector<32x32xf32>
    %cst_149 = arith.constant 0.000000e+00 : f32
    %cst_150 = arith.constant 1.000000e+00 : f32
    %338 = vector.broadcast %cst_149 : f32 to vector<32x32xf32>
    %339 = arith.maximumf %338, %337 : vector<32x32xf32>
    %340 = vector.broadcast %cst_150 : f32 to vector<32x32xf32>
    %341 = arith.minimumf %340, %339 : vector<32x32xf32>
    %342 = vector.broadcast %298 : f32 to vector<32x32xf32>
    %343 = arith.mulf %332, %342 : vector<32x32xf32>
    %cst_151 = arith.constant 0.000000e+00 : f32
    %cst_152 = arith.constant 1.000000e+00 : f32
    %344 = vector.broadcast %cst_151 : f32 to vector<32x32xf32>
    %345 = arith.maximumf %344, %343 : vector<32x32xf32>
    %346 = vector.broadcast %cst_152 : f32 to vector<32x32xf32>
    %347 = arith.minimumf %346, %345 : vector<32x32xf32>
    %348 = vector.broadcast %298 : f32 to vector<32x32xf32>
    %349 = arith.mulf %335, %348 : vector<32x32xf32>
    %cst_153 = arith.constant 0.000000e+00 : f32
    %cst_154 = arith.constant 1.000000e+00 : f32
    %350 = vector.broadcast %cst_153 : f32 to vector<32x32xf32>
    %351 = arith.maximumf %350, %349 : vector<32x32xf32>
    %352 = vector.broadcast %cst_154 : f32 to vector<32x32xf32>
    %353 = arith.minimumf %352, %351 : vector<32x32xf32>
    %cst_155 = arith.constant 2.990000e-01 : f32
    %354 = vector.broadcast %cst_155 : f32 to vector<32x32xf32>
    %355 = arith.mulf %354, %341 : vector<32x32xf32>
    %cst_156 = arith.constant 5.870000e-01 : f32
    %356 = vector.broadcast %cst_156 : f32 to vector<32x32xf32>
    %357 = arith.mulf %356, %347 : vector<32x32xf32>
    %358 = arith.addf %355, %357 : vector<32x32xf32>
    %cst_157 = arith.constant 1.140000e-01 : f32
    %359 = vector.broadcast %cst_157 : f32 to vector<32x32xf32>
    %360 = arith.mulf %359, %353 : vector<32x32xf32>
    %361 = arith.addf %358, %360 : vector<32x32xf32>
    %cst_158 = arith.constant 1.000000e+00 : f32
    %362 = arith.subf %cst_158, %301 : f32
    %363 = vector.shape_cast %361 : vector<32x32xf32> to vector<1x32x32xf32>
    %cst_159 = arith.constant dense<0.000000e+00> : vector<1xf32>
    %364 = vector.multi_reduction <add>, %363, %cst_159 [1, 2] : vector<1x32x32xf32> to vector<1xf32>
    %365 = vector.shape_cast %364 : vector<1xf32> to vector<1x1x1xf32>
    %366 = vector.extract %365[0, 0, 0] : f32 from vector<1x1x1xf32>
    %cst_160 = arith.constant 1.024000e+03 : f32
    %367 = arith.divf %366, %cst_160 : f32
    %368 = arith.mulf %362, %367 : f32
    %369 = vector.broadcast %301 : f32 to vector<32x32xf32>
    %370 = arith.mulf %369, %341 : vector<32x32xf32>
    %371 = vector.broadcast %368 : f32 to vector<32x32xf32>
    %372 = arith.addf %370, %371 : vector<32x32xf32>
    %cst_161 = arith.constant 0.000000e+00 : f32
    %cst_162 = arith.constant 1.000000e+00 : f32
    %373 = vector.broadcast %cst_161 : f32 to vector<32x32xf32>
    %374 = arith.maximumf %373, %372 : vector<32x32xf32>
    %375 = vector.broadcast %cst_162 : f32 to vector<32x32xf32>
    %376 = arith.minimumf %375, %374 : vector<32x32xf32>
    %377 = vector.broadcast %301 : f32 to vector<32x32xf32>
    %378 = arith.mulf %377, %347 : vector<32x32xf32>
    %379 = vector.broadcast %368 : f32 to vector<32x32xf32>
    %380 = arith.addf %378, %379 : vector<32x32xf32>
    %cst_163 = arith.constant 0.000000e+00 : f32
    %cst_164 = arith.constant 1.000000e+00 : f32
    %381 = vector.broadcast %cst_163 : f32 to vector<32x32xf32>
    %382 = arith.maximumf %381, %380 : vector<32x32xf32>
    %383 = vector.broadcast %cst_164 : f32 to vector<32x32xf32>
    %384 = arith.minimumf %383, %382 : vector<32x32xf32>
    %385 = vector.broadcast %301 : f32 to vector<32x32xf32>
    %386 = arith.mulf %385, %353 : vector<32x32xf32>
    %387 = vector.broadcast %368 : f32 to vector<32x32xf32>
    %388 = arith.addf %386, %387 : vector<32x32xf32>
    %cst_165 = arith.constant 0.000000e+00 : f32
    %cst_166 = arith.constant 1.000000e+00 : f32
    %389 = vector.broadcast %cst_165 : f32 to vector<32x32xf32>
    %390 = arith.maximumf %389, %388 : vector<32x32xf32>
    %391 = vector.broadcast %cst_166 : f32 to vector<32x32xf32>
    %392 = arith.minimumf %391, %390 : vector<32x32xf32>
    %cst_167 = arith.constant 2.990000e-01 : f32
    %393 = vector.broadcast %cst_167 : f32 to vector<32x32xf32>
    %394 = arith.mulf %393, %376 : vector<32x32xf32>
    %cst_168 = arith.constant 5.870000e-01 : f32
    %395 = vector.broadcast %cst_168 : f32 to vector<32x32xf32>
    %396 = arith.mulf %395, %384 : vector<32x32xf32>
    %397 = arith.addf %394, %396 : vector<32x32xf32>
    %cst_169 = arith.constant 1.140000e-01 : f32
    %398 = vector.broadcast %cst_169 : f32 to vector<32x32xf32>
    %399 = arith.mulf %398, %392 : vector<32x32xf32>
    %400 = arith.addf %397, %399 : vector<32x32xf32>
    %401 = vector.broadcast %304 : f32 to vector<32x32xf32>
    %402 = arith.mulf %401, %376 : vector<32x32xf32>
    %cst_170 = arith.constant 1.000000e+00 : f32
    %403 = arith.subf %cst_170, %304 : f32
    %404 = vector.broadcast %403 : f32 to vector<32x32xf32>
    %405 = arith.mulf %404, %400 : vector<32x32xf32>
    %406 = arith.addf %402, %405 : vector<32x32xf32>
    %cst_171 = arith.constant 0.000000e+00 : f32
    %cst_172 = arith.constant 1.000000e+00 : f32
    %407 = vector.broadcast %cst_171 : f32 to vector<32x32xf32>
    %408 = arith.maximumf %407, %406 : vector<32x32xf32>
    %409 = vector.broadcast %cst_172 : f32 to vector<32x32xf32>
    %410 = arith.minimumf %409, %408 : vector<32x32xf32>
    %411 = vector.broadcast %304 : f32 to vector<32x32xf32>
    %412 = arith.mulf %411, %384 : vector<32x32xf32>
    %cst_173 = arith.constant 1.000000e+00 : f32
    %413 = arith.subf %cst_173, %304 : f32
    %414 = vector.broadcast %413 : f32 to vector<32x32xf32>
    %415 = arith.mulf %414, %400 : vector<32x32xf32>
    %416 = arith.addf %412, %415 : vector<32x32xf32>
    %cst_174 = arith.constant 0.000000e+00 : f32
    %cst_175 = arith.constant 1.000000e+00 : f32
    %417 = vector.broadcast %cst_174 : f32 to vector<32x32xf32>
    %418 = arith.maximumf %417, %416 : vector<32x32xf32>
    %419 = vector.broadcast %cst_175 : f32 to vector<32x32xf32>
    %420 = arith.minimumf %419, %418 : vector<32x32xf32>
    %421 = vector.broadcast %304 : f32 to vector<32x32xf32>
    %422 = arith.mulf %421, %392 : vector<32x32xf32>
    %cst_176 = arith.constant 1.000000e+00 : f32
    %423 = arith.subf %cst_176, %304 : f32
    %424 = vector.broadcast %423 : f32 to vector<32x32xf32>
    %425 = arith.mulf %424, %400 : vector<32x32xf32>
    %426 = arith.addf %422, %425 : vector<32x32xf32>
    %cst_177 = arith.constant 0.000000e+00 : f32
    %cst_178 = arith.constant 1.000000e+00 : f32
    %427 = vector.broadcast %cst_177 : f32 to vector<32x32xf32>
    %428 = arith.maximumf %427, %426 : vector<32x32xf32>
    %429 = vector.broadcast %cst_178 : f32 to vector<32x32xf32>
    %430 = arith.minimumf %429, %428 : vector<32x32xf32>
    %431 = arith.maximumf %420, %430 : vector<32x32xf32>
    %432 = arith.maximumf %410, %431 : vector<32x32xf32>
    %433 = arith.minimumf %420, %430 : vector<32x32xf32>
    %434 = arith.minimumf %410, %433 : vector<32x32xf32>
    %435 = arith.subf %432, %434 : vector<32x32xf32>
    %cst_179 = arith.constant 0.000000e+00 : f32
    %436 = vector.broadcast %cst_179 : f32 to vector<32x32xf32>
    %437 = arith.cmpf ogt, %435, %436 : vector<32x32xf32>
    %cst_180 = arith.constant 1.000000e+00 : f32
    %438 = vector.broadcast %cst_180 : f32 to vector<32x32xf32>
    %439 = arith.select %437, %435, %438 : vector<32x32xi1>, vector<32x32xf32>
    %440 = tpu.reciprocal %439 {approx = true} : vector<32x32xf32> -> vector<32x32xf32>
    %cst_181 = arith.constant 0.000000e+00 : f32
    %441 = vector.broadcast %cst_181 : f32 to vector<32x32xf32>
    %442 = arith.cmpf ogt, %432, %441 : vector<32x32xf32>
    %cst_182 = arith.constant 1.000000e+00 : f32
    %443 = vector.broadcast %cst_182 : f32 to vector<32x32xf32>
    %444 = arith.select %442, %432, %443 : vector<32x32xi1>, vector<32x32xf32>
    %cst_183 = arith.constant 0.000000e+00 : f32
    %445 = vector.broadcast %cst_183 : f32 to vector<32x32xf32>
    %446 = arith.cmpf ogt, %432, %445 : vector<32x32xf32>
    %447 = tpu.reciprocal %444 {approx = true} : vector<32x32xf32> -> vector<32x32xf32>
    %448 = arith.mulf %435, %447 : vector<32x32xf32>
    %cst_184 = arith.constant 0.000000e+00 : f32
    %449 = vector.broadcast %cst_184 : f32 to vector<32x32xf32>
    %450 = arith.select %446, %448, %449 : vector<32x32xi1>, vector<32x32xf32>
    %451 = arith.subf %420, %430 : vector<32x32xf32>
    %452 = arith.mulf %451, %440 : vector<32x32xf32>
    %453 = arith.subf %430, %410 : vector<32x32xf32>
    %454 = arith.mulf %453, %440 : vector<32x32xf32>
    %cst_185 = arith.constant 2.000000e+00 : f32
    %455 = vector.broadcast %cst_185 : f32 to vector<32x32xf32>
    %456 = arith.addf %454, %455 : vector<32x32xf32>
    %457 = arith.subf %410, %420 : vector<32x32xf32>
    %458 = arith.mulf %457, %440 : vector<32x32xf32>
    %cst_186 = arith.constant 4.000000e+00 : f32
    %459 = vector.broadcast %cst_186 : f32 to vector<32x32xf32>
    %460 = arith.addf %458, %459 : vector<32x32xf32>
    %461 = arith.cmpf oeq, %432, %410 : vector<32x32xf32>
    %462 = arith.cmpf oeq, %432, %420 : vector<32x32xf32>
    %463 = arith.select %462, %456, %460 : vector<32x32xi1>, vector<32x32xf32>
    %464 = arith.select %461, %452, %463 : vector<32x32xi1>, vector<32x32xf32>
    %cst_187 = arith.constant 0.166666672 : f32
    %465 = vector.broadcast %cst_187 : f32 to vector<32x32xf32>
    %466 = arith.mulf %464, %465 : vector<32x32xf32>
    %467 = math.floor %466 : vector<32x32xf32>
    %cst_188 = arith.constant 6.000000e+00 : f32
    %468 = vector.broadcast %cst_188 : f32 to vector<32x32xf32>
    %469 = arith.mulf %468, %467 : vector<32x32xf32>
    %470 = arith.subf %464, %469 : vector<32x32xf32>
    %cst_189 = arith.constant 0.166666672 : f32
    %471 = vector.broadcast %cst_189 : f32 to vector<32x32xf32>
    %472 = arith.mulf %470, %471 : vector<32x32xf32>
    %cst_190 = arith.constant 0.000000e+00 : f32
    %473 = vector.broadcast %cst_190 : f32 to vector<32x32xf32>
    %474 = arith.cmpf ogt, %435, %473 : vector<32x32xf32>
    %cst_191 = arith.constant 0.000000e+00 : f32
    %475 = vector.broadcast %cst_191 : f32 to vector<32x32xf32>
    %476 = arith.select %474, %472, %475 : vector<32x32xi1>, vector<32x32xf32>
    %477 = vector.broadcast %307 : f32 to vector<32x32xf32>
    %478 = arith.addf %476, %477 : vector<32x32xf32>
    %cst_192 = arith.constant 1.000000e+00 : f32
    %479 = vector.broadcast %cst_192 : f32 to vector<32x32xf32>
    %480 = arith.mulf %478, %479 : vector<32x32xf32>
    %481 = math.floor %480 : vector<32x32xf32>
    %cst_193 = arith.constant 1.000000e+00 : f32
    %482 = vector.broadcast %cst_193 : f32 to vector<32x32xf32>
    %483 = arith.mulf %482, %481 : vector<32x32xf32>
    %484 = arith.subf %478, %483 : vector<32x32xf32>
    %cst_194 = arith.constant 6.000000e+00 : f32
    %485 = vector.broadcast %cst_194 : f32 to vector<32x32xf32>
    %486 = arith.mulf %484, %485 : vector<32x32xf32>
    %487 = math.floor %486 : vector<32x32xf32>
    %488 = arith.subf %486, %487 : vector<32x32xf32>
    %cst_195 = arith.constant 1.000000e+00 : f32
    %489 = vector.broadcast %cst_195 : f32 to vector<32x32xf32>
    %490 = arith.subf %489, %450 : vector<32x32xf32>
    %491 = arith.mulf %432, %490 : vector<32x32xf32>
    %492 = arith.mulf %450, %488 : vector<32x32xf32>
    %cst_196 = arith.constant 1.000000e+00 : f32
    %493 = vector.broadcast %cst_196 : f32 to vector<32x32xf32>
    %494 = arith.subf %493, %492 : vector<32x32xf32>
    %495 = arith.mulf %432, %494 : vector<32x32xf32>
    %cst_197 = arith.constant 1.000000e+00 : f32
    %496 = vector.broadcast %cst_197 : f32 to vector<32x32xf32>
    %497 = arith.subf %496, %488 : vector<32x32xf32>
    %498 = arith.mulf %450, %497 : vector<32x32xf32>
    %cst_198 = arith.constant 1.000000e+00 : f32
    %499 = vector.broadcast %cst_198 : f32 to vector<32x32xf32>
    %500 = arith.subf %499, %498 : vector<32x32xf32>
    %501 = arith.mulf %432, %500 : vector<32x32xf32>
    %cst_199 = arith.constant 0.166666672 : f32
    %502 = vector.broadcast %cst_199 : f32 to vector<32x32xf32>
    %503 = arith.mulf %487, %502 : vector<32x32xf32>
    %504 = math.floor %503 : vector<32x32xf32>
    %cst_200 = arith.constant 6.000000e+00 : f32
    %505 = vector.broadcast %cst_200 : f32 to vector<32x32xf32>
    %506 = arith.mulf %505, %504 : vector<32x32xf32>
    %507 = arith.subf %487, %506 : vector<32x32xf32>
    %cst_201 = arith.constant 1.000000e+00 : f32
    %508 = vector.broadcast %cst_201 : f32 to vector<32x32xf32>
    %509 = arith.cmpf olt, %507, %508 : vector<32x32xf32>
    %cst_202 = arith.constant 2.000000e+00 : f32
    %510 = vector.broadcast %cst_202 : f32 to vector<32x32xf32>
    %511 = arith.cmpf olt, %507, %510 : vector<32x32xf32>
    %cst_203 = arith.constant 3.000000e+00 : f32
    %512 = vector.broadcast %cst_203 : f32 to vector<32x32xf32>
    %513 = arith.cmpf olt, %507, %512 : vector<32x32xf32>
    %cst_204 = arith.constant 4.000000e+00 : f32
    %514 = vector.broadcast %cst_204 : f32 to vector<32x32xf32>
    %515 = arith.cmpf olt, %507, %514 : vector<32x32xf32>
    %cst_205 = arith.constant 5.000000e+00 : f32
    %516 = vector.broadcast %cst_205 : f32 to vector<32x32xf32>
    %517 = arith.cmpf olt, %507, %516 : vector<32x32xf32>
    %518 = arith.select %517, %501, %432 : vector<32x32xi1>, vector<32x32xf32>
    %519 = arith.select %515, %491, %518 : vector<32x32xi1>, vector<32x32xf32>
    %520 = arith.select %513, %491, %519 : vector<32x32xi1>, vector<32x32xf32>
    %521 = arith.select %511, %495, %520 : vector<32x32xi1>, vector<32x32xf32>
    %522 = arith.select %509, %432, %521 : vector<32x32xi1>, vector<32x32xf32>
    %cst_206 = arith.constant 1.000000e+00 : f32
    %523 = vector.broadcast %cst_206 : f32 to vector<32x32xf32>
    %524 = arith.cmpf olt, %507, %523 : vector<32x32xf32>
    %cst_207 = arith.constant 2.000000e+00 : f32
    %525 = vector.broadcast %cst_207 : f32 to vector<32x32xf32>
    %526 = arith.cmpf olt, %507, %525 : vector<32x32xf32>
    %cst_208 = arith.constant 3.000000e+00 : f32
    %527 = vector.broadcast %cst_208 : f32 to vector<32x32xf32>
    %528 = arith.cmpf olt, %507, %527 : vector<32x32xf32>
    %cst_209 = arith.constant 4.000000e+00 : f32
    %529 = vector.broadcast %cst_209 : f32 to vector<32x32xf32>
    %530 = arith.cmpf olt, %507, %529 : vector<32x32xf32>
    %cst_210 = arith.constant 5.000000e+00 : f32
    %531 = vector.broadcast %cst_210 : f32 to vector<32x32xf32>
    %532 = arith.cmpf olt, %507, %531 : vector<32x32xf32>
    %533 = arith.select %532, %491, %491 : vector<32x32xi1>, vector<32x32xf32>
    %534 = arith.select %530, %495, %533 : vector<32x32xi1>, vector<32x32xf32>
    %535 = arith.select %528, %432, %534 : vector<32x32xi1>, vector<32x32xf32>
    %536 = arith.select %526, %432, %535 : vector<32x32xi1>, vector<32x32xf32>
    %537 = arith.select %524, %501, %536 : vector<32x32xi1>, vector<32x32xf32>
    %cst_211 = arith.constant 1.000000e+00 : f32
    %538 = vector.broadcast %cst_211 : f32 to vector<32x32xf32>
    %539 = arith.cmpf olt, %507, %538 : vector<32x32xf32>
    %cst_212 = arith.constant 2.000000e+00 : f32
    %540 = vector.broadcast %cst_212 : f32 to vector<32x32xf32>
    %541 = arith.cmpf olt, %507, %540 : vector<32x32xf32>
    %cst_213 = arith.constant 3.000000e+00 : f32
    %542 = vector.broadcast %cst_213 : f32 to vector<32x32xf32>
    %543 = arith.cmpf olt, %507, %542 : vector<32x32xf32>
    %cst_214 = arith.constant 4.000000e+00 : f32
    %544 = vector.broadcast %cst_214 : f32 to vector<32x32xf32>
    %545 = arith.cmpf olt, %507, %544 : vector<32x32xf32>
    %cst_215 = arith.constant 5.000000e+00 : f32
    %546 = vector.broadcast %cst_215 : f32 to vector<32x32xf32>
    %547 = arith.cmpf olt, %507, %546 : vector<32x32xf32>
    %548 = arith.select %547, %432, %495 : vector<32x32xi1>, vector<32x32xf32>
    %549 = arith.select %545, %432, %548 : vector<32x32xi1>, vector<32x32xf32>
    %550 = arith.select %543, %501, %549 : vector<32x32xi1>, vector<32x32xf32>
    %551 = arith.select %541, %491, %550 : vector<32x32xi1>, vector<32x32xf32>
    %552 = arith.select %539, %491, %551 : vector<32x32xi1>, vector<32x32xf32>
    %cst_216 = arith.constant 2.990000e-01 : f32
    %553 = vector.broadcast %cst_216 : f32 to vector<32x32xf32>
    %554 = arith.mulf %553, %522 : vector<32x32xf32>
    %cst_217 = arith.constant 5.870000e-01 : f32
    %555 = vector.broadcast %cst_217 : f32 to vector<32x32xf32>
    %556 = arith.mulf %555, %537 : vector<32x32xf32>
    %557 = arith.addf %554, %556 : vector<32x32xf32>
    %cst_218 = arith.constant 1.140000e-01 : f32
    %558 = vector.broadcast %cst_218 : f32 to vector<32x32xf32>
    %559 = arith.mulf %558, %552 : vector<32x32xf32>
    %560 = arith.addf %557, %559 : vector<32x32xf32>
    %cst_219 = arith.constant 5.000000e-01 : f32
    %561 = arith.cmpf ogt, %310, %cst_219 : f32
    %562 = arith.select %561, %560, %522 : vector<32x32xf32>
    %563 = arith.select %561, %560, %537 : vector<32x32xf32>
    %564 = arith.select %561, %560, %552 : vector<32x32xf32>
    %565 = tpu.concatenate %562, %563, %564 in 0 : vector<32x32xf32>, vector<32x32xf32>, vector<32x32xf32> -> vector<96x32xf32>
    %566 = arith.truncf %565 : vector<96x32xf32> to vector<96x32xbf16>
    %cst_220 = arith.constant dense<0.000000e+00> : vector<96x32xf32>
    %567 = tpu.matmul %566, %318, %cst_220 {dimension_numbers = #tpu.dot_dimension_numbers<[1], [0], [0], [1], [0, 0, 1, 1], [], []>} : vector<96x32xbf16>, vector<32x32xbf16>, vector<96x32xf32> -> vector<96x32xf32>
    %568 = vector.extract_strided_slice %567 {offsets = [0, 0], sizes = [32, 32], strides = [1, 1]} : vector<96x32xf32> to vector<32x32xf32>
    %569 = arith.truncf %568 : vector<32x32xf32> to vector<32x32xbf16>
    %cst_221 = arith.constant dense<0.000000e+00> : vector<32x32xf32>
    %570 = tpu.matmul %316, %569, %cst_221 {dimension_numbers = #tpu.dot_dimension_numbers<[1], [0], [0], [1], [0, 0, 1, 1], [], []>} : vector<32x32xbf16>, vector<32x32xbf16>, vector<32x32xf32> -> vector<32x32xf32>
    %c1_222 = arith.constant 1 : index
    %c0_223 = arith.constant 0 : index
    %c0_224 = arith.constant 0 : index
    %c0_225 = arith.constant 0 : index
    %571 = vector.load %arg7[%c1_222, %c0_223, %c0_224, %c0_225] : memref<2x3x32x32xf32, #tpu.memory_space<vmem>>, vector<1x1x32x32xf32>
    %572 = vector.shape_cast %571 : vector<1x1x32x32xf32> to vector<32x32xf32>
    %573 = vector.shape_cast %570 : vector<32x32xf32> to vector<1x1x32x32xf32>
    tpu.vector_store %arg7[%c1_222, %c0_223, %c0_224, %c0_225], %573 {strides = array<i32>} : memref<2x3x32x32xf32, #tpu.memory_space<vmem>>, vector<1x1x32x32xf32>,
    %574 = vector.extract_strided_slice %567 {offsets = [32, 0], sizes = [32, 32], strides = [1, 1]} : vector<96x32xf32> to vector<32x32xf32>
    %575 = arith.truncf %574 : vector<32x32xf32> to vector<32x32xbf16>
    %cst_226 = arith.constant dense<0.000000e+00> : vector<32x32xf32>
    %576 = tpu.matmul %316, %575, %cst_226 {dimension_numbers = #tpu.dot_dimension_numbers<[1], [0], [0], [1], [0, 0, 1, 1], [], []>} : vector<32x32xbf16>, vector<32x32xbf16>, vector<32x32xf32> -> vector<32x32xf32>
    %c1_227 = arith.constant 1 : index
    %c1_228 = arith.constant 1 : index
    %c0_229 = arith.constant 0 : index
    %c0_230 = arith.constant 0 : index
    %577 = vector.load %arg7[%c1_227, %c1_228, %c0_229, %c0_230] : memref<2x3x32x32xf32, #tpu.memory_space<vmem>>, vector<1x1x32x32xf32>
    %578 = vector.shape_cast %577 : vector<1x1x32x32xf32> to vector<32x32xf32>
    %579 = vector.shape_cast %576 : vector<32x32xf32> to vector<1x1x32x32xf32>
    tpu.vector_store %arg7[%c1_227, %c1_228, %c0_229, %c0_230], %579 {strides = array<i32>} : memref<2x3x32x32xf32, #tpu.memory_space<vmem>>, vector<1x1x32x32xf32>,
    %580 = vector.extract_strided_slice %567 {offsets = [64, 0], sizes = [32, 32], strides = [1, 1]} : vector<96x32xf32> to vector<32x32xf32>
    %581 = arith.truncf %580 : vector<32x32xf32> to vector<32x32xbf16>
    %cst_231 = arith.constant dense<0.000000e+00> : vector<32x32xf32>
    %582 = tpu.matmul %316, %581, %cst_231 {dimension_numbers = #tpu.dot_dimension_numbers<[1], [0], [0], [1], [0, 0, 1, 1], [], []>} : vector<32x32xbf16>, vector<32x32xbf16>, vector<32x32xf32> -> vector<32x32xf32>
    %c1_232 = arith.constant 1 : index
    %c2_233 = arith.constant 2 : index
    %c0_234 = arith.constant 0 : index
    %c0_235 = arith.constant 0 : index
    %583 = vector.load %arg7[%c1_232, %c2_233, %c0_234, %c0_235] : memref<2x3x32x32xf32, #tpu.memory_space<vmem>>, vector<1x1x32x32xf32>
    %584 = vector.shape_cast %583 : vector<1x1x32x32xf32> to vector<32x32xf32>
    %585 = vector.shape_cast %582 : vector<32x32xf32> to vector<1x1x32x32xf32>
    tpu.vector_store %arg7[%c1_232, %c2_233, %c0_234, %c0_235], %585 {strides = array<i32>} : memref<2x3x32x32xf32, #tpu.memory_space<vmem>>, vector<1x1x32x32xf32>,
    return
  }
  func.func @transform_0(%arg0: i32) -> i32 {
    %c0_i32 = arith.constant 0 : i32
    %c0_i32_0 = arith.constant 0 : i32
    return %c0_i32 : i32
  }
  func.func @transform_1(%arg0: i32) -> (i32, i32, i32, i32) {
    %c0_i32 = arith.constant 0 : i32
    %c0_i32_0 = arith.constant 0 : i32
    %c0_i32_1 = arith.constant 0 : i32
    %c0_i32_2 = arith.constant 0 : i32
    return %arg0, %c0_i32, %c0_i32_0, %c0_i32_1 : i32, i32, i32, i32
  }
  func.func @transform_2(%arg0: i32) -> (i32, i32, i32) {
    %c0_i32 = arith.constant 0 : i32
    %c0_i32_0 = arith.constant 0 : i32
    %c0_i32_1 = arith.constant 0 : i32
    return %arg0, %c0_i32, %c0_i32_0 : i32, i32, i32
  }
  func.func @transform_3(%arg0: i32) -> (i32, i32, i32) {
    %c0_i32 = arith.constant 0 : i32
    %c0_i32_0 = arith.constant 0 : i32
    %c0_i32_1 = arith.constant 0 : i32
    return %arg0, %c0_i32, %c0_i32_0 : i32, i32, i32
  }
  func.func @transform_4(%arg0: i32) -> (i32, i32, i32) {
    %c0_i32 = arith.constant 0 : i32
    %c0_i32_0 = arith.constant 0 : i32
    %c0_i32_1 = arith.constant 0 : i32
    return %arg0, %c0_i32, %c0_i32_0 : i32, i32, i32
  }
  func.func @transform_5(%arg0: i32) -> (i32, i32, i32) {
    %c0_i32 = arith.constant 0 : i32
    %c0_i32_0 = arith.constant 0 : i32
    %c0_i32_1 = arith.constant 0 : i32
    return %arg0, %c0_i32, %c0_i32_0 : i32, i32, i32
  }
  func.func @transform_6(%arg0: i32) -> (i32, i32, i32, i32) {
    %c0_i32 = arith.constant 0 : i32
    %c0_i32_0 = arith.constant 0 : i32
    %c0_i32_1 = arith.constant 0 : i32
    %c0_i32_2 = arith.constant 0 : i32
    return %arg0, %c0_i32, %c0_i32_0, %c0_i32_1 : i32, i32, i32, i32
  }
}

</mosaic_0001>

<llo_original>
// kernel: augmentation_forward.4
$region0: #{augmentation_forward.4}
  #allocation0 [shape = 'u32[]', space=smem, size = 0x4, offset = 0x4, fixed_abs, tag = 'smem constant byte address 0x4 - core index']
  #allocation1 [shape = 'u32[144,128]{1,0:T(1,128)}', space=vmem, size = 0x12000, scoped, tag = 'internal scratch']
  %s0 = inlined_call_operand.vmem [shape: f32[16], index: 0, kind: input, shape index: {}]
  %s1 = inlined_call_operand.vmem [shape: bf16[2,3,32,32], index: 1, kind: input, shape index: {}]
  %s2 = inlined_call_operand.vmem [shape: bf16[2,32,32], index: 2, kind: input, shape index: {}]
  %s3 = inlined_call_operand.vmem [shape: bf16[2,32,32], index: 3, kind: input, shape index: {}]
  %s4 = inlined_call_operand.vmem [shape: bf16[2,32,32], index: 4, kind: input, shape index: {}]
  %s5 = inlined_call_operand.vmem [shape: bf16[2,32,32], index: 5, kind: input, shape index: {}]
  %s6 = inlined_call_operand.hbm [shape: f32[2,3,32,32], index: 6, kind: output, shape index: {}]
  %s7 = sld [smem:[#allocation0]]
  $region38: #{augmentation_forward.4} parent=0
    _
  %s9 = ssub.s32 1, %s7
  %s10 = scalar_select 0, %s9, %s7
  $region1: #{augmentation_forward.4} parent=0
    #allocation2 [shape = 'u8[512]{0}', space=smem, size = 0x200, scoped, tag = 'input window, operand 0, single buffered']
    #allocation3 [shape = 's32[1]{0}', space=sflag, size = 0x4, scoped, tag = 'scoped memory for augmentation_forward.4']
    #allocation4 [shape = 's32[1]{0}', space=sflag, size = 0x4, scoped, tag = 'scoped memory for augmentation_forward.4']
    #allocation5 [shape = 'u8[98304]{0}', space=vmem, size = 0x18000, scoped, tag = 'output window, operand 0, single buffered']
    %11 = vsyncpa [#allocation4], 0
    %12 = vsyncpa [#allocation3], 0
    // Predicated region
    $region2: #{augmentation_forward.4} parent=1 // pred_check
      _
    $region3: #{augmentation_forward.4} parent=1 // pred_check_branch
      %14 = sbr.rel (0) target = $region5
    $region4: #{augmentation_forward.4} parent=1 // pred_region
      %s16 = ssub.s32 16, 16
      %17 = vsyncadd [#allocation4], %s16
      %s19 = sshll.u32 %s0, 4
      %s20 = int_to_ptr.vmem [resolvable:$true] %s19
      %22 = dma.vmem_to_smem %s20, 16, [#allocation2], [#allocation4]
    $region5: #{augmentation_forward.4} parent=1 // pred_fallthru
      _
    // Predicated region
    $region6: #{augmentation_forward.4} parent=1 // pred_check
      _
    $region7: #{augmentation_forward.4} parent=1 // pred_check_branch
      %24 = sbr.rel (0) target = $region9
    $region8: #{augmentation_forward.4} parent=1 // pred_region
      _
    $region9: #{augmentation_forward.4} parent=1 // pred_fallthru
      _
    // Predicated region
    $region10: #{augmentation_forward.4} parent=1 // pred_check
      _
    $region11: #{augmentation_forward.4} parent=1 // pred_check_branch
      %26 = sbr.rel (0) target = $region13
    $region12: #{augmentation_forward.4} parent=1 // pred_region
      _
    $region13: #{augmentation_forward.4} parent=1 // pred_fallthru
      _
    // Predicated region
    $region14: #{augmentation_forward.4} parent=1 // pred_check
      _
    $region15: #{augmentation_forward.4} parent=1 // pred_check_branch
      %28 = sbr.rel (0) target = $region17
    $region16: #{augmentation_forward.4} parent=1 // pred_region
      _
    $region17: #{augmentation_forward.4} parent=1 // pred_fallthru
      _
    // Predicated region
    $region18: #{augmentation_forward.4} parent=1 // pred_check
      _
    $region19: #{augmentation_forward.4} parent=1 // pred_check_branch
      %30 = sbr.rel (0) target = $region21
    $region20: #{augmentation_forward.4} parent=1 // pred_region
      _
    $region21: #{augmentation_forward.4} parent=1 // pred_fallthru
      _
    // Predicated region
    $region22: #{augmentation_forward.4} parent=1 // pred_check
      _
    $region23: #{augmentation_forward.4} parent=1 // pred_check_branch
      %32 = sbr.rel (0) target = $region25
    $region24: #{augmentation_forward.4} parent=1 // pred_region
      _
    $region25: #{augmentation_forward.4} parent=1 // pred_fallthru
      _
    // Predicated region
    $region26: #{augmentation_forward.4} parent=1 // pred_check
      _
    $region27: #{augmentation_forward.4} parent=1 // pred_check_branch
      %34 = sbr.rel (0) target = $region29
    $region28: #{augmentation_forward.4} parent=1 // pred_region
      %35 = dma.done [#allocation4], 16
    $region29: #{augmentation_forward.4} parent=1 // pred_fallthru
      _
    %36 = sfence
    %s38 = smul.u32 0, 16
    %s39 = sld [smem:[#allocation2 + %s38]]
    %s40 = sadd.s32 %s38, 1
    %s41 = sld [smem:[#allocation2 + %s40]]
    %s42 = sadd.s32 %s38, 2
    %s43 = sld [smem:[#allocation2 + %s42]]
    %s44 = sadd.s32 %s38, 3
    %s45 = sld [smem:[#allocation2 + %s44]]
    %s46 = sadd.s32 %s38, 4
    %s47 = sld [smem:[#allocation2 + %s46]]
    %v48 = vld [vmem:[%s2] sm:$0xf]
    %v49 = vld [vmem:[%s2 + $0x4] sm:$0xf]
    %v50 = vld [vmem:[%s2 + $0x8] sm:$0xf]
    %v51 = vld [vmem:[%s2 + $0xc] sm:$0xf]
    %v52 = vld [vmem:[%s3] sm:$0xf]
    %v53 = vld [vmem:[%s3 + $0x4] sm:$0xf]
    %v54 = vld [vmem:[%s3 + $0x8] sm:$0xf]
    %v55 = vld [vmem:[%s3 + $0xc] sm:$0xf]
    %v56 = vld [vmem:[%s4] sm:$0xf]
    %v57 = vld [vmem:[%s4 + $0x4] sm:$0xf]
    %v58 = vld [vmem:[%s4 + $0x8] sm:$0xf]
    %v59 = vld [vmem:[%s4 + $0xc] sm:$0xf]
    %v60 = vld [vmem:[%s5] sm:$0xf]
    %v61 = vld [vmem:[%s5 + $0x4] sm:$0xf]
    %v62 = vld [vmem:[%s5 + $0x8] sm:$0xf]
    %v63 = vld [vmem:[%s5 + $0xc] sm:$0xf]
    %v64 = vld [vmem:[%s1] sm:$0xf]
    %v65 = vld [vmem:[%s1 + $0x4] sm:$0xf]
    %v66 = vld [vmem:[%s1 + $0x8] sm:$0xf]
    %v67 = vld [vmem:[%s1 + $0xc] sm:$0xf]
    %s68 = scalar_lea.vmem %s1, 16
    %v69 = vld [vmem:[%s68] sm:$0xf]
    %v70 = vld [vmem:[%s68 + $0x4] sm:$0xf]
    %v71 = vld [vmem:[%s68 + $0x8] sm:$0xf]
    %v72 = vld [vmem:[%s68 + $0xc] sm:$0xf]
    %s73 = scalar_lea.vmem %s1, 32
    %v74 = vld [vmem:[%s73] sm:$0xf]
    %v75 = vld [vmem:[%s73 + $0x4] sm:$0xf]
    %v76 = vld [vmem:[%s73 + $0x8] sm:$0xf]
    %v77 = vld [vmem:[%s73 + $0xc] sm:$0xf]
    %v82 = vunpack.c.l.b16 %v64
    %v83 = vunpack.c.l.b16 %v65
    %v84 = vunpack.c.l.b16 %v66
    %v85 = vunpack.c.l.b16 %v67
    %v86 = vpack.c.b16 %v83, %v82
    %v87 = vpack.c.b16 %v85, %v84
    %v92 = vunpack.c.l.b16 %v69
    %v93 = vunpack.c.l.b16 %v70
    %v94 = vunpack.c.l.b16 %v71
    %v95 = vunpack.c.l.b16 %v72
    %v96 = vpack.c.b16 %v93, %v92
    %v97 = vpack.c.b16 %v95, %v94
    %v102 = vunpack.c.l.b16 %v74
    %v103 = vunpack.c.l.b16 %v75
    %v104 = vunpack.c.l.b16 %v76
    %v105 = vunpack.c.l.b16 %v77
    %v106 = vpack.c.b16 %v103, %v102
    %v107 = vpack.c.b16 %v105, %v104
    %v112 = vunpack.c.l.b16 %v52
    %v113 = vunpack.c.l.b16 %v53
    %v114 = vunpack.c.l.b16 %v54
    %v115 = vunpack.c.l.b16 %v55
    %v116 = vpack.c.b16 %v113, %v112
    %v117 = vpack.c.b16 %v115, %v114
    %vm120 = vcmask 261120
    %v122 = vsel %vm120, %v86, 0
    %v125 = vsel %vm120, %v87, 0
    %v128 = vsel %vm120, %v96, 0
    %v131 = vsel %vm120, %v97, 0
    %v134 = vsel %vm120, %v106, 0
    %v137 = vsel %vm120, %v107, 0
    %139 = vmatprep.subr.bf16.mxu0 0
    %140 = vmatpush1.bf16.msra.mxu0 %v116
    %141 = vmatprep.subr.bf16.mxu0 0
    %142 = vmatpush1.bf16.msra.mxu0 %v117
    %143 = vmatprep.subr.bf16.mxu0 0
    %144 = vmatpush1.bf16.msra.mxu0 0
    %145 = vmatprep.subr.bf16.mxu0 0
    %146 = vmatpush1.bf16.msra.mxu0 0
    %147 = vmatprep.subr.bf16.mxu0 0
    %148 = vmatpush1.bf16.msra.mxu0 0
    %149 = vmatprep.subr.bf16.mxu0 0
    %150 = vmatpush1.bf16.msra.mxu0 0
    %151 = vmatprep.subr.bf16.mxu0 0
    %152 = vmatpush1.bf16.msra.mxu0 0
    %153 = vmatprep.subr.bf16.mxu0 0
    %154 = vmatpush1.bf16.msra.mxu0 0
    %155 = vmatprep.subr.bf16.mxu0 0
    %156 = vmatpush1.bf16.msra.mxu0 0
    %157 = vmatprep.subr.bf16.mxu0 0
    %158 = vmatpush1.bf16.msra.mxu0 0
    %159 = vmatprep.subr.bf16.mxu0 0
    %160 = vmatpush1.bf16.msra.mxu0 0
    %161 = vmatprep.subr.bf16.mxu0 0
    %162 = vmatpush1.bf16.msra.mxu0 0
    %163 = vmatprep.subr.bf16.mxu0 0
    %164 = vmatpush1.bf16.msra.mxu0 0
    %165 = vmatprep.subr.bf16.mxu0 0
    %166 = vmatpush1.bf16.msra.mxu0 0
    %167 = vmatprep.subr.bf16.mxu0 0
    %168 = vmatpush1.bf16.msra.mxu0 0
    %169 = vmatprep.subr.bf16.mxu0 0
    %170 = vmatpush1.bf16.msra.mxu0 0
    %171 = vmatprep.mubr.bf16.mxu0 0
    %172 = vmatmul.mubr.bf16.gmra.mrb[0].mxu0 %v122
    %v173 = vpop.f32.mrb[0].mxu0
    %v174 = vadd.f32 0.0, %v173
    %v175 = vpop.f32.mrb[0].mxu0
    %v176 = vpop.f32.mrb[0].mxu0
    %v177 = vadd.f32 0.0, %v176
    %v178 = vpop.f32.mrb[0].mxu0
    %179 = vmatprep.mubr.bf16.mxu0 0
    %180 = vmatmul.mubr.bf16.gmra.mrb[0].mxu0 %v125
    %v181 = vpop.f32.mrb[0].mxu0
    %v182 = vadd.f32 0.0, %v181
    %v183 = vpop.f32.mrb[0].mxu0
    %v184 = vpop.f32.mrb[0].mxu0
    %v185 = vadd.f32 0.0, %v184
    %v186 = vpop.f32.mrb[0].mxu0
    %187 = vmatprep.mubr.bf16.mxu0 0
    %188 = vmatmul.mubr.bf16.gmra.mrb[0].mxu0 %v128
    %v189 = vpop.f32.mrb[0].mxu0
    %v190 = vadd.f32 0.0, %v189
    %v191 = vpop.f32.mrb[0].mxu0
    %v192 = vpop.f32.mrb[0].mxu0
    %v193 = vadd.f32 0.0, %v192
    %v194 = vpop.f32.mrb[0].mxu0
    %195 = vmatprep.mubr.bf16.mxu0 0
    %196 = vmatmul.mubr.bf16.gmra.mrb[0].mxu0 %v131
    %v197 = vpop.f32.mrb[0].mxu0
    %v198 = vadd.f32 0.0, %v197
    %v199 = vpop.f32.mrb[0].mxu0
    %v200 = vpop.f32.mrb[0].mxu0
    %v201 = vadd.f32 0.0, %v200
    %v202 = vpop.f32.mrb[0].mxu0
    %203 = vmatprep.mubr.bf16.mxu0 0
    %204 = vmatmul.mubr.bf16.gmra.mrb[0].mxu0 %v134
    %v205 = vpop.f32.mrb[0].mxu0
    %v206 = vadd.f32 0.0, %v205
    %v207 = vpop.f32.mrb[0].mxu0
    %v208 = vpop.f32.mrb[0].mxu0
    %v209 = vadd.f32 0.0, %v208
    %v210 = vpop.f32.mrb[0].mxu0
    %211 = vmatprep.mubr.bf16.mxu0 0
    %212 = vmatmul.mubr.bf16.gmra.mrb[0].mxu0 %v137
    %v213 = vpop.f32.mrb[0].mxu0
    %v214 = vadd.f32 0.0, %v213
    %v215 = vpop.f32.mrb[0].mxu0
    %v216 = vpop.f32.mrb[0].mxu0
    %v217 = vadd.f32 0.0, %v216
    %v218 = vpop.f32.mrb[0].mxu0
    %219 = vdwg.mxu0
    %v220 = vpack.c.bf16 %v177, %v174
    %v221 = vpack.c.bf16 %v185, %v182
    %v226 = vunpack.c.l.b16 %v48
    %v227 = vunpack.c.l.b16 %v49
    %v228 = vunpack.c.l.b16 %v50
    %v229 = vunpack.c.l.b16 %v51
    %v230 = vpack.c.b16 %v227, %v226
    %v231 = vpack.c.b16 %v229, %v228
    %v233 = vsel %vm120, %v230, 0
    %v236 = vsel %vm120, %v231, 0
    %238 = vmatprep.subr.bf16.mxu0 0
    %239 = vmatpush1.bf16.msra.mxu0 %v220
    %240 = vmatprep.subr.bf16.mxu0 0
    %241 = vmatpush1.bf16.msra.mxu0 %v221
    %242 = vmatprep.subr.bf16.mxu0 0
    %243 = vmatpush1.bf16.msra.mxu0 0
    %244 = vmatprep.subr.bf16.mxu0 0
    %245 = vmatpush1.bf16.msra.mxu0 0
    %246 = vmatprep.subr.bf16.mxu0 0
    %247 = vmatpush1.bf16.msra.mxu0 0
    %248 = vmatprep.subr.bf16.mxu0 0
    %249 = vmatpush1.bf16.msra.mxu0 0
    %250 = vmatprep.subr.bf16.mxu0 0
    %251 = vmatpush1.bf16.msra.mxu0 0
    %252 = vmatprep.subr.bf16.mxu0 0
    %253 = vmatpush1.bf16.msra.mxu0 0
    %254 = vmatprep.subr.bf16.mxu0 0
    %255 = vmatpush1.bf16.msra.mxu0 0
    %256 = vmatprep.subr.bf16.mxu0 0
    %257 = vmatpush1.bf16.msra.mxu0 0
    %258 = vmatprep.subr.bf16.mxu0 0
    %259 = vmatpush1.bf16.msra.mxu0 0
    %260 = vmatprep.subr.bf16.mxu0 0
    %261 = vmatpush1.bf16.msra.mxu0 0
    %262 = vmatprep.subr.bf16.mxu0 0
    %263 = vmatpush1.bf16.msra.mxu0 0
    %264 = vmatprep.subr.bf16.mxu0 0
    %265 = vmatpush1.bf16.msra.mxu0 0
    %266 = vmatprep.subr.bf16.mxu0 0
    %267 = vmatpush1.bf16.msra.mxu0 0
    %268 = vmatprep.subr.bf16.mxu0 0
    %269 = vmatpush1.bf16.msra.mxu0 0
    %270 = vmatprep.mubr.bf16.mxu0 0
    %271 = vmatmul.mubr.bf16.gmra.mrb[0].mxu0 %v233
    %v272 = vpop.f32.mrb[0].mxu0
    %v273 = vadd.f32 0.0, %v272
    %v274 = vpop.f32.mrb[0].mxu0
    %v275 = vpop.f32.mrb[0].mxu0
    %v276 = vadd.f32 0.0, %v275
    %v277 = vpop.f32.mrb[0].mxu0
    %278 = vmatprep.mubr.bf16.mxu0 0
    %279 = vmatmul.mubr.bf16.gmra.mrb[0].mxu0 %v236
    %v280 = vpop.f32.mrb[0].mxu0
    %v281 = vadd.f32 0.0, %v280
    %v282 = vpop.f32.mrb[0].mxu0
    %v283 = vpop.f32.mrb[0].mxu0
    %v284 = vadd.f32 0.0, %v283
    %v285 = vpop.f32.mrb[0].mxu0
    %286 = vdwg.mxu0
    %v287 = vpack.c.bf16 %v193, %v190
    %v288 = vpack.c.bf16 %v201, %v198
    %289 = vmatprep.subr.bf16.mxu0 0
    %290 = vmatpush1.bf16.msra.mxu0 %v287
    %291 = vmatprep.subr.bf16.mxu0 0
    %292 = vmatpush1.bf16.msra.mxu0 %v288
    %293 = vmatprep.subr.bf16.mxu0 0
    %294 = vmatpush1.bf16.msra.mxu0 0
    %295 = vmatprep.subr.bf16.mxu0 0
    %296 = vmatpush1.bf16.msra.mxu0 0
    %297 = vmatprep.subr.bf16.mxu0 0
    %298 = vmatpush1.bf16.msra.mxu0 0
    %299 = vmatprep.subr.bf16.mxu0 0
    %300 = vmatpush1.bf16.msra.mxu0 0
    %301 = vmatprep.subr.bf16.mxu0 0
    %302 = vmatpush1.bf16.msra.mxu0 0
    %303 = vmatprep.subr.bf16.mxu0 0
    %304 = vmatpush1.bf16.msra.mxu0 0
    %305 = vmatprep.subr.bf16.mxu0 0
    %306 = vmatpush1.bf16.msra.mxu0 0
    %307 = vmatprep.subr.bf16.mxu0 0
    %308 = vmatpush1.bf16.msra.mxu0 0
    %309 = vmatprep.subr.bf16.mxu0 0
    %310 = vmatpush1.bf16.msra.mxu0 0
    %311 = vmatprep.subr.bf16.mxu0 0
    %312 = vmatpush1.bf16.msra.mxu0 0
    %313 = vmatprep.subr.bf16.mxu0 0
    %314 = vmatpush1.bf16.msra.mxu0 0
    %315 = vmatprep.subr.bf16.mxu0 0
    %316 = vmatpush1.bf16.msra.mxu0 0
    %317 = vmatprep.subr.bf16.mxu0 0
    %318 = vmatpush1.bf16.msra.mxu0 0
    %319 = vmatprep.subr.bf16.mxu0 0
    %320 = vmatpush1.bf16.msra.mxu0 0
    %321 = vmatprep.mubr.bf16.mxu0 0
    %322 = vmatmul.mubr.bf16.gmra.mrb[0].mxu0 %v233
    %v323 = vpop.f32.mrb[0].mxu0
    %v324 = vadd.f32 0.0, %v323
    %v325 = vpop.f32.mrb[0].mxu0
    %v326 = vpop.f32.mrb[0].mxu0
    %v327 = vadd.f32 0.0, %v326
    %v328 = vpop.f32.mrb[0].mxu0
    %329 = vmatprep.mubr.bf16.mxu0 0
    %330 = vmatmul.mubr.bf16.gmra.mrb[0].mxu0 %v236
    %v331 = vpop.f32.mrb[0].mxu0
    %v332 = vadd.f32 0.0, %v331
    %v333 = vpop.f32.mrb[0].mxu0
    %v334 = vpop.f32.mrb[0].mxu0
    %v335 = vadd.f32 0.0, %v334
    %v336 = vpop.f32.mrb[0].mxu0
    %337 = vdwg.mxu0
    %v338 = vpack.c.bf16 %v209, %v206
    %v339 = vpack.c.bf16 %v217, %v214
    %340 = vmatprep.subr.bf16.mxu0 0
    %341 = vmatpush1.bf16.msra.mxu0 %v338
    %342 = vmatprep.subr.bf16.mxu0 0
    %343 = vmatpush1.bf16.msra.mxu0 %v339
    %344 = vmatprep.subr.bf16.mxu0 0
    %345 = vmatpush1.bf16.msra.mxu0 0
    %346 = vmatprep.subr.bf16.mxu0 0
    %347 = vmatpush1.bf16.msra.mxu0 0
    %348 = vmatprep.subr.bf16.mxu0 0
    %349 = vmatpush1.bf16.msra.mxu0 0
    %350 = vmatprep.subr.bf16.mxu0 0
    %351 = vmatpush1.bf16.msra.mxu0 0
    %352 = vmatprep.subr.bf16.mxu0 0
    %353 = vmatpush1.bf16.msra.mxu0 0
    %354 = vmatprep.subr.bf16.mxu0 0
    %355 = vmatpush1.bf16.msra.mxu0 0
    %356 = vmatprep.subr.bf16.mxu0 0
    %357 = vmatpush1.bf16.msra.mxu0 0
    %358 = vmatprep.subr.bf16.mxu0 0
    %359 = vmatpush1.bf16.msra.mxu0 0
    %360 = vmatprep.subr.bf16.mxu0 0
    %361 = vmatpush1.bf16.msra.mxu0 0
    %362 = vmatprep.subr.bf16.mxu0 0
    %363 = vmatpush1.bf16.msra.mxu0 0
    %364 = vmatprep.subr.bf16.mxu0 0
    %365 = vmatpush1.bf16.msra.mxu0 0
    %366 = vmatprep.subr.bf16.mxu0 0
    %367 = vmatpush1.bf16.msra.mxu0 0
    %368 = vmatprep.subr.bf16.mxu0 0
    %369 = vmatpush1.bf16.msra.mxu0 0
    %370 = vmatprep.subr.bf16.mxu0 0
    %371 = vmatpush1.bf16.msra.mxu0 0
    %372 = vmatprep.mubr.bf16.mxu0 0
    %373 = vmatmul.mubr.bf16.gmra.mrb[0].mxu0 %v233
    %v374 = vpop.f32.mrb[0].mxu0
    %v375 = vadd.f32 0.0, %v374
    %v376 = vpop.f32.mrb[0].mxu0
    %v377 = vpop.f32.mrb[0].mxu0
    %v378 = vadd.f32 0.0, %v377
    %v379 = vpop.f32.mrb[0].mxu0
    %380 = vmatprep.mubr.bf16.mxu0 0
    %381 = vmatmul.mubr.bf16.gmra.mrb[0].mxu0 %v236
    %v382 = vpop.f32.mrb[0].mxu0
    %v383 = vadd.f32 0.0, %v382
    %v384 = vpop.f32.mrb[0].mxu0
    %v385 = vpop.f32.mrb[0].mxu0
    %v386 = vadd.f32 0.0, %v385
    %v387 = vpop.f32.mrb[0].mxu0
    %388 = vdwg.mxu0
    %v389 = vstv %s39
    %v390 = vmul.f32 %v273, %v389
    %v391 = vmul.f32 %v276, %v389
    %v392 = vmul.f32 %v281, %v389
    %v393 = vmul.f32 %v284, %v389
    %v394 = vmax.f32 %v390, 0.0
    %v395 = vmax.f32 %v391, 0.0
    %v396 = vmax.f32 %v392, 0.0
    %v397 = vmax.f32 %v393, 0.0
    %v398 = vmin.f32 %v394, 1.0
    %v399 = vmin.f32 %v395, 1.0
    %v400 = vmin.f32 %v396, 1.0
    %v401 = vmin.f32 %v397, 1.0
    %v402 = vmul.f32 %v324, %v389
    %v403 = vmul.f32 %v327, %v389
    %v404 = vmul.f32 %v332, %v389
    %v405 = vmul.f32 %v335, %v389
    %v406 = vmax.f32 %v402, 0.0
    %v407 = vmax.f32 %v403, 0.0
    %v408 = vmax.f32 %v404, 0.0
    %v409 = vmax.f32 %v405, 0.0
    %v410 = vmin.f32 %v406, 1.0
    %v411 = vmin.f32 %v407, 1.0
    %v412 = vmin.f32 %v408, 1.0
    %v413 = vmin.f32 %v409, 1.0
    %v414 = vmul.f32 %v375, %v389
    %v415 = vmul.f32 %v378, %v389
    %v416 = vmul.f32 %v383, %v389
    %v417 = vmul.f32 %v386, %v389
    %v418 = vmax.f32 %v414, 0.0
    %v419 = vmax.f32 %v415, 0.0
    %v420 = vmax.f32 %v416, 0.0
    %v421 = vmax.f32 %v417, 0.0
    %v422 = vmin.f32 %v418, 1.0
    %v423 = vmin.f32 %v419, 1.0
    %v424 = vmin.f32 %v420, 1.0
    %v425 = vmin.f32 %v421, 1.0
    %v426 = vmul.f32 %v398, 0.299
    %v427 = vmul.f32 %v399, 0.299
    %v428 = vmul.f32 %v400, 0.299
    %v429 = vmul.f32 %v401, 0.299
    %v430 = vmul.f32 %v410, 0.587
    %v431 = vmul.f32 %v411, 0.587
    %v432 = vmul.f32 %v412, 0.587
    %v433 = vmul.f32 %v413, 0.587
    %v434 = vadd.f32 %v426, %v430
    %v435 = vadd.f32 %v427, %v431
    %v436 = vadd.f32 %v428, %v432
    %v437 = vadd.f32 %v429, %v433
    %v438 = vmul.f32 %v422, 0.114
    %v439 = vmul.f32 %v423, 0.114
    %v440 = vmul.f32 %v424, 0.114
    %v441 = vmul.f32 %v425, 0.114
    %v442 = vadd.f32 %v434, %v438
    %v443 = vadd.f32 %v435, %v439
    %v444 = vadd.f32 %v436, %v440
    %v445 = vadd.f32 %v437, %v441
    %s446 = ssub.f32 1.0, %s41
    %v447 = vsel %vm120, %v442, 0.0
    %v448 = vsel %vm120, %v443, 0.0
    %v449 = vadd.f32 %v447, %v448
    %v450 = vsel %vm120, %v444, 0.0
    %v451 = vadd.f32 %v449, %v450
    %v452 = vsel %vm120, %v445, 0.0
    %v453 = vadd.f32 %v451, %v452
    %454 = vadd.xlane.f32.xlu0 %v453
    %v455 = vpop.xlane.xlu0 %454
    %v456 = vrot.slane %v455, 4
    %v457 = vadd.f32 %v455, %v456
    %v458 = vrot.slane %v457, 2
    %v459 = vadd.f32 %v457, %v458
    %v460 = vrot.slane %v459, 1
    %v461 = vadd.f32 %v459, %v460
    %s462 = vtos %v461
    %v463 = vrcp.pop 1024.0
    %s464 = vtos %v463
    %s465 = smul.f32 %s462, %s464
    %s466 = smul.f32 %s446, %s465
    %v467 = vstv %s41
    %v468 = vmul.f32 %v467, %v398
    %v469 = vmul.f32 %v467, %v399
    %v470 = vmul.f32 %v467, %v400
    %v471 = vmul.f32 %v467, %v401
    %v472 = vstv %s466
    %v473 = vadd.f32 %v468, %v472
    %v474 = vadd.f32 %v469, %v472
    %v475 = vadd.f32 %v470, %v472
    %v476 = vadd.f32 %v471, %v472
    %v477 = vmax.f32 %v473, 0.0
    %v478 = vmax.f32 %v474, 0.0
    %v479 = vmax.f32 %v475, 0.0
    %v480 = vmax.f32 %v476, 0.0
    %v481 = vmin.f32 %v477, 1.0
    %v482 = vmin.f32 %v478, 1.0
    %v483 = vmin.f32 %v479, 1.0
    %v484 = vmin.f32 %v480, 1.0
    %v485 = vmul.f32 %v467, %v410
    %v486 = vmul.f32 %v467, %v411
    %v487 = vmul.f32 %v467, %v412
    %v488 = vmul.f32 %v467, %v413
    %v489 = vadd.f32 %v485, %v472
    %v490 = vadd.f32 %v486, %v472
    %v491 = vadd.f32 %v487, %v472
    %v492 = vadd.f32 %v488, %v472
    %v493 = vmax.f32 %v489, 0.0
    %v494 = vmax.f32 %v490, 0.0
    %v495 = vmax.f32 %v491, 0.0
    %v496 = vmax.f32 %v492, 0.0
    %v497 = vmin.f32 %v493, 1.0
    %v498 = vmin.f32 %v494, 1.0
    %v499 = vmin.f32 %v495, 1.0
    %v500 = vmin.f32 %v496, 1.0
    %v501 = vmul.f32 %v467, %v422
    %v502 = vmul.f32 %v467, %v423
    %v503 = vmul.f32 %v467, %v424
    %v504 = vmul.f32 %v467, %v425
    %v505 = vadd.f32 %v501, %v472
    %v506 = vadd.f32 %v502, %v472
    %v507 = vadd.f32 %v503, %v472
    %v508 = vadd.f32 %v504, %v472
    %v509 = vmax.f32 %v505, 0.0
    %v510 = vmax.f32 %v506, 0.0
    %v511 = vmax.f32 %v507, 0.0
    %v512 = vmax.f32 %v508, 0.0
    %v513 = vmin.f32 %v509, 1.0
    %v514 = vmin.f32 %v510, 1.0
    %v515 = vmin.f32 %v511, 1.0
    %v516 = vmin.f32 %v512, 1.0
    %v517 = vmul.f32 %v481, 0.299
    %v518 = vmul.f32 %v482, 0.299
    %v519 = vmul.f32 %v483, 0.299
    %v520 = vmul.f32 %v484, 0.299
    %v521 = vmul.f32 %v497, 0.587
    %v522 = vmul.f32 %v498, 0.587
    %v523 = vmul.f32 %v499, 0.587
    %v524 = vmul.f32 %v500, 0.587
    %v525 = vadd.f32 %v517, %v521
    %v526 = vadd.f32 %v518, %v522
    %v527 = vadd.f32 %v519, %v523
    %v528 = vadd.f32 %v520, %v524
    %v529 = vmul.f32 %v513, 0.114
    %v530 = vmul.f32 %v514, 0.114
    %v531 = vmul.f32 %v515, 0.114
    %v532 = vmul.f32 %v516, 0.114
    %v533 = vadd.f32 %v525, %v529
    %v534 = vadd.f32 %v526, %v530
    %v535 = vadd.f32 %v527, %v531
    %v536 = vadd.f32 %v528, %v532
    %v537 = vstv %s43
    %v538 = vmul.f32 %v537, %v481
    %v539 = vmul.f32 %v537, %v482
    %v540 = vmul.f32 %v537, %v483
    %v541 = vmul.f32 %v537, %v484
    %s542 = ssub.f32 1.0, %s43
    %v543 = vstv %s542
    %v544 = vmul.f32 %v543, %v533
    %v545 = vmul.f32 %v543, %v534
    %v546 = vmul.f32 %v543, %v535
    %v547 = vmul.f32 %v543, %v536
    %v548 = vadd.f32 %v538, %v544
    %v549 = vadd.f32 %v539, %v545
    %v550 = vadd.f32 %v540, %v546
    %v551 = vadd.f32 %v541, %v547
    %v552 = vmax.f32 %v548, 0.0
    %v553 = vmax.f32 %v549, 0.0
    %v554 = vmax.f32 %v550, 0.0
    %v555 = vmax.f32 %v551, 0.0
    %v556 = vmin.f32 %v552, 1.0
    %v557 = vmin.f32 %v553, 1.0
    %v558 = vmin.f32 %v554, 1.0
    %v559 = vmin.f32 %v555, 1.0
    %v560 = vmul.f32 %v537, %v497
    %v561 = vmul.f32 %v537, %v498
    %v562 = vmul.f32 %v537, %v499
    %v563 = vmul.f32 %v537, %v500
    %v564 = vadd.f32 %v560, %v544
    %v565 = vadd.f32 %v561, %v545
    %v566 = vadd.f32 %v562, %v546
    %v567 = vadd.f32 %v563, %v547
    %v568 = vmax.f32 %v564, 0.0
    %v569 = vmax.f32 %v565, 0.0
    %v570 = vmax.f32 %v566, 0.0
    %v571 = vmax.f32 %v567, 0.0
    %v572 = vmin.f32 %v568, 1.0
    %v573 = vmin.f32 %v569, 1.0
    %v574 = vmin.f32 %v570, 1.0
    %v575 = vmin.f32 %v571, 1.0
    %v576 = vmul.f32 %v537, %v513
    %v577 = vmul.f32 %v537, %v514
    %v578 = vmul.f32 %v537, %v515
    %v579 = vmul.f32 %v537, %v516
    %v580 = vadd.f32 %v576, %v544
    %v581 = vadd.f32 %v577, %v545
    %v582 = vadd.f32 %v578, %v546
    %v583 = vadd.f32 %v579, %v547
    %v584 = vmax.f32 %v580, 0.0
    %v585 = vmax.f32 %v581, 0.0
    %v586 = vmax.f32 %v582, 0.0
    %v587 = vmax.f32 %v583, 0.0
    %v588 = vmin.f32 %v584, 1.0
    %v589 = vmin.f32 %v585, 1.0
    %v590 = vmin.f32 %v586, 1.0
    %v591 = vmin.f32 %v587, 1.0
    %v592 = vmax.f32 %v572, %v588
    %v593 = vmax.f32 %v573, %v589
    %v594 = vmax.f32 %v574, %v590
    %v595 = vmax.f32 %v575, %v591
    %v596 = vmax.f32 %v556, %v592
    %v597 = vmax.f32 %v557, %v593
    %v598 = vmax.f32 %v558, %v594
    %v599 = vmax.f32 %v559, %v595
    %v600 = vmin.f32 %v572, %v588
    %v601 = vmin.f32 %v573, %v589
    %v602 = vmin.f32 %v574, %v590
    %v603 = vmin.f32 %v575, %v591
    %v604 = vmin.f32 %v556, %v600
    %v605 = vmin.f32 %v557, %v601
    %v606 = vmin.f32 %v558, %v602
    %v607 = vmin.f32 %v559, %v603
    %v608 = vsub.f32 %v596, %v604
    %v609 = vsub.f32 %v597, %v605
    %v610 = vsub.f32 %v598, %v606
    %v611 = vsub.f32 %v599, %v607
    %vm612 = vcmp.gt.f32.partialorder %v608, 0.0
    %vm613 = vcmp.gt.f32.partialorder %v609, 0.0
    %vm614 = vcmp.gt.f32.partialorder %v610, 0.0
    %vm615 = vcmp.gt.f32.partialorder %v611, 0.0
    %v616 = vsel %vm612, %v608, 1.0
    %v617 = vsel %vm613, %v609, 1.0
    %v618 = vsel %vm614, %v610, 1.0
    %v619 = vsel %vm615, %v611, 1.0
    %v620 = vrcp.pop %v616
    %v621 = vrcp.pop %v617
    %v622 = vrcp.pop %v618
    %v623 = vrcp.pop %v619
    %vm624 = vcmp.gt.f32.partialorder %v596, 0.0
    %vm625 = vcmp.gt.f32.partialorder %v597, 0.0
    %vm626 = vcmp.gt.f32.partialorder %v598, 0.0
    %vm627 = vcmp.gt.f32.partialorder %v599, 0.0
    %v628 = vsel %vm624, %v596, 1.0
    %v629 = vsel %vm625, %v597, 1.0
    %v630 = vsel %vm626, %v598, 1.0
    %v631 = vsel %vm627, %v599, 1.0
    %v632 = vrcp.pop %v628
    %v633 = vrcp.pop %v629
    %v634 = vrcp.pop %v630
    %v635 = vrcp.pop %v631
    %v636 = vmul.f32 %v608, %v632
    %v637 = vmul.f32 %v609, %v633
    %v638 = vmul.f32 %v610, %v634
    %v639 = vmul.f32 %v611, %v635
    %v640 = vsel %vm624, %v636, 0.0
    %v641 = vsel %vm625, %v637, 0.0
    %v642 = vsel %vm626, %v638, 0.0
    %v643 = vsel %vm627, %v639, 0.0
    %v644 = vsub.f32 %v572, %v588
    %v645 = vsub.f32 %v573, %v589
    %v646 = vsub.f32 %v574, %v590
    %v647 = vsub.f32 %v575, %v591
    %v648 = vmul.f32 %v644, %v620
    %v649 = vmul.f32 %v645, %v621
    %v650 = vmul.f32 %v646, %v622
    %v651 = vmul.f32 %v647, %v623
    %v652 = vsub.f32 %v588, %v556
    %v653 = vsub.f32 %v589, %v557
    %v654 = vsub.f32 %v590, %v558
    %v655 = vsub.f32 %v591, %v559
    %v656 = vmul.f32 %v652, %v620
    %v657 = vmul.f32 %v653, %v621
    %v658 = vmul.f32 %v654, %v622
    %v659 = vmul.f32 %v655, %v623
    %v660 = vadd.f32 %v656, 2.0
    %v661 = vadd.f32 %v657, 2.0
    %v662 = vadd.f32 %v658, 2.0
    %v663 = vadd.f32 %v659, 2.0
    %v664 = vsub.f32 %v556, %v572
    %v665 = vsub.f32 %v557, %v573
    %v666 = vsub.f32 %v558, %v574
    %v667 = vsub.f32 %v559, %v575
    %v668 = vmul.f32 %v664, %v620
    %v669 = vmul.f32 %v665, %v621
    %v670 = vmul.f32 %v666, %v622
    %v671 = vmul.f32 %v667, %v623
    %v672 = vadd.f32 %v668, 4.0
    %v673 = vadd.f32 %v669, 4.0
    %v674 = vadd.f32 %v670, 4.0
    %v675 = vadd.f32 %v671, 4.0
    %vm676 = vcmp.eq.f32.partialorder %v596, %v556
    %vm677 = vcmp.eq.f32.partialorder %v597, %v557
    %vm678 = vcmp.eq.f32.partialorder %v598, %v558
    %vm679 = vcmp.eq.f32.partialorder %v599, %v559
    %vm680 = vcmp.eq.f32.partialorder %v596, %v572
    %vm681 = vcmp.eq.f32.partialorder %v597, %v573
    %vm682 = vcmp.eq.f32.partialorder %v598, %v574
    %vm683 = vcmp.eq.f32.partialorder %v599, %v575
    %v684 = vsel %vm680, %v660, %v672
    %v685 = vsel %vm681, %v661, %v673
    %v686 = vsel %vm682, %v662, %v674
    %v687 = vsel %vm683, %v663, %v675
    %v688 = vsel %vm676, %v648, %v684
    %v689 = vsel %vm677, %v649, %v685
    %v690 = vsel %vm678, %v650, %v686
    %v691 = vsel %vm679, %v651, %v687
    %v692 = vmul.f32 %v688, 0.16666667
    %v693 = vmul.f32 %v689, 0.16666667
    %v694 = vmul.f32 %v690, 0.16666667
    %v695 = vmul.f32 %v691, 0.16666667
    %v696 = vfloor.f32 %v692
    %v697 = vfloor.f32 %v693
    %v698 = vfloor.f32 %v694
    %v699 = vfloor.f32 %v695
    %v700 = vmul.f32 %v696, 6.0
    %v701 = vmul.f32 %v697, 6.0
    %v702 = vmul.f32 %v698, 6.0
    %v703 = vmul.f32 %v699, 6.0
    %v704 = vsub.f32 %v688, %v700
    %v705 = vsub.f32 %v689, %v701
    %v706 = vsub.f32 %v690, %v702
    %v707 = vsub.f32 %v691, %v703
    %v708 = vmul.f32 %v704, 0.16666667
    %v709 = vmul.f32 %v705, 0.16666667
    %v710 = vmul.f32 %v706, 0.16666667
    %v711 = vmul.f32 %v707, 0.16666667
    %v712 = vsel %vm612, %v708, 0.0
    %v713 = vsel %vm613, %v709, 0.0
    %v714 = vsel %vm614, %v710, 0.0
    %v715 = vsel %vm615, %v711, 0.0
    %v716 = vstv %s45
    %v717 = vadd.f32 %v712, %v716
    %v718 = vadd.f32 %v713, %v716
    %v719 = vadd.f32 %v714, %v716
    %v720 = vadd.f32 %v715, %v716
    %v721 = vfloor.f32 %v717
    %v722 = vfloor.f32 %v718
    %v723 = vfloor.f32 %v719
    %v724 = vfloor.f32 %v720
    %v725 = vsub.f32 %v717, %v721
    %v726 = vsub.f32 %v718, %v722
    %v727 = vsub.f32 %v719, %v723
    %v728 = vsub.f32 %v720, %v724
    %v729 = vmul.f32 %v725, 6.0
    %v730 = vmul.f32 %v726, 6.0
    %v731 = vmul.f32 %v727, 6.0
    %v732 = vmul.f32 %v728, 6.0
    %v733 = vfloor.f32 %v729
    %v734 = vfloor.f32 %v730
    %v735 = vfloor.f32 %v731
    %v736 = vfloor.f32 %v732
    %v737 = vsub.f32 %v729, %v733
    %v738 = vsub.f32 %v730, %v734
    %v739 = vsub.f32 %v731, %v735
    %v740 = vsub.f32 %v732, %v736
    %v741 = vsub.f32 1.0, %v640
    %v742 = vsub.f32 1.0, %v641
    %v743 = vsub.f32 1.0, %v642
    %v744 = vsub.f32 1.0, %v643
    %v745 = vmul.f32 %v596, %v741
    %v746 = vmul.f32 %v597, %v742
    %v747 = vmul.f32 %v598, %v743
    %v748 = vmul.f32 %v599, %v744
    %v749 = vmul.f32 %v640, %v737
    %v750 = vmul.f32 %v641, %v738
    %v751 = vmul.f32 %v642, %v739
    %v752 = vmul.f32 %v643, %v740
    %v753 = vsub.f32 1.0, %v749
    %v754 = vsub.f32 1.0, %v750
    %v755 = vsub.f32 1.0, %v751
    %v756 = vsub.f32 1.0, %v752
    %v757 = vmul.f32 %v596, %v753
    %v758 = vmul.f32 %v597, %v754
    %v759 = vmul.f32 %v598, %v755
    %v760 = vmul.f32 %v599, %v756
    %v761 = vsub.f32 1.0, %v737
    %v762 = vsub.f32 1.0, %v738
    %v763 = vsub.f32 1.0, %v739
    %v764 = vsub.f32 1.0, %v740
    %v765 = vmul.f32 %v640, %v761
    %v766 = vmul.f32 %v641, %v762
    %v767 = vmul.f32 %v642, %v763
    %v768 = vmul.f32 %v643, %v764
    %v769 = vsub.f32 1.0, %v765
    %v770 = vsub.f32 1.0, %v766
    %v771 = vsub.f32 1.0, %v767
    %v772 = vsub.f32 1.0, %v768
    %v773 = vmul.f32 %v596, %v769
    %v774 = vmul.f32 %v597, %v770
    %v775 = vmul.f32 %v598, %v771
    %v776 = vmul.f32 %v599, %v772
    %v777 = vmul.f32 %v733, 0.16666667
    %v778 = vmul.f32 %v734, 0.16666667
    %v779 = vmul.f32 %v735, 0.16666667
    %v780 = vmul.f32 %v736, 0.16666667
    %v781 = vfloor.f32 %v777
    %v782 = vfloor.f32 %v778
    %v783 = vfloor.f32 %v779
    %v784 = vfloor.f32 %v780
    %v785 = vmul.f32 %v781, 6.0
    %v786 = vmul.f32 %v782, 6.0
    %v787 = vmul.f32 %v783, 6.0
    %v788 = vmul.f32 %v784, 6.0
    %v789 = vsub.f32 %v733, %v785
    %v790 = vsub.f32 %v734, %v786
    %v791 = vsub.f32 %v735, %v787
    %v792 = vsub.f32 %v736, %v788
    %vm793 = vcmp.lt.f32.partialorder %v789, 1.0
    %vm794 = vcmp.lt.f32.partialorder %v790, 1.0
    %vm795 = vcmp.lt.f32.partialorder %v791, 1.0
    %vm796 = vcmp.lt.f32.partialorder %v792, 1.0
    %vm797 = vcmp.lt.f32.partialorder %v789, 2.0
    %vm798 = vcmp.lt.f32.partialorder %v790, 2.0
    %vm799 = vcmp.lt.f32.partialorder %v791, 2.0
    %vm800 = vcmp.lt.f32.partialorder %v792, 2.0
    %vm801 = vcmp.lt.f32.partialorder %v789, 3.0
    %vm802 = vcmp.lt.f32.partialorder %v790, 3.0
    %vm803 = vcmp.lt.f32.partialorder %v791, 3.0
    %vm804 = vcmp.lt.f32.partialorder %v792, 3.0
    %vm805 = vcmp.lt.f32.partialorder %v789, 4.0
    %vm806 = vcmp.lt.f32.partialorder %v790, 4.0
    %vm807 = vcmp.lt.f32.partialorder %v791, 4.0
    %vm808 = vcmp.lt.f32.partialorder %v792, 4.0
    %vm809 = vcmp.lt.f32.partialorder %v789, 5.0
    %vm810 = vcmp.lt.f32.partialorder %v790, 5.0
    %vm811 = vcmp.lt.f32.partialorder %v791, 5.0
    %vm812 = vcmp.lt.f32.partialorder %v792, 5.0
    %v813 = vsel %vm809, %v773, %v596
    %v814 = vsel %vm810, %v774, %v597
    %v815 = vsel %vm811, %v775, %v598
    %v816 = vsel %vm812, %v776, %v599
    %v817 = vsel %vm805, %v745, %v813
    %v818 = vsel %vm806, %v746, %v814
    %v819 = vsel %vm807, %v747, %v815
    %v820 = vsel %vm808, %v748, %v816
    %v821 = vsel %vm801, %v745, %v817
    %v822 = vsel %vm802, %v746, %v818
    %v823 = vsel %vm803, %v747, %v819
    %v824 = vsel %vm804, %v748, %v820
    %v825 = vsel %vm797, %v757, %v821
    %v826 = vsel %vm798, %v758, %v822
    %v827 = vsel %vm799, %v759, %v823
    %v828 = vsel %vm800, %v760, %v824
    %v829 = vsel %vm793, %v596, %v825
    %v830 = vsel %vm794, %v597, %v826
    %v831 = vsel %vm795, %v598, %v827
    %v832 = vsel %vm796, %v599, %v828
    %v833 = vsel %vm805, %v757, %v745
    %v834 = vsel %vm806, %v758, %v746
    %v835 = vsel %vm807, %v759, %v747
    %v836 = vsel %vm808, %v760, %v748
    %v837 = vsel %vm801, %v596, %v833
    %v838 = vsel %vm802, %v597, %v834
    %v839 = vsel %vm803, %v598, %v835
    %v840 = vsel %vm804, %v599, %v836
    %v841 = vsel %vm797, %v596, %v837
    %v842 = vsel %vm798, %v597, %v838
    %v843 = vsel %vm799, %v598, %v839
    %v844 = vsel %vm800, %v599, %v840
    %v845 = vsel %vm793, %v773, %v841
    %v846 = vsel %vm794, %v774, %v842
    %v847 = vsel %vm795, %v775, %v843
    %v848 = vsel %vm796, %v776, %v844
    %v849 = vsel %vm809, %v596, %v757
    %v850 = vsel %vm810, %v597, %v758
    %v851 = vsel %vm811, %v598, %v759
    %v852 = vsel %vm812, %v599, %v760
    %v853 = vsel %vm805, %v596, %v849
    %v854 = vsel %vm806, %v597, %v850
    %v855 = vsel %vm807, %v598, %v851
    %v856 = vsel %vm808, %v599, %v852
    %v857 = vsel %vm801, %v773, %v853
    %v858 = vsel %vm802, %v774, %v854
    %v859 = vsel %vm803, %v775, %v855
    %v860 = vsel %vm804, %v776, %v856
    %v861 = vsel %vm797, %v745, %v857
    %v862 = vsel %vm798, %v746, %v858
    %v863 = vsel %vm799, %v747, %v859
    %v864 = vsel %vm800, %v748, %v860
    %v865 = vsel %vm793, %v745, %v861
    %v866 = vsel %vm794, %v746, %v862
    %v867 = vsel %vm795, %v747, %v863
    %v868 = vsel %vm796, %v748, %v864
    %v869 = vmul.f32 %v829, 0.299
    %v870 = vmul.f32 %v830, 0.299
    %v871 = vmul.f32 %v831, 0.299
    %v872 = vmul.f32 %v832, 0.299
    %v873 = vmul.f32 %v845, 0.587
    %v874 = vmul.f32 %v846, 0.587
    %v875 = vmul.f32 %v847, 0.587
    %v876 = vmul.f32 %v848, 0.587
    %v877 = vadd.f32 %v869, %v873
    %v878 = vadd.f32 %v870, %v874
    %v879 = vadd.f32 %v871, %v875
    %v880 = vadd.f32 %v872, %v876
    %v881 = vmul.f32 %v865, 0.114
    %v882 = vmul.f32 %v866, 0.114
    %v883 = vmul.f32 %v867, 0.114
    %v884 = vmul.f32 %v868, 0.114
    %v885 = vadd.f32 %v877, %v881
    %v886 = vadd.f32 %v878, %v882
    %v887 = vadd.f32 %v879, %v883
    %v888 = vadd.f32 %v880, %v884
    %p889 = scmp.gt.f32.partialorder %s47, 0.5
    %s890 = scalar_select %p889, 1, 0
    %v891 = vstv %s890
    %vm892 = vcmp.eq.s32.totalorder %v891, 1
    %v893 = vsel %vm892, %v885, %v829
    %v894 = vsel %vm892, %v886, %v830
    %v895 = vsel %vm892, %v887, %v831
    %v896 = vsel %vm892, %v888, %v832
    %v897 = vsel %vm892, %v885, %v845
    %v898 = vsel %vm892, %v886, %v846
    %v899 = vsel %vm892, %v887, %v847
    %v900 = vsel %vm892, %v888, %v848
    %v901 = vsel %vm892, %v885, %v865
    %v902 = vsel %vm892, %v886, %v866
    %v903 = vsel %vm892, %v887, %v867
    %v904 = vsel %vm892, %v888, %v868
    %v905 = vpack.c.bf16 %v894, %v893
    %v906 = vpack.c.bf16 %v896, %v895
    %v907 = vpack.c.bf16 %v898, %v897
    %v908 = vpack.c.bf16 %v900, %v899
    %v909 = vpack.c.bf16 %v902, %v901
    %v910 = vpack.c.bf16 %v904, %v903
    %v915 = vunpack.c.l.b16 %v60
    %v916 = vunpack.c.l.b16 %v61
    %v917 = vunpack.c.l.b16 %v62
    %v918 = vunpack.c.l.b16 %v63
    %v919 = vpack.c.b16 %v916, %v915
    %v920 = vpack.c.b16 %v918, %v917
    %v924 = vsel %vm120, %v905, 0
    %v927 = vsel %vm120, %v906, 0
    %v930 = vsel %vm120, %v907, 0
    %v933 = vsel %vm120, %v908, 0
    %v936 = vsel %vm120, %v909, 0
    %v939 = vsel %vm120, %v910, 0
    %941 = vmatprep.subr.bf16.mxu0 0
    %942 = vmatpush1.bf16.msra.mxu0 %v919
    %943 = vmatprep.subr.bf16.mxu0 0
    %944 = vmatpush1.bf16.msra.mxu0 %v920
    %945 = vmatprep.subr.bf16.mxu0 0
    %946 = vmatpush1.bf16.msra.mxu0 0
    %947 = vmatprep.subr.bf16.mxu0 0
    %948 = vmatpush1.bf16.msra.mxu0 0
    %949 = vmatprep.subr.bf16.mxu0 0
    %950 = vmatpush1.bf16.msra.mxu0 0
    %951 = vmatprep.subr.bf16.mxu0 0
    %952 = vmatpush1.bf16.msra.mxu0 0
    %953 = vmatprep.subr.bf16.mxu0 0
    %954 = vmatpush1.bf16.msra.mxu0 0
    %955 = vmatprep.subr.bf16.mxu0 0
    %956 = vmatpush1.bf16.msra.mxu0 0
    %957 = vmatprep.subr.bf16.mxu0 0
    %958 = vmatpush1.bf16.msra.mxu0 0
    %959 = vmatprep.subr.bf16.mxu0 0
    %960 = vmatpush1.bf16.msra.mxu0 0
    %961 = vmatprep.subr.bf16.mxu0 0
    %962 = vmatpush1.bf16.msra.mxu0 0
    %963 = vmatprep.subr.bf16.mxu0 0
    %964 = vmatpush1.bf16.msra.mxu0 0
    %965 = vmatprep.subr.bf16.mxu0 0
    %966 = vmatpush1.bf16.msra.mxu0 0
    %967 = vmatprep.subr.bf16.mxu0 0
    %968 = vmatpush1.bf16.msra.mxu0 0
    %969 = vmatprep.subr.bf16.mxu0 0
    %970 = vmatpush1.bf16.msra.mxu0 0
    %971 = vmatprep.subr.bf16.mxu0 0
    %972 = vmatpush1.bf16.msra.mxu0 0
    %973 = vmatprep.mubr.bf16.mxu0 0
    %974 = vmatmul.mubr.bf16.gmra.mrb[0].mxu0 %v924
    %v975 = vpop.f32.mrb[0].mxu0
    %v976 = vadd.f32 0.0, %v975
    %v977 = vpop.f32.mrb[0].mxu0
    %v978 = vpop.f32.mrb[0].mxu0
    %v979 = vadd.f32 0.0, %v978
    %v980 = vpop.f32.mrb[0].mxu0
    %981 = vmatprep.mubr.bf16.mxu0 0
    %982 = vmatmul.mubr.bf16.gmra.mrb[0].mxu0 %v927
    %v983 = vpop.f32.mrb[0].mxu0
    %v984 = vadd.f32 0.0, %v983
    %v985 = vpop.f32.mrb[0].mxu0
    %v986 = vpop.f32.mrb[0].mxu0
    %v987 = vadd.f32 0.0, %v986
    %v988 = vpop.f32.mrb[0].mxu0
    %989 = vmatprep.mubr.bf16.mxu0 0
    %990 = vmatmul.mubr.bf16.gmra.mrb[0].mxu0 %v930
    %v991 = vpop.f32.mrb[0].mxu0
    %v992 = vadd.f32 0.0, %v991
    %v993 = vpop.f32.mrb[0].mxu0
    %v994 = vpop.f32.mrb[0].mxu0
    %v995 = vadd.f32 0.0, %v994
    %v996 = vpop.f32.mrb[0].mxu0
    %997 = vmatprep.mubr.bf16.mxu0 0
    %998 = vmatmul.mubr.bf16.gmra.mrb[0].mxu0 %v933
    %v999 = vpop.f32.mrb[0].mxu0
    %v1000 = vadd.f32 0.0, %v999
    %v1001 = vpop.f32.mrb[0].mxu0
    %v1002 = vpop.f32.mrb[0].mxu0
    %v1003 = vadd.f32 0.0, %v1002
    %v1004 = vpop.f32.mrb[0].mxu0
    %1005 = vmatprep.mubr.bf16.mxu0 0
    %1006 = vmatmul.mubr.bf16.gmra.mrb[0].mxu0 %v936
    %v1007 = vpop.f32.mrb[0].mxu0
    %v1008 = vadd.f32 0.0, %v1007
    %v1009 = vpop.f32.mrb[0].mxu0
    %v1010 = vpop.f32.mrb[0].mxu0
    %v1011 = vadd.f32 0.0, %v1010
    %v1012 = vpop.f32.mrb[0].mxu0
    %1013 = vmatprep.mubr.bf16.mxu0 0
    %1014 = vmatmul.mubr.bf16.gmra.mrb[0].mxu0 %v939
    %v1015 = vpop.f32.mrb[0].mxu0
    %v1016 = vadd.f32 0.0, %v1015
    %v1017 = vpop.f32.mrb[0].mxu0
    %v1018 = vpop.f32.mrb[0].mxu0
    %v1019 = vadd.f32 0.0, %v1018
    %v1020 = vpop.f32.mrb[0].mxu0
    %1021 = vdwg.mxu0
    %v1022 = vpack.c.bf16 %v979, %v976
    %v1023 = vpack.c.bf16 %v987, %v984
    %v1028 = vunpack.c.l.b16 %v56
    %v1029 = vunpack.c.l.b16 %v57
    %v1030 = vunpack.c.l.b16 %v58
    %v1031 = vunpack.c.l.b16 %v59
    %v1032 = vpack.c.b16 %v1029, %v1028
    %v1033 = vpack.c.b16 %v1031, %v1030
    %v1035 = vsel %vm120, %v1032, 0
    %v1038 = vsel %vm120, %v1033, 0
    %1040 = vmatprep.subr.bf16.mxu0 0
    %1041 = vmatpush1.bf16.msra.mxu0 %v1022
    %1042 = vmatprep.subr.bf16.mxu0 0
    %1043 = vmatpush1.bf16.msra.mxu0 %v1023
    %1044 = vmatprep.subr.bf16.mxu0 0
    %1045 = vmatpush1.bf16.msra.mxu0 0
    %1046 = vmatprep.subr.bf16.mxu0 0
    %1047 = vmatpush1.bf16.msra.mxu0 0
    %1048 = vmatprep.subr.bf16.mxu0 0
    %1049 = vmatpush1.bf16.msra.mxu0 0
    %1050 = vmatprep.subr.bf16.mxu0 0
    %1051 = vmatpush1.bf16.msra.mxu0 0
    %1052 = vmatprep.subr.bf16.mxu0 0
    %1053 = vmatpush1.bf16.msra.mxu0 0
    %1054 = vmatprep.subr.bf16.mxu0 0
    %1055 = vmatpush1.bf16.msra.mxu0 0
    %1056 = vmatprep.subr.bf16.mxu0 0
    %1057 = vmatpush1.bf16.msra.mxu0 0
    %1058 = vmatprep.subr.bf16.mxu0 0
    %1059 = vmatpush1.bf16.msra.mxu0 0
    %1060 = vmatprep.subr.bf16.mxu0 0
    %1061 = vmatpush1.bf16.msra.mxu0 0
    %1062 = vmatprep.subr.bf16.mxu0 0
    %1063 = vmatpush1.bf16.msra.mxu0 0
    %1064 = vmatprep.subr.bf16.mxu0 0
    %1065 = vmatpush1.bf16.msra.mxu0 0
    %1066 = vmatprep.subr.bf16.mxu0 0
    %1067 = vmatpush1.bf16.msra.mxu0 0
    %1068 = vmatprep.subr.bf16.mxu0 0
    %1069 = vmatpush1.bf16.msra.mxu0 0
    %1070 = vmatprep.subr.bf16.mxu0 0
    %1071 = vmatpush1.bf16.msra.mxu0 0
    %1072 = vmatprep.mubr.bf16.mxu0 0
    %1073 = vmatmul.mubr.bf16.gmra.mrb[0].mxu0 %v1035
    %v1074 = vpop.f32.mrb[0].mxu0
    %v1075 = vadd.f32 0.0, %v1074
    %v1076 = vpop.f32.mrb[0].mxu0
    %v1077 = vpop.f32.mrb[0].mxu0
    %v1078 = vadd.f32 0.0, %v1077
    %v1079 = vpop.f32.mrb[0].mxu0
    %1080 = vmatprep.mubr.bf16.mxu0 0
    %1081 = vmatmul.mubr.bf16.gmra.mrb[0].mxu0 %v1038
    %v1082 = vpop.f32.mrb[0].mxu0
    %v1083 = vadd.f32 0.0, %v1082
    %v1084 = vpop.f32.mrb[0].mxu0
    %v1085 = vpop.f32.mrb[0].mxu0
    %v1086 = vadd.f32 0.0, %v1085
    %v1087 = vpop.f32.mrb[0].mxu0
    %1088 = vdwg.mxu0
    %1089 = vst.msk [vmem:[#allocation5] sm:$0xff] %vm120, %v1075
    %1090 = vst.msk [vmem:[#allocation5 + $0x8] sm:$0xff] %vm120, %v1078
    %1091 = vst.msk [vmem:[#allocation5 + $0x10] sm:$0xff] %vm120, %v1083
    %1092 = vst.msk [vmem:[#allocation5 + $0x18] sm:$0xff] %vm120, %v1086
    %v1093 = vpack.c.bf16 %v995, %v992
    %v1094 = vpack.c.bf16 %v1003, %v1000
    %1095 = vmatprep.subr.bf16.mxu0 0
    %1096 = vmatpush1.bf16.msra.mxu0 %v1093
    %1097 = vmatprep.subr.bf16.mxu0 0
    %1098 = vmatpush1.bf16.msra.mxu0 %v1094
    %1099 = vmatprep.subr.bf16.mxu0 0
    %1100 = vmatpush1.bf16.msra.mxu0 0
    %1101 = vmatprep.subr.bf16.mxu0 0
    %1102 = vmatpush1.bf16.msra.mxu0 0
    %1103 = vmatprep.subr.bf16.mxu0 0
    %1104 = vmatpush1.bf16.msra.mxu0 0
    %1105 = vmatprep.subr.bf16.mxu0 0
    %1106 = vmatpush1.bf16.msra.mxu0 0
    %1107 = vmatprep.subr.bf16.mxu0 0
    %1108 = vmatpush1.bf16.msra.mxu0 0
    %1109 = vmatprep.subr.bf16.mxu0 0
    %1110 = vmatpush1.bf16.msra.mxu0 0
    %1111 = vmatprep.subr.bf16.mxu0 0
    %1112 = vmatpush1.bf16.msra.mxu0 0
    %1113 = vmatprep.subr.bf16.mxu0 0
    %1114 = vmatpush1.bf16.msra.mxu0 0
    %1115 = vmatprep.subr.bf16.mxu0 0
    %1116 = vmatpush1.bf16.msra.mxu0 0
    %1117 = vmatprep.subr.bf16.mxu0 0
    %1118 = vmatpush1.bf16.msra.mxu0 0
    %1119 = vmatprep.subr.bf16.mxu0 0
    %1120 = vmatpush1.bf16.msra.mxu0 0
    %1121 = vmatprep.subr.bf16.mxu0 0
    %1122 = vmatpush1.bf16.msra.mxu0 0
    %1123 = vmatprep.subr.bf16.mxu0 0
    %1124 = vmatpush1.bf16.msra.mxu0 0
    %1125 = vmatprep.subr.bf16.mxu0 0
    %1126 = vmatpush1.bf16.msra.mxu0 0
    %1127 = vmatprep.mubr.bf16.mxu0 0
    %1128 = vmatmul.mubr.bf16.gmra.mrb[0].mxu0 %v1035
    %v1129 = vpop.f32.mrb[0].mxu0
    %v1130 = vadd.f32 0.0, %v1129
    %v1131 = vpop.f32.mrb[0].mxu0
    %v1132 = vpop.f32.mrb[0].mxu0
    %v1133 = vadd.f32 0.0, %v1132
    %v1134 = vpop.f32.mrb[0].mxu0
    %1135 = vmatprep.mubr.bf16.mxu0 0
    %1136 = vmatmul.mubr.bf16.gmra.mrb[0].mxu0 %v1038
    %v1137 = vpop.f32.mrb[0].mxu0
    %v1138 = vadd.f32 0.0, %v1137
    %v1139 = vpop.f32.mrb[0].mxu0
    %v1140 = vpop.f32.mrb[0].mxu0
    %v1141 = vadd.f32 0.0, %v1140
    %v1142 = vpop.f32.mrb[0].mxu0
    %1143 = vdwg.mxu0
    %s1144 = scalar_lea.vmem [#allocation5], 32
    %1145 = vst.msk [vmem:[%s1144] sm:$0xff] %vm120, %v1130
    %1146 = vst.msk [vmem:[%s1144 + $0x8] sm:$0xff] %vm120, %v1133
    %1147 = vst.msk [vmem:[%s1144 + $0x10] sm:$0xff] %vm120, %v1138
    %1148 = vst.msk [vmem:[%s1144 + $0x18] sm:$0xff] %vm120, %v1141
    %v1149 = vpack.c.bf16 %v1011, %v1008
    %v1150 = vpack.c.bf16 %v1019, %v1016
    %1151 = vmatprep.subr.bf16.mxu0 0
    %1152 = vmatpush1.bf16.msra.mxu0 %v1149
    %1153 = vmatprep.subr.bf16.mxu0 0
    %1154 = vmatpush1.bf16.msra.mxu0 %v1150
    %1155 = vmatprep.subr.bf16.mxu0 0
    %1156 = vmatpush1.bf16.msra.mxu0 0
    %1157 = vmatprep.subr.bf16.mxu0 0
    %1158 = vmatpush1.bf16.msra.mxu0 0
    %1159 = vmatprep.subr.bf16.mxu0 0
    %1160 = vmatpush1.bf16.msra.mxu0 0
    %1161 = vmatprep.subr.bf16.mxu0 0
    %1162 = vmatpush1.bf16.msra.mxu0 0
    %1163 = vmatprep.subr.bf16.mxu0 0
    %1164 = vmatpush1.bf16.msra.mxu0 0
    %1165 = vmatprep.subr.bf16.mxu0 0
    %1166 = vmatpush1.bf16.msra.mxu0 0
    %1167 = vmatprep.subr.bf16.mxu0 0
    %1168 = vmatpush1.bf16.msra.mxu0 0
    %1169 = vmatprep.subr.bf16.mxu0 0
    %1170 = vmatpush1.bf16.msra.mxu0 0
    %1171 = vmatprep.subr.bf16.mxu0 0
    %1172 = vmatpush1.bf16.msra.mxu0 0
    %1173 = vmatprep.subr.bf16.mxu0 0
    %1174 = vmatpush1.bf16.msra.mxu0 0
    %1175 = vmatprep.subr.bf16.mxu0 0
    %1176 = vmatpush1.bf16.msra.mxu0 0
    %1177 = vmatprep.subr.bf16.mxu0 0
    %1178 = vmatpush1.bf16.msra.mxu0 0
    %1179 = vmatprep.subr.bf16.mxu0 0
    %1180 = vmatpush1.bf16.msra.mxu0 0
    %1181 = vmatprep.subr.bf16.mxu0 0
    %1182 = vmatpush1.bf16.msra.mxu0 0
    %1183 = vmatprep.mubr.bf16.mxu0 0
    %1184 = vmatmul.mubr.bf16.gmra.mrb[0].mxu0 %v1035
    %v1185 = vpop.f32.mrb[0].mxu0
    %v1186 = vadd.f32 0.0, %v1185
    %v1187 = vpop.f32.mrb[0].mxu0
    %v1188 = vpop.f32.mrb[0].mxu0
    %v1189 = vadd.f32 0.0, %v1188
    %v1190 = vpop.f32.mrb[0].mxu0
    %1191 = vmatprep.mubr.bf16.mxu0 0
    %1192 = vmatmul.mubr.bf16.gmra.mrb[0].mxu0 %v1038
    %v1193 = vpop.f32.mrb[0].mxu0
    %v1194 = vadd.f32 0.0, %v1193
    %v1195 = vpop.f32.mrb[0].mxu0
    %v1196 = vpop.f32.mrb[0].mxu0
    %v1197 = vadd.f32 0.0, %v1196
    %v1198 = vpop.f32.mrb[0].mxu0
    %1199 = vdwg.mxu0
    %s1200 = scalar_lea.vmem [#allocation5], 64
    %1201 = vst.msk [vmem:[%s1200] sm:$0xff] %vm120, %v1186
    %1202 = vst.msk [vmem:[%s1200 + $0x8] sm:$0xff] %vm120, %v1189
    %1203 = vst.msk [vmem:[%s1200 + $0x10] sm:$0xff] %vm120, %v1194
    %1204 = vst.msk [vmem:[%s1200 + $0x18] sm:$0xff] %vm120, %v1197
    %s1205 = smul.u32 0, 2
    %s1206 = sadd.s32 %s1205, 1
    %s1207 = smul.u32 %s1206, 8
    %s1208 = sld [smem:[#allocation2 + %s1207]]
    %s1209 = sadd.s32 %s1207, 1
    %s1210 = sld [smem:[#allocation2 + %s1209]]
    %s1211 = sadd.s32 %s1207, 2
    %s1212 = sld [smem:[#allocation2 + %s1211]]
    %s1213 = sadd.s32 %s1207, 3
    %s1214 = sld [smem:[#allocation2 + %s1213]]
    %s1215 = sadd.s32 %s1207, 4
    %s1216 = sld [smem:[#allocation2 + %s1215]]
    %s1217 = scalar_lea.vmem %s2, 16
    %v1218 = vld [vmem:[%s1217] sm:$0xf]
    %v1219 = vld [vmem:[%s1217 + $0x4] sm:$0xf]
    %v1220 = vld [vmem:[%s1217 + $0x8] sm:$0xf]
    %v1221 = vld [vmem:[%s1217 + $0xc] sm:$0xf]
    %s1222 = scalar_lea.vmem %s3, 16
    %v1223 = vld [vmem:[%s1222] sm:$0xf]
    %v1224 = vld [vmem:[%s1222 + $0x4] sm:$0xf]
    %v1225 = vld [vmem:[%s1222 + $0x8] sm:$0xf]
    %v1226 = vld [vmem:[%s1222 + $0xc] sm:$0xf]
    %s1227 = scalar_lea.vmem %s4, 16
    %v1228 = vld [vmem:[%s1227] sm:$0xf]
    %v1229 = vld [vmem:[%s1227 + $0x4] sm:$0xf]
    %v1230 = vld [vmem:[%s1227 + $0x8] sm:$0xf]
    %v1231 = vld [vmem:[%s1227 + $0xc] sm:$0xf]
    %s1232 = scalar_lea.vmem %s5, 16
    %v1233 = vld [vmem:[%s1232] sm:$0xf]
    %v1234 = vld [vmem:[%s1232 + $0x4] sm:$0xf]
    %v1235 = vld [vmem:[%s1232 + $0x8] sm:$0xf]
    %v1236 = vld [vmem:[%s1232 + $0xc] sm:$0xf]
    %s1237 = scalar_lea.vmem %s1, 48
    %v1238 = vld [vmem:[%s1237] sm:$0xf]
    %v1239 = vld [vmem:[%s1237 + $0x4] sm:$0xf]
    %v1240 = vld [vmem:[%s1237 + $0x8] sm:$0xf]
    %v1241 = vld [vmem:[%s1237 + $0xc] sm:$0xf]
    %s1242 = scalar_lea.vmem %s1, 64
    %v1243 = vld [vmem:[%s1242] sm:$0xf]
    %v1244 = vld [vmem:[%s1242 + $0x4] sm:$0xf]
    %v1245 = vld [vmem:[%s1242 + $0x8] sm:$0xf]
    %v1246 = vld [vmem:[%s1242 + $0xc] sm:$0xf]
    %s1247 = scalar_lea.vmem %s1, 80
    %v1248 = vld [vmem:[%s1247] sm:$0xf]
    %v1249 = vld [vmem:[%s1247 + $0x4] sm:$0xf]
    %v1250 = vld [vmem:[%s1247 + $0x8] sm:$0xf]
    %v1251 = vld [vmem:[%s1247 + $0xc] sm:$0xf]
    %v1256 = vunpack.c.l.b16 %v1238
    %v1257 = vunpack.c.l.b16 %v1239
    %v1258 = vunpack.c.l.b16 %v1240
    %v1259 = vunpack.c.l.b16 %v1241
    %v1260 = vpack.c.b16 %v1257, %v1256
    %v1261 = vpack.c.b16 %v1259, %v1258
    %v1266 = vunpack.c.l.b16 %v1243
    %v1267 = vunpack.c.l.b16 %v1244
    %v1268 = vunpack.c.l.b16 %v1245
    %v1269 = vunpack.c.l.b16 %v1246
    %v1270 = vpack.c.b16 %v1267, %v1266
    %v1271 = vpack.c.b16 %v1269, %v1268
    %v1276 = vunpack.c.l.b16 %v1248
    %v1277 = vunpack.c.l.b16 %v1249
    %v1278 = vunpack.c.l.b16 %v1250
    %v1279 = vunpack.c.l.b16 %v1251
    %v1280 = vpack.c.b16 %v1277, %v1276
    %v1281 = vpack.c.b16 %v1279, %v1278
    %v1286 = vunpack.c.l.b16 %v1223
    %v1287 = vunpack.c.l.b16 %v1224
    %v1288 = vunpack.c.l.b16 %v1225
    %v1289 = vunpack.c.l.b16 %v1226
    %v1290 = vpack.c.b16 %v1287, %v1286
    %v1291 = vpack.c.b16 %v1289, %v1288
    %v1295 = vsel %vm120, %v1260, 0
    %v1298 = vsel %vm120, %v1261, 0
    %v1301 = vsel %vm120, %v1270, 0
    %v1304 = vsel %vm120, %v1271, 0
    %v1307 = vsel %vm120, %v1280, 0
    %v1310 = vsel %vm120, %v1281, 0
    %1312 = vmatprep.subr.bf16.mxu0 0
    %1313 = vmatpush1.bf16.msra.mxu0 %v1290
    %1314 = vmatprep.subr.bf16.mxu0 0
    %1315 = vmatpush1.bf16.msra.mxu0 %v1291
    %1316 = vmatprep.subr.bf16.mxu0 0
    %1317 = vmatpush1.bf16.msra.mxu0 0
    %1318 = vmatprep.subr.bf16.mxu0 0
    %1319 = vmatpush1.bf16.msra.mxu0 0
    %1320 = vmatprep.subr.bf16.mxu0 0
    %1321 = vmatpush1.bf16.msra.mxu0 0
    %1322 = vmatprep.subr.bf16.mxu0 0
    %1323 = vmatpush1.bf16.msra.mxu0 0
    %1324 = vmatprep.subr.bf16.mxu0 0
    %1325 = vmatpush1.bf16.msra.mxu0 0
    %1326 = vmatprep.subr.bf16.mxu0 0
    %1327 = vmatpush1.bf16.msra.mxu0 0
    %1328 = vmatprep.subr.bf16.mxu0 0
    %1329 = vmatpush1.bf16.msra.mxu0 0
    %1330 = vmatprep.subr.bf16.mxu0 0
    %1331 = vmatpush1.bf16.msra.mxu0 0
    %1332 = vmatprep.subr.bf16.mxu0 0
    %1333 = vmatpush1.bf16.msra.mxu0 0
    %1334 = vmatprep.subr.bf16.mxu0 0
    %1335 = vmatpush1.bf16.msra.mxu0 0
    %1336 = vmatprep.subr.bf16.mxu0 0
    %1337 = vmatpush1.bf16.msra.mxu0 0
    %1338 = vmatprep.subr.bf16.mxu0 0
    %1339 = vmatpush1.bf16.msra.mxu0 0
    %1340 = vmatprep.subr.bf16.mxu0 0
    %1341 = vmatpush1.bf16.msra.mxu0 0
    %1342 = vmatprep.subr.bf16.mxu0 0
    %1343 = vmatpush1.bf16.msra.mxu0 0
    %1344 = vmatprep.mubr.bf16.mxu0 0
    %1345 = vmatmul.mubr.bf16.gmra.mrb[0].mxu0 %v1295
    %v1346 = vpop.f32.mrb[0].mxu0
    %v1347 = vadd.f32 0.0, %v1346
    %v1348 = vpop.f32.mrb[0].mxu0
    %v1349 = vpop.f32.mrb[0].mxu0
    %v1350 = vadd.f32 0.0, %v1349
    %v1351 = vpop.f32.mrb[0].mxu0
    %1352 = vmatprep.mubr.bf16.mxu0 0
    %1353 = vmatmul.mubr.bf16.gmra.mrb[0].mxu0 %v1298
    %v1354 = vpop.f32.mrb[0].mxu0
    %v1355 = vadd.f32 0.0, %v1354
    %v1356 = vpop.f32.mrb[0].mxu0
    %v1357 = vpop.f32.mrb[0].mxu0
    %v1358 = vadd.f32 0.0, %v1357
    %v1359 = vpop.f32.mrb[0].mxu0
    %1360 = vmatprep.mubr.bf16.mxu0 0
    %1361 = vmatmul.mubr.bf16.gmra.mrb[0].mxu0 %v1301
    %v1362 = vpop.f32.mrb[0].mxu0
    %v1363 = vadd.f32 0.0, %v1362
    %v1364 = vpop.f32.mrb[0].mxu0
    %v1365 = vpop.f32.mrb[0].mxu0
    %v1366 = vadd.f32 0.0, %v1365
    %v1367 = vpop.f32.mrb[0].mxu0
    %1368 = vmatprep.mubr.bf16.mxu0 0
    %1369 = vmatmul.mubr.bf16.gmra.mrb[0].mxu0 %v1304
    %v1370 = vpop.f32.mrb[0].mxu0
    %v1371 = vadd.f32 0.0, %v1370
    %v1372 = vpop.f32.mrb[0].mxu0
    %v1373 = vpop.f32.mrb[0].mxu0
    %v1374 = vadd.f32 0.0, %v1373
    %v1375 = vpop.f32.mrb[0].mxu0
    %1376 = vmatprep.mubr.bf16.mxu0 0
    %1377 = vmatmul.mubr.bf16.gmra.mrb[0].mxu0 %v1307
    %v1378 = vpop.f32.mrb[0].mxu0
    %v1379 = vadd.f32 0.0, %v1378
    %v1380 = vpop.f32.mrb[0].mxu0
    %v1381 = vpop.f32.mrb[0].mxu0
    %v1382 = vadd.f32 0.0, %v1381
    %v1383 = vpop.f32.mrb[0].mxu0
    %1384 = vmatprep.mubr.bf16.mxu0 0
    %1385 = vmatmul.mubr.bf16.gmra.mrb[0].mxu0 %v1310
    %v1386 = vpop.f32.mrb[0].mxu0
    %v1387 = vadd.f32 0.0, %v1386
    %v1388 = vpop.f32.mrb[0].mxu0
    %v1389 = vpop.f32.mrb[0].mxu0
    %v1390 = vadd.f32 0.0, %v1389
    %v1391 = vpop.f32.mrb[0].mxu0
    %1392 = vdwg.mxu0
    %v1393 = vpack.c.bf16 %v1350, %v1347
    %v1394 = vpack.c.bf16 %v1358, %v1355
    %v1399 = vunpack.c.l.b16 %v1218
    %v1400 = vunpack.c.l.b16 %v1219
    %v1401 = vunpack.c.l.b16 %v1220
    %v1402 = vunpack.c.l.b16 %v1221
    %v1403 = vpack.c.b16 %v1400, %v1399
    %v1404 = vpack.c.b16 %v1402, %v1401
    %v1406 = vsel %vm120, %v1403, 0
    %v1409 = vsel %vm120, %v1404, 0
    %1411 = vmatprep.subr.bf16.mxu0 0
    %1412 = vmatpush1.bf16.msra.mxu0 %v1393
    %1413 = vmatprep.subr.bf16.mxu0 0
    %1414 = vmatpush1.bf16.msra.mxu0 %v1394
    %1415 = vmatprep.subr.bf16.mxu0 0
    %1416 = vmatpush1.bf16.msra.mxu0 0
    %1417 = vmatprep.subr.bf16.mxu0 0
    %1418 = vmatpush1.bf16.msra.mxu0 0
    %1419 = vmatprep.subr.bf16.mxu0 0
    %1420 = vmatpush1.bf16.msra.mxu0 0
    %1421 = vmatprep.subr.bf16.mxu0 0
    %1422 = vmatpush1.bf16.msra.mxu0 0
    %1423 = vmatprep.subr.bf16.mxu0 0
    %1424 = vmatpush1.bf16.msra.mxu0 0
    %1425 = vmatprep.subr.bf16.mxu0 0
    %1426 = vmatpush1.bf16.msra.mxu0 0
    %1427 = vmatprep.subr.bf16.mxu0 0
    %1428 = vmatpush1.bf16.msra.mxu0 0
    %1429 = vmatprep.subr.bf16.mxu0 0
    %1430 = vmatpush1.bf16.msra.mxu0 0
    %1431 = vmatprep.subr.bf16.mxu0 0
    %1432 = vmatpush1.bf16.msra.mxu0 0
    %1433 = vmatprep.subr.bf16.mxu0 0
    %1434 = vmatpush1.bf16.msra.mxu0 0
    %1435 = vmatprep.subr.bf16.mxu0 0
    %1436 = vmatpush1.bf16.msra.mxu0 0
    %1437 = vmatprep.subr.bf16.mxu0 0
    %1438 = vmatpush1.bf16.msra.mxu0 0
    %1439 = vmatprep.subr.bf16.mxu0 0
    %1440 = vmatpush1.bf16.msra.mxu0 0
    %1441 = vmatprep.subr.bf16.mxu0 0
    %1442 = vmatpush1.bf16.msra.mxu0 0
    %1443 = vmatprep.mubr.bf16.mxu0 0
    %1444 = vmatmul.mubr.bf16.gmra.mrb[0].mxu0 %v1406
    %v1445 = vpop.f32.mrb[0].mxu0
    %v1446 = vadd.f32 0.0, %v1445
    %v1447 = vpop.f32.mrb[0].mxu0
    %v1448 = vpop.f32.mrb[0].mxu0
    %v1449 = vadd.f32 0.0, %v1448
    %v1450 = vpop.f32.mrb[0].mxu0
    %1451 = vmatprep.mubr.bf16.mxu0 0
    %1452 = vmatmul.mubr.bf16.gmra.mrb[0].mxu0 %v1409
    %v1453 = vpop.f32.mrb[0].mxu0
    %v1454 = vadd.f32 0.0, %v1453
    %v1455 = vpop.f32.mrb[0].mxu0
    %v1456 = vpop.f32.mrb[0].mxu0
    %v1457 = vadd.f32 0.0, %v1456
    %v1458 = vpop.f32.mrb[0].mxu0
    %1459 = vdwg.mxu0
    %v1460 = vpack.c.bf16 %v1366, %v1363
    %v1461 = vpack.c.bf16 %v1374, %v1371
    %1462 = vmatprep.subr.bf16.mxu0 0
    %1463 = vmatpush1.bf16.msra.mxu0 %v1460
    %1464 = vmatprep.subr.bf16.mxu0 0
    %1465 = vmatpush1.bf16.msra.mxu0 %v1461
    %1466 = vmatprep.subr.bf16.mxu0 0
    %1467 = vmatpush1.bf16.msra.mxu0 0
    %1468 = vmatprep.subr.bf16.mxu0 0
    %1469 = vmatpush1.bf16.msra.mxu0 0
    %1470 = vmatprep.subr.bf16.mxu0 0
    %1471 = vmatpush1.bf16.msra.mxu0 0
    %1472 = vmatprep.subr.bf16.mxu0 0
    %1473 = vmatpush1.bf16.msra.mxu0 0
    %1474 = vmatprep.subr.bf16.mxu0 0
    %1475 = vmatpush1.bf16.msra.mxu0 0
    %1476 = vmatprep.subr.bf16.mxu0 0
    %1477 = vmatpush1.bf16.msra.mxu0 0
    %1478 = vmatprep.subr.bf16.mxu0 0
    %1479 = vmatpush1.bf16.msra.mxu0 0
    %1480 = vmatprep.subr.bf16.mxu0 0
    %1481 = vmatpush1.bf16.msra.mxu0 0
    %1482 = vmatprep.subr.bf16.mxu0 0
    %1483 = vmatpush1.bf16.msra.mxu0 0
    %1484 = vmatprep.subr.bf16.mxu0 0
    %1485 = vmatpush1.bf16.msra.mxu0 0
    %1486 = vmatprep.subr.bf16.mxu0 0
    %1487 = vmatpush1.bf16.msra.mxu0 0
    %1488 = vmatprep.subr.bf16.mxu0 0
    %1489 = vmatpush1.bf16.msra.mxu0 0
    %1490 = vmatprep.subr.bf16.mxu0 0
    %1491 = vmatpush1.bf16.msra.mxu0 0
    %1492 = vmatprep.subr.bf16.mxu0 0
    %1493 = vmatpush1.bf16.msra.mxu0 0
    %1494 = vmatprep.mubr.bf16.mxu0 0
    %1495 = vmatmul.mubr.bf16.gmra.mrb[0].mxu0 %v1406
    %v1496 = vpop.f32.mrb[0].mxu0
    %v1497 = vadd.f32 0.0, %v1496
    %v1498 = vpop.f32.mrb[0].mxu0
    %v1499 = vpop.f32.mrb[0].mxu0
    %v1500 = vadd.f32 0.0, %v1499
    %v1501 = vpop.f32.mrb[0].mxu0
    %1502 = vmatprep.mubr.bf16.mxu0 0
    %1503 = vmatmul.mubr.bf16.gmra.mrb[0].mxu0 %v1409
    %v1504 = vpop.f32.mrb[0].mxu0
    %v1505 = vadd.f32 0.0, %v1504
    %v1506 = vpop.f32.mrb[0].mxu0
    %v1507 = vpop.f32.mrb[0].mxu0
    %v1508 = vadd.f32 0.0, %v1507
    %v1509 = vpop.f32.mrb[0].mxu0
    %1510 = vdwg.mxu0
    %v1511 = vpack.c.bf16 %v1382, %v1379
    %v1512 = vpack.c.bf16 %v1390, %v1387
    %1513 = vmatprep.subr.bf16.mxu0 0
    %1514 = vmatpush1.bf16.msra.mxu0 %v1511
    %1515 = vmatprep.subr.bf16.mxu0 0
    %1516 = vmatpush1.bf16.msra.mxu0 %v1512
    %1517 = vmatprep.subr.bf16.mxu0 0
    %1518 = vmatpush1.bf16.msra.mxu0 0
    %1519 = vmatprep.subr.bf16.mxu0 0
    %1520 = vmatpush1.bf16.msra.mxu0 0
    %1521 = vmatprep.subr.bf16.mxu0 0
    %1522 = vmatpush1.bf16.msra.mxu0 0
    %1523 = vmatprep.subr.bf16.mxu0 0
    %1524 = vmatpush1.bf16.msra.mxu0 0
    %1525 = vmatprep.subr.bf16.mxu0 0
    %1526 = vmatpush1.bf16.msra.mxu0 0
    %1527 = vmatprep.subr.bf16.mxu0 0
    %1528 = vmatpush1.bf16.msra.mxu0 0
    %1529 = vmatprep.subr.bf16.mxu0 0
    %1530 = vmatpush1.bf16.msra.mxu0 0
    %1531 = vmatprep.subr.bf16.mxu0 0
    %1532 = vmatpush1.bf16.msra.mxu0 0
    %1533 = vmatprep.subr.bf16.mxu0 0
    %1534 = vmatpush1.bf16.msra.mxu0 0
    %1535 = vmatprep.subr.bf16.mxu0 0
    %1536 = vmatpush1.bf16.msra.mxu0 0
    %1537 = vmatprep.subr.bf16.mxu0 0
    %1538 = vmatpush1.bf16.msra.mxu0 0
    %1539 = vmatprep.subr.bf16.mxu0 0
    %1540 = vmatpush1.bf16.msra.mxu0 0
    %1541 = vmatprep.subr.bf16.mxu0 0
    %1542 = vmatpush1.bf16.msra.mxu0 0
    %1543 = vmatprep.subr.bf16.mxu0 0
    %1544 = vmatpush1.bf16.msra.mxu0 0
    %1545 = vmatprep.mubr.bf16.mxu0 0
    %1546 = vmatmul.mubr.bf16.gmra.mrb[0].mxu0 %v1406
    %v1547 = vpop.f32.mrb[0].mxu0
    %v1548 = vadd.f32 0.0, %v1547
    %v1549 = vpop.f32.mrb[0].mxu0
    %v1550 = vpop.f32.mrb[0].mxu0
    %v1551 = vadd.f32 0.0, %v1550
    %v1552 = vpop.f32.mrb[0].mxu0
    %1553 = vmatprep.mubr.bf16.mxu0 0
    %1554 = vmatmul.mubr.bf16.gmra.mrb[0].mxu0 %v1409
    %v1555 = vpop.f32.mrb[0].mxu0
    %v1556 = vadd.f32 0.0, %v1555
    %v1557 = vpop.f32.mrb[0].mxu0
    %v1558 = vpop.f32.mrb[0].mxu0
    %v1559 = vadd.f32 0.0, %v1558
    %v1560 = vpop.f32.mrb[0].mxu0
    %1561 = vdwg.mxu0
    %v1562 = vstv %s1208
    %v1563 = vmul.f32 %v1446, %v1562
    %v1564 = vmul.f32 %v1449, %v1562
    %v1565 = vmul.f32 %v1454, %v1562
    %v1566 = vmul.f32 %v1457, %v1562
    %v1567 = vmax.f32 %v1563, 0.0
    %v1568 = vmax.f32 %v1564, 0.0
    %v1569 = vmax.f32 %v1565, 0.0
    %v1570 = vmax.f32 %v1566, 0.0
    %v1571 = vmin.f32 %v1567, 1.0
    %v1572 = vmin.f32 %v1568, 1.0
    %v1573 = vmin.f32 %v1569, 1.0
    %v1574 = vmin.f32 %v1570, 1.0
    %v1575 = vmul.f32 %v1497, %v1562
    %v1576 = vmul.f32 %v1500, %v1562
    %v1577 = vmul.f32 %v1505, %v1562
    %v1578 = vmul.f32 %v1508, %v1562
    %v1579 = vmax.f32 %v1575, 0.0
    %v1580 = vmax.f32 %v1576, 0.0
    %v1581 = vmax.f32 %v1577, 0.0
    %v1582 = vmax.f32 %v1578, 0.0
    %v1583 = vmin.f32 %v1579, 1.0
    %v1584 = vmin.f32 %v1580, 1.0
    %v1585 = vmin.f32 %v1581, 1.0
    %v1586 = vmin.f32 %v1582, 1.0
    %v1587 = vmul.f32 %v1548, %v1562
    %v1588 = vmul.f32 %v1551, %v1562
    %v1589 = vmul.f32 %v1556, %v1562
    %v1590 = vmul.f32 %v1559, %v1562
    %v1591 = vmax.f32 %v1587, 0.0
    %v1592 = vmax.f32 %v1588, 0.0
    %v1593 = vmax.f32 %v1589, 0.0
    %v1594 = vmax.f32 %v1590, 0.0
    %v1595 = vmin.f32 %v1591, 1.0
    %v1596 = vmin.f32 %v1592, 1.0
    %v1597 = vmin.f32 %v1593, 1.0
    %v1598 = vmin.f32 %v1594, 1.0
    %v1599 = vmul.f32 %v1571, 0.299
    %v1600 = vmul.f32 %v1572, 0.299
    %v1601 = vmul.f32 %v1573, 0.299
    %v1602 = vmul.f32 %v1574, 0.299
    %v1603 = vmul.f32 %v1583, 0.587
    %v1604 = vmul.f32 %v1584, 0.587
    %v1605 = vmul.f32 %v1585, 0.587
    %v1606 = vmul.f32 %v1586, 0.587
    %v1607 = vadd.f32 %v1599, %v1603
    %v1608 = vadd.f32 %v1600, %v1604
    %v1609 = vadd.f32 %v1601, %v1605
    %v1610 = vadd.f32 %v1602, %v1606
    %v1611 = vmul.f32 %v1595, 0.114
    %v1612 = vmul.f32 %v1596, 0.114
    %v1613 = vmul.f32 %v1597, 0.114
    %v1614 = vmul.f32 %v1598, 0.114
    %v1615 = vadd.f32 %v1607, %v1611
    %v1616 = vadd.f32 %v1608, %v1612
    %v1617 = vadd.f32 %v1609, %v1613
    %v1618 = vadd.f32 %v1610, %v1614
    %s1619 = ssub.f32 1.0, %s1210
    %v1620 = vsel %vm120, %v1615, 0.0
    %v1621 = vsel %vm120, %v1616, 0.0
    %v1622 = vadd.f32 %v1620, %v1621
    %v1623 = vsel %vm120, %v1617, 0.0
    %v1624 = vadd.f32 %v1622, %v1623
    %v1625 = vsel %vm120, %v1618, 0.0
    %v1626 = vadd.f32 %v1624, %v1625
    %1627 = vadd.xlane.f32.xlu0 %v1626
    %v1628 = vpop.xlane.xlu0 %1627
    %v1629 = vrot.slane %v1628, 4
    %v1630 = vadd.f32 %v1628, %v1629
    %v1631 = vrot.slane %v1630, 2
    %v1632 = vadd.f32 %v1630, %v1631
    %v1633 = vrot.slane %v1632, 1
    %v1634 = vadd.f32 %v1632, %v1633
    %s1635 = vtos %v1634
    %v1636 = vrcp.pop 1024.0
    %s1637 = vtos %v1636
    %s1638 = smul.f32 %s1635, %s1637
    %s1639 = smul.f32 %s1619, %s1638
    %v1640 = vstv %s1210
    %v1641 = vmul.f32 %v1640, %v1571
    %v1642 = vmul.f32 %v1640, %v1572
    %v1643 = vmul.f32 %v1640, %v1573
    %v1644 = vmul.f32 %v1640, %v1574
    %v1645 = vstv %s1639
    %v1646 = vadd.f32 %v1641, %v1645
    %v1647 = vadd.f32 %v1642, %v1645
    %v1648 = vadd.f32 %v1643, %v1645
    %v1649 = vadd.f32 %v1644, %v1645
    %v1650 = vmax.f32 %v1646, 0.0
    %v1651 = vmax.f32 %v1647, 0.0
    %v1652 = vmax.f32 %v1648, 0.0
    %v1653 = vmax.f32 %v1649, 0.0
    %v1654 = vmin.f32 %v1650, 1.0
    %v1655 = vmin.f32 %v1651, 1.0
    %v1656 = vmin.f32 %v1652, 1.0
    %v1657 = vmin.f32 %v1653, 1.0
    %v1658 = vmul.f32 %v1640, %v1583
    %v1659 = vmul.f32 %v1640, %v1584
    %v1660 = vmul.f32 %v1640, %v1585
    %v1661 = vmul.f32 %v1640, %v1586
    %v1662 = vadd.f32 %v1658, %v1645
    %v1663 = vadd.f32 %v1659, %v1645
    %v1664 = vadd.f32 %v1660, %v1645
    %v1665 = vadd.f32 %v1661, %v1645
    %v1666 = vmax.f32 %v1662, 0.0
    %v1667 = vmax.f32 %v1663, 0.0
    %v1668 = vmax.f32 %v1664, 0.0
    %v1669 = vmax.f32 %v1665, 0.0
    %v1670 = vmin.f32 %v1666, 1.0
    %v1671 = vmin.f32 %v1667, 1.0
    %v1672 = vmin.f32 %v1668, 1.0
    %v1673 = vmin.f32 %v1669, 1.0
    %v1674 = vmul.f32 %v1640, %v1595
    %v1675 = vmul.f32 %v1640, %v1596
    %v1676 = vmul.f32 %v1640, %v1597
    %v1677 = vmul.f32 %v1640, %v1598
    %v1678 = vadd.f32 %v1674, %v1645
    %v1679 = vadd.f32 %v1675, %v1645
    %v1680 = vadd.f32 %v1676, %v1645
    %v1681 = vadd.f32 %v1677, %v1645
    %v1682 = vmax.f32 %v1678, 0.0
    %v1683 = vmax.f32 %v1679, 0.0
    %v1684 = vmax.f32 %v1680, 0.0
    %v1685 = vmax.f32 %v1681, 0.0
    %v1686 = vmin.f32 %v1682, 1.0
    %v1687 = vmin.f32 %v1683, 1.0
    %v1688 = vmin.f32 %v1684, 1.0
    %v1689 = vmin.f32 %v1685, 1.0
    %v1690 = vmul.f32 %v1654, 0.299
    %v1691 = vmul.f32 %v1655, 0.299
    %v1692 = vmul.f32 %v1656, 0.299
    %v1693 = vmul.f32 %v1657, 0.299
    %v1694 = vmul.f32 %v1670, 0.587
    %v1695 = vmul.f32 %v1671, 0.587
    %v1696 = vmul.f32 %v1672, 0.587
    %v1697 = vmul.f32 %v1673, 0.587
    %v1698 = vadd.f32 %v1690, %v1694
    %v1699 = vadd.f32 %v1691, %v1695
    %v1700 = vadd.f32 %v1692, %v1696
    %v1701 = vadd.f32 %v1693, %v1697
    %v1702 = vmul.f32 %v1686, 0.114
    %v1703 = vmul.f32 %v1687, 0.114
    %v1704 = vmul.f32 %v1688, 0.114
    %v1705 = vmul.f32 %v1689, 0.114
    %v1706 = vadd.f32 %v1698, %v1702
    %v1707 = vadd.f32 %v1699, %v1703
    %v1708 = vadd.f32 %v1700, %v1704
    %v1709 = vadd.f32 %v1701, %v1705
    %v1710 = vstv %s1212
    %v1711 = vmul.f32 %v1710, %v1654
    %v1712 = vmul.f32 %v1710, %v1655
    %v1713 = vmul.f32 %v1710, %v1656
    %v1714 = vmul.f32 %v1710, %v1657
    %s1715 = ssub.f32 1.0, %s1212
    %v1716 = vstv %s1715
    %v1717 = vmul.f32 %v1716, %v1706
    %v1718 = vmul.f32 %v1716, %v1707
    %v1719 = vmul.f32 %v1716, %v1708
    %v1720 = vmul.f32 %v1716, %v1709
    %v1721 = vadd.f32 %v1711, %v1717
    %v1722 = vadd.f32 %v1712, %v1718
    %v1723 = vadd.f32 %v1713, %v1719
    %v1724 = vadd.f32 %v1714, %v1720
    %v1725 = vmax.f32 %v1721, 0.0
    %v1726 = vmax.f32 %v1722, 0.0
    %v1727 = vmax.f32 %v1723, 0.0
    %v1728 = vmax.f32 %v1724, 0.0
    %v1729 = vmin.f32 %v1725, 1.0
    %v1730 = vmin.f32 %v1726, 1.0
    %v1731 = vmin.f32 %v1727, 1.0
    %v1732 = vmin.f32 %v1728, 1.0
    %v1733 = vmul.f32 %v1710, %v1670
    %v1734 = vmul.f32 %v1710, %v1671
    %v1735 = vmul.f32 %v1710, %v1672
    %v1736 = vmul.f32 %v1710, %v1673
    %v1737 = vadd.f32 %v1733, %v1717
    %v1738 = vadd.f32 %v1734, %v1718
    %v1739 = vadd.f32 %v1735, %v1719
    %v1740 = vadd.f32 %v1736, %v1720
    %v1741 = vmax.f32 %v1737, 0.0
    %v1742 = vmax.f32 %v1738, 0.0
    %v1743 = vmax.f32 %v1739, 0.0
    %v1744 = vmax.f32 %v1740, 0.0
    %v1745 = vmin.f32 %v1741, 1.0
    %v1746 = vmin.f32 %v1742, 1.0
    %v1747 = vmin.f32 %v1743, 1.0
    %v1748 = vmin.f32 %v1744, 1.0
    %v1749 = vmul.f32 %v1710, %v1686
    %v1750 = vmul.f32 %v1710, %v1687
    %v1751 = vmul.f32 %v1710, %v1688
    %v1752 = vmul.f32 %v1710, %v1689
    %v1753 = vadd.f32 %v1749, %v1717
    %v1754 = vadd.f32 %v1750, %v1718
    %v1755 = vadd.f32 %v1751, %v1719
    %v1756 = vadd.f32 %v1752, %v1720
    %v1757 = vmax.f32 %v1753, 0.0
    %v1758 = vmax.f32 %v1754, 0.0
    %v1759 = vmax.f32 %v1755, 0.0
    %v1760 = vmax.f32 %v1756, 0.0
    %v1761 = vmin.f32 %v1757, 1.0
    %v1762 = vmin.f32 %v1758, 1.0
    %v1763 = vmin.f32 %v1759, 1.0
    %v1764 = vmin.f32 %v1760, 1.0
    %v1765 = vmax.f32 %v1745, %v1761
    %v1766 = vmax.f32 %v1746, %v1762
    %v1767 = vmax.f32 %v1747, %v1763
    %v1768 = vmax.f32 %v1748, %v1764
    %v1769 = vmax.f32 %v1729, %v1765
    %v1770 = vmax.f32 %v1730, %v1766
    %v1771 = vmax.f32 %v1731, %v1767
    %v1772 = vmax.f32 %v1732, %v1768
    %v1773 = vmin.f32 %v1745, %v1761
    %v1774 = vmin.f32 %v1746, %v1762
    %v1775 = vmin.f32 %v1747, %v1763
    %v1776 = vmin.f32 %v1748, %v1764
    %v1777 = vmin.f32 %v1729, %v1773
    %v1778 = vmin.f32 %v1730, %v1774
    %v1779 = vmin.f32 %v1731, %v1775
    %v1780 = vmin.f32 %v1732, %v1776
    %v1781 = vsub.f32 %v1769, %v1777
    %v1782 = vsub.f32 %v1770, %v1778
    %v1783 = vsub.f32 %v1771, %v1779
    %v1784 = vsub.f32 %v1772, %v1780
    %vm1785 = vcmp.gt.f32.partialorder %v1781, 0.0
    %vm1786 = vcmp.gt.f32.partialorder %v1782, 0.0
    %vm1787 = vcmp.gt.f32.partialorder %v1783, 0.0
    %vm1788 = vcmp.gt.f32.partialorder %v1784, 0.0
    %v1789 = vsel %vm1785, %v1781, 1.0
    %v1790 = vsel %vm1786, %v1782, 1.0
    %v1791 = vsel %vm1787, %v1783, 1.0
    %v1792 = vsel %vm1788, %v1784, 1.0
    %v1793 = vrcp.pop %v1789
    %v1794 = vrcp.pop %v1790
    %v1795 = vrcp.pop %v1791
    %v1796 = vrcp.pop %v1792
    %vm1797 = vcmp.gt.f32.partialorder %v1769, 0.0
    %vm1798 = vcmp.gt.f32.partialorder %v1770, 0.0
    %vm1799 = vcmp.gt.f32.partialorder %v1771, 0.0
    %vm1800 = vcmp.gt.f32.partialorder %v1772, 0.0
    %v1801 = vsel %vm1797, %v1769, 1.0
    %v1802 = vsel %vm1798, %v1770, 1.0
    %v1803 = vsel %vm1799, %v1771, 1.0
    %v1804 = vsel %vm1800, %v1772, 1.0
    %v1805 = vrcp.pop %v1801
    %v1806 = vrcp.pop %v1802
    %v1807 = vrcp.pop %v1803
    %v1808 = vrcp.pop %v1804
    %v1809 = vmul.f32 %v1781, %v1805
    %v1810 = vmul.f32 %v1782, %v1806
    %v1811 = vmul.f32 %v1783, %v1807
    %v1812 = vmul.f32 %v1784, %v1808
    %v1813 = vsel %vm1797, %v1809, 0.0
    %v1814 = vsel %vm1798, %v1810, 0.0
    %v1815 = vsel %vm1799, %v1811, 0.0
    %v1816 = vsel %vm1800, %v1812, 0.0
    %v1817 = vsub.f32 %v1745, %v1761
    %v1818 = vsub.f32 %v1746, %v1762
    %v1819 = vsub.f32 %v1747, %v1763
    %v1820 = vsub.f32 %v1748, %v1764
    %v1821 = vmul.f32 %v1817, %v1793
    %v1822 = vmul.f32 %v1818, %v1794
    %v1823 = vmul.f32 %v1819, %v1795
    %v1824 = vmul.f32 %v1820, %v1796
    %v1825 = vsub.f32 %v1761, %v1729
    %v1826 = vsub.f32 %v1762, %v1730
    %v1827 = vsub.f32 %v1763, %v1731
    %v1828 = vsub.f32 %v1764, %v1732
    %v1829 = vmul.f32 %v1825, %v1793
    %v1830 = vmul.f32 %v1826, %v1794
    %v1831 = vmul.f32 %v1827, %v1795
    %v1832 = vmul.f32 %v1828, %v1796
    %v1833 = vadd.f32 %v1829, 2.0
    %v1834 = vadd.f32 %v1830, 2.0
    %v1835 = vadd.f32 %v1831, 2.0
    %v1836 = vadd.f32 %v1832, 2.0
    %v1837 = vsub.f32 %v1729, %v1745
    %v1838 = vsub.f32 %v1730, %v1746
    %v1839 = vsub.f32 %v1731, %v1747
    %v1840 = vsub.f32 %v1732, %v1748
    %v1841 = vmul.f32 %v1837, %v1793
    %v1842 = vmul.f32 %v1838, %v1794
    %v1843 = vmul.f32 %v1839, %v1795
    %v1844 = vmul.f32 %v1840, %v1796
    %v1845 = vadd.f32 %v1841, 4.0
    %v1846 = vadd.f32 %v1842, 4.0
    %v1847 = vadd.f32 %v1843, 4.0
    %v1848 = vadd.f32 %v1844, 4.0
    %vm1849 = vcmp.eq.f32.partialorder %v1769, %v1729
    %vm1850 = vcmp.eq.f32.partialorder %v1770, %v1730
    %vm1851 = vcmp.eq.f32.partialorder %v1771, %v1731
    %vm1852 = vcmp.eq.f32.partialorder %v1772, %v1732
    %vm1853 = vcmp.eq.f32.partialorder %v1769, %v1745
    %vm1854 = vcmp.eq.f32.partialorder %v1770, %v1746
    %vm1855 = vcmp.eq.f32.partialorder %v1771, %v1747
    %vm1856 = vcmp.eq.f32.partialorder %v1772, %v1748
    %v1857 = vsel %vm1853, %v1833, %v1845
    %v1858 = vsel %vm1854, %v1834, %v1846
    %v1859 = vsel %vm1855, %v1835, %v1847
    %v1860 = vsel %vm1856, %v1836, %v1848
    %v1861 = vsel %vm1849, %v1821, %v1857
    %v1862 = vsel %vm1850, %v1822, %v1858
    %v1863 = vsel %vm1851, %v1823, %v1859
    %v1864 = vsel %vm1852, %v1824, %v1860
    %v1865 = vmul.f32 %v1861, 0.16666667
    %v1866 = vmul.f32 %v1862, 0.16666667
    %v1867 = vmul.f32 %v1863, 0.16666667
    %v1868 = vmul.f32 %v1864, 0.16666667
    %v1869 = vfloor.f32 %v1865
    %v1870 = vfloor.f32 %v1866
    %v1871 = vfloor.f32 %v1867
    %v1872 = vfloor.f32 %v1868
    %v1873 = vmul.f32 %v1869, 6.0
    %v1874 = vmul.f32 %v1870, 6.0
    %v1875 = vmul.f32 %v1871, 6.0
    %v1876 = vmul.f32 %v1872, 6.0
    %v1877 = vsub.f32 %v1861, %v1873
    %v1878 = vsub.f32 %v1862, %v1874
    %v1879 = vsub.f32 %v1863, %v1875
    %v1880 = vsub.f32 %v1864, %v1876
    %v1881 = vmul.f32 %v1877, 0.16666667
    %v1882 = vmul.f32 %v1878, 0.16666667
    %v1883 = vmul.f32 %v1879, 0.16666667
    %v1884 = vmul.f32 %v1880, 0.16666667
    %v1885 = vsel %vm1785, %v1881, 0.0
    %v1886 = vsel %vm1786, %v1882, 0.0
    %v1887 = vsel %vm1787, %v1883, 0.0
    %v1888 = vsel %vm1788, %v1884, 0.0
    %v1889 = vstv %s1214
    %v1890 = vadd.f32 %v1885, %v1889
    %v1891 = vadd.f32 %v1886, %v1889
    %v1892 = vadd.f32 %v1887, %v1889
    %v1893 = vadd.f32 %v1888, %v1889
    %v1894 = vfloor.f32 %v1890
    %v1895 = vfloor.f32 %v1891
    %v1896 = vfloor.f32 %v1892
    %v1897 = vfloor.f32 %v1893
    %v1898 = vsub.f32 %v1890, %v1894
    %v1899 = vsub.f32 %v1891, %v1895
    %v1900 = vsub.f32 %v1892, %v1896
    %v1901 = vsub.f32 %v1893, %v1897
    %v1902 = vmul.f32 %v1898, 6.0
    %v1903 = vmul.f32 %v1899, 6.0
    %v1904 = vmul.f32 %v1900, 6.0
    %v1905 = vmul.f32 %v1901, 6.0
    %v1906 = vfloor.f32 %v1902
    %v1907 = vfloor.f32 %v1903
    %v1908 = vfloor.f32 %v1904
    %v1909 = vfloor.f32 %v1905
    %v1910 = vsub.f32 %v1902, %v1906
    %v1911 = vsub.f32 %v1903, %v1907
    %v1912 = vsub.f32 %v1904, %v1908
    %v1913 = vsub.f32 %v1905, %v1909
    %v1914 = vsub.f32 1.0, %v1813
    %v1915 = vsub.f32 1.0, %v1814
    %v1916 = vsub.f32 1.0, %v1815
    %v1917 = vsub.f32 1.0, %v1816
    %v1918 = vmul.f32 %v1769, %v1914
    %v1919 = vmul.f32 %v1770, %v1915
    %v1920 = vmul.f32 %v1771, %v1916
    %v1921 = vmul.f32 %v1772, %v1917
    %v1922 = vmul.f32 %v1813, %v1910
    %v1923 = vmul.f32 %v1814, %v1911
    %v1924 = vmul.f32 %v1815, %v1912
    %v1925 = vmul.f32 %v1816, %v1913
    %v1926 = vsub.f32 1.0, %v1922
    %v1927 = vsub.f32 1.0, %v1923
    %v1928 = vsub.f32 1.0, %v1924
    %v1929 = vsub.f32 1.0, %v1925
    %v1930 = vmul.f32 %v1769, %v1926
    %v1931 = vmul.f32 %v1770, %v1927
    %v1932 = vmul.f32 %v1771, %v1928
    %v1933 = vmul.f32 %v1772, %v1929
    %v1934 = vsub.f32 1.0, %v1910
    %v1935 = vsub.f32 1.0, %v1911
    %v1936 = vsub.f32 1.0, %v1912
    %v1937 = vsub.f32 1.0, %v1913
    %v1938 = vmul.f32 %v1813, %v1934
    %v1939 = vmul.f32 %v1814, %v1935
    %v1940 = vmul.f32 %v1815, %v1936
    %v1941 = vmul.f32 %v1816, %v1937
    %v1942 = vsub.f32 1.0, %v1938
    %v1943 = vsub.f32 1.0, %v1939
    %v1944 = vsub.f32 1.0, %v1940
    %v1945 = vsub.f32 1.0, %v1941
    %v1946 = vmul.f32 %v1769, %v1942
    %v1947 = vmul.f32 %v1770, %v1943
    %v1948 = vmul.f32 %v1771, %v1944
    %v1949 = vmul.f32 %v1772, %v1945
    %v1950 = vmul.f32 %v1906, 0.16666667
    %v1951 = vmul.f32 %v1907, 0.16666667
    %v1952 = vmul.f32 %v1908, 0.16666667
    %v1953 = vmul.f32 %v1909, 0.16666667
    %v1954 = vfloor.f32 %v1950
    %v1955 = vfloor.f32 %v1951
    %v1956 = vfloor.f32 %v1952
    %v1957 = vfloor.f32 %v1953
    %v1958 = vmul.f32 %v1954, 6.0
    %v1959 = vmul.f32 %v1955, 6.0
    %v1960 = vmul.f32 %v1956, 6.0
    %v1961 = vmul.f32 %v1957, 6.0
    %v1962 = vsub.f32 %v1906, %v1958
    %v1963 = vsub.f32 %v1907, %v1959
    %v1964 = vsub.f32 %v1908, %v1960
    %v1965 = vsub.f32 %v1909, %v1961
    %vm1966 = vcmp.lt.f32.partialorder %v1962, 1.0
    %vm1967 = vcmp.lt.f32.partialorder %v1963, 1.0
    %vm1968 = vcmp.lt.f32.partialorder %v1964, 1.0
    %vm1969 = vcmp.lt.f32.partialorder %v1965, 1.0
    %vm1970 = vcmp.lt.f32.partialorder %v1962, 2.0
    %vm1971 = vcmp.lt.f32.partialorder %v1963, 2.0
    %vm1972 = vcmp.lt.f32.partialorder %v1964, 2.0
    %vm1973 = vcmp.lt.f32.partialorder %v1965, 2.0
    %vm1974 = vcmp.lt.f32.partialorder %v1962, 3.0
    %vm1975 = vcmp.lt.f32.partialorder %v1963, 3.0
    %vm1976 = vcmp.lt.f32.partialorder %v1964, 3.0
    %vm1977 = vcmp.lt.f32.partialorder %v1965, 3.0
    %vm1978 = vcmp.lt.f32.partialorder %v1962, 4.0
    %vm1979 = vcmp.lt.f32.partialorder %v1963, 4.0
    %vm1980 = vcmp.lt.f32.partialorder %v1964, 4.0
    %vm1981 = vcmp.lt.f32.partialorder %v1965, 4.0
    %vm1982 = vcmp.lt.f32.partialorder %v1962, 5.0
    %vm1983 = vcmp.lt.f32.partialorder %v1963, 5.0
    %vm1984 = vcmp.lt.f32.partialorder %v1964, 5.0
    %vm1985 = vcmp.lt.f32.partialorder %v1965, 5.0
    %v1986 = vsel %vm1982, %v1946, %v1769
    %v1987 = vsel %vm1983, %v1947, %v1770
    %v1988 = vsel %vm1984, %v1948, %v1771
    %v1989 = vsel %vm1985, %v1949, %v1772
    %v1990 = vsel %vm1978, %v1918, %v1986
    %v1991 = vsel %vm1979, %v1919, %v1987
    %v1992 = vsel %vm1980, %v1920, %v1988
    %v1993 = vsel %vm1981, %v1921, %v1989
    %v1994 = vsel %vm1974, %v1918, %v1990
    %v1995 = vsel %vm1975, %v1919, %v1991
    %v1996 = vsel %vm1976, %v1920, %v1992
    %v1997 = vsel %vm1977, %v1921, %v1993
    %v1998 = vsel %vm1970, %v1930, %v1994
    %v1999 = vsel %vm1971, %v1931, %v1995
    %v2000 = vsel %vm1972, %v1932, %v1996
    %v2001 = vsel %vm1973, %v1933, %v1997
    %v2002 = vsel %vm1966, %v1769, %v1998
    %v2003 = vsel %vm1967, %v1770, %v1999
    %v2004 = vsel %vm1968, %v1771, %v2000
    %v2005 = vsel %vm1969, %v1772, %v2001
    %v2006 = vsel %vm1978, %v1930, %v1918
    %v2007 = vsel %vm1979, %v1931, %v1919
    %v2008 = vsel %vm1980, %v1932, %v1920
    %v2009 = vsel %vm1981, %v1933, %v1921
    %v2010 = vsel %vm1974, %v1769, %v2006
    %v2011 = vsel %vm1975, %v1770, %v2007
    %v2012 = vsel %vm1976, %v1771, %v2008
    %v2013 = vsel %vm1977, %v1772, %v2009
    %v2014 = vsel %vm1970, %v1769, %v2010
    %v2015 = vsel %vm1971, %v1770, %v2011
    %v2016 = vsel %vm1972, %v1771, %v2012
    %v2017 = vsel %vm1973, %v1772, %v2013
    %v2018 = vsel %vm1966, %v1946, %v2014
    %v2019 = vsel %vm1967, %v1947, %v2015
    %v2020 = vsel %vm1968, %v1948, %v2016
    %v2021 = vsel %vm1969, %v1949, %v2017
    %v2022 = vsel %vm1982, %v1769, %v1930
    %v2023 = vsel %vm1983, %v1770, %v1931
    %v2024 = vsel %vm1984, %v1771, %v1932
    %v2025 = vsel %vm1985, %v1772, %v1933
    %v2026 = vsel %vm1978, %v1769, %v2022
    %v2027 = vsel %vm1979, %v1770, %v2023
    %v2028 = vsel %vm1980, %v1771, %v2024
    %v2029 = vsel %vm1981, %v1772, %v2025
    %v2030 = vsel %vm1974, %v1946, %v2026
    %v2031 = vsel %vm1975, %v1947, %v2027
    %v2032 = vsel %vm1976, %v1948, %v2028
    %v2033 = vsel %vm1977, %v1949, %v2029
    %v2034 = vsel %vm1970, %v1918, %v2030
    %v2035 = vsel %vm1971, %v1919, %v2031
    %v2036 = vsel %vm1972, %v1920, %v2032
    %v2037 = vsel %vm1973, %v1921, %v2033
    %v2038 = vsel %vm1966, %v1918, %v2034
    %v2039 = vsel %vm1967, %v1919, %v2035
    %v2040 = vsel %vm1968, %v1920, %v2036
    %v2041 = vsel %vm1969, %v1921, %v2037
    %v2042 = vmul.f32 %v2002, 0.299
    %v2043 = vmul.f32 %v2003, 0.299
    %v2044 = vmul.f32 %v2004, 0.299
    %v2045 = vmul.f32 %v2005, 0.299
    %v2046 = vmul.f32 %v2018, 0.587
    %v2047 = vmul.f32 %v2019, 0.587
    %v2048 = vmul.f32 %v2020, 0.587
    %v2049 = vmul.f32 %v2021, 0.587
    %v2050 = vadd.f32 %v2042, %v2046
    %v2051 = vadd.f32 %v2043, %v2047
    %v2052 = vadd.f32 %v2044, %v2048
    %v2053 = vadd.f32 %v2045, %v2049
    %v2054 = vmul.f32 %v2038, 0.114
    %v2055 = vmul.f32 %v2039, 0.114
    %v2056 = vmul.f32 %v2040, 0.114
    %v2057 = vmul.f32 %v2041, 0.114
    %v2058 = vadd.f32 %v2050, %v2054
    %v2059 = vadd.f32 %v2051, %v2055
    %v2060 = vadd.f32 %v2052, %v2056
    %v2061 = vadd.f32 %v2053, %v2057
    %p2062 = scmp.gt.f32.partialorder %s1216, 0.5
    %s2063 = scalar_select %p2062, 1, 0
    %v2064 = vstv %s2063
    %vm2065 = vcmp.eq.s32.totalorder %v2064, 1
    %v2066 = vsel %vm2065, %v2058, %v2002
    %v2067 = vsel %vm2065, %v2059, %v2003
    %v2068 = vsel %vm2065, %v2060, %v2004
    %v2069 = vsel %vm2065, %v2061, %v2005
    %v2070 = vsel %vm2065, %v2058, %v2018
    %v2071 = vsel %vm2065, %v2059, %v2019
    %v2072 = vsel %vm2065, %v2060, %v2020
    %v2073 = vsel %vm2065, %v2061, %v2021
    %v2074 = vsel %vm2065, %v2058, %v2038
    %v2075 = vsel %vm2065, %v2059, %v2039
    %v2076 = vsel %vm2065, %v2060, %v2040
    %v2077 = vsel %vm2065, %v2061, %v2041
    %v2078 = vpack.c.bf16 %v2067, %v2066
    %v2079 = vpack.c.bf16 %v2069, %v2068
    %v2080 = vpack.c.bf16 %v2071, %v2070
    %v2081 = vpack.c.bf16 %v2073, %v2072
    %v2082 = vpack.c.bf16 %v2075, %v2074
    %v2083 = vpack.c.bf16 %v2077, %v2076
    %v2088 = vunpack.c.l.b16 %v1233
    %v2089 = vunpack.c.l.b16 %v1234
    %v2090 = vunpack.c.l.b16 %v1235
    %v2091 = vunpack.c.l.b16 %v1236
    %v2092 = vpack.c.b16 %v2089, %v2088
    %v2093 = vpack.c.b16 %v2091, %v2090
    %v2097 = vsel %vm120, %v2078, 0
    %v2100 = vsel %vm120, %v2079, 0
    %v2103 = vsel %vm120, %v2080, 0
    %v2106 = vsel %vm120, %v2081, 0
    %v2109 = vsel %vm120, %v2082, 0
    %v2112 = vsel %vm120, %v2083, 0
    %2114 = vmatprep.subr.bf16.mxu0 0
    %2115 = vmatpush1.bf16.msra.mxu0 %v2092
    %2116 = vmatprep.subr.bf16.mxu0 0
    %2117 = vmatpush1.bf16.msra.mxu0 %v2093
    %2118 = vmatprep.subr.bf16.mxu0 0
    %2119 = vmatpush1.bf16.msra.mxu0 0
    %2120 = vmatprep.subr.bf16.mxu0 0
    %2121 = vmatpush1.bf16.msra.mxu0 0
    %2122 = vmatprep.subr.bf16.mxu0 0
    %2123 = vmatpush1.bf16.msra.mxu0 0
    %2124 = vmatprep.subr.bf16.mxu0 0
    %2125 = vmatpush1.bf16.msra.mxu0 0
    %2126 = vmatprep.subr.bf16.mxu0 0
    %2127 = vmatpush1.bf16.msra.mxu0 0
    %2128 = vmatprep.subr.bf16.mxu0 0
    %2129 = vmatpush1.bf16.msra.mxu0 0
    %2130 = vmatprep.subr.bf16.mxu0 0
    %2131 = vmatpush1.bf16.msra.mxu0 0
    %2132 = vmatprep.subr.bf16.mxu0 0
    %2133 = vmatpush1.bf16.msra.mxu0 0
    %2134 = vmatprep.subr.bf16.mxu0 0
    %2135 = vmatpush1.bf16.msra.mxu0 0
    %2136 = vmatprep.subr.bf16.mxu0 0
    %2137 = vmatpush1.bf16.msra.mxu0 0
    %2138 = vmatprep.subr.bf16.mxu0 0
    %2139 = vmatpush1.bf16.msra.mxu0 0
    %2140 = vmatprep.subr.bf16.mxu0 0
    %2141 = vmatpush1.bf16.msra.mxu0 0
    %2142 = vmatprep.subr.bf16.mxu0 0
    %2143 = vmatpush1.bf16.msra.mxu0 0
    %2144 = vmatprep.subr.bf16.mxu0 0
    %2145 = vmatpush1.bf16.msra.mxu0 0
    %2146 = vmatprep.mubr.bf16.mxu0 0
    %2147 = vmatmul.mubr.bf16.gmra.mrb[0].mxu0 %v2097
    %v2148 = vpop.f32.mrb[0].mxu0
    %v2149 = vadd.f32 0.0, %v2148
    %v2150 = vpop.f32.mrb[0].mxu0
    %v2151 = vpop.f32.mrb[0].mxu0
    %v2152 = vadd.f32 0.0, %v2151
    %v2153 = vpop.f32.mrb[0].mxu0
    %2154 = vmatprep.mubr.bf16.mxu0 0
    %2155 = vmatmul.mubr.bf16.gmra.mrb[0].mxu0 %v2100
    %v2156 = vpop.f32.mrb[0].mxu0
    %v2157 = vadd.f32 0.0, %v2156
    %v2158 = vpop.f32.mrb[0].mxu0
    %v2159 = vpop.f32.mrb[0].mxu0
    %v2160 = vadd.f32 0.0, %v2159
    %v2161 = vpop.f32.mrb[0].mxu0
    %2162 = vmatprep.mubr.bf16.mxu0 0
    %2163 = vmatmul.mubr.bf16.gmra.mrb[0].mxu0 %v2103
    %v2164 = vpop.f32.mrb[0].mxu0
    %v2165 = vadd.f32 0.0, %v2164
    %v2166 = vpop.f32.mrb[0].mxu0
    %v2167 = vpop.f32.mrb[0].mxu0
    %v2168 = vadd.f32 0.0, %v2167
    %v2169 = vpop.f32.mrb[0].mxu0
    %2170 = vmatprep.mubr.bf16.mxu0 0
    %2171 = vmatmul.mubr.bf16.gmra.mrb[0].mxu0 %v2106
    %v2172 = vpop.f32.mrb[0].mxu0
    %v2173 = vadd.f32 0.0, %v2172
    %v2174 = vpop.f32.mrb[0].mxu0
    %v2175 = vpop.f32.mrb[0].mxu0
    %v2176 = vadd.f32 0.0, %v2175
    %v2177 = vpop.f32.mrb[0].mxu0
    %2178 = vmatprep.mubr.bf16.mxu0 0
    %2179 = vmatmul.mubr.bf16.gmra.mrb[0].mxu0 %v2109
    %v2180 = vpop.f32.mrb[0].mxu0
    %v2181 = vadd.f32 0.0, %v2180
    %v2182 = vpop.f32.mrb[0].mxu0
    %v2183 = vpop.f32.mrb[0].mxu0
    %v2184 = vadd.f32 0.0, %v2183
    %v2185 = vpop.f32.mrb[0].mxu0
    %2186 = vmatprep.mubr.bf16.mxu0 0
    %2187 = vmatmul.mubr.bf16.gmra.mrb[0].mxu0 %v2112
    %v2188 = vpop.f32.mrb[0].mxu0
    %v2189 = vadd.f32 0.0, %v2188
    %v2190 = vpop.f32.mrb[0].mxu0
    %v2191 = vpop.f32.mrb[0].mxu0
    %v2192 = vadd.f32 0.0, %v2191
    %v2193 = vpop.f32.mrb[0].mxu0
    %2194 = vdwg.mxu0
    %v2195 = vpack.c.bf16 %v2152, %v2149
    %v2196 = vpack.c.bf16 %v2160, %v2157
    %v2201 = vunpack.c.l.b16 %v1228
    %v2202 = vunpack.c.l.b16 %v1229
    %v2203 = vunpack.c.l.b16 %v1230
    %v2204 = vunpack.c.l.b16 %v1231
    %v2205 = vpack.c.b16 %v2202, %v2201
    %v2206 = vpack.c.b16 %v2204, %v2203
    %v2208 = vsel %vm120, %v2205, 0
    %v2211 = vsel %vm120, %v2206, 0
    %2213 = vmatprep.subr.bf16.mxu0 0
    %2214 = vmatpush1.bf16.msra.mxu0 %v2195
    %2215 = vmatprep.subr.bf16.mxu0 0
    %2216 = vmatpush1.bf16.msra.mxu0 %v2196
    %2217 = vmatprep.subr.bf16.mxu0 0
    %2218 = vmatpush1.bf16.msra.mxu0 0
    %2219 = vmatprep.subr.bf16.mxu0 0
    %2220 = vmatpush1.bf16.msra.mxu0 0
    %2221 = vmatprep.subr.bf16.mxu0 0
    %2222 = vmatpush1.bf16.msra.mxu0 0
    %2223 = vmatprep.subr.bf16.mxu0 0
    %2224 = vmatpush1.bf16.msra.mxu0 0
    %2225 = vmatprep.subr.bf16.mxu0 0
    %2226 = vmatpush1.bf16.msra.mxu0 0
    %2227 = vmatprep.subr.bf16.mxu0 0
    %2228 = vmatpush1.bf16.msra.mxu0 0
    %2229 = vmatprep.subr.bf16.mxu0 0
    %2230 = vmatpush1.bf16.msra.mxu0 0
    %2231 = vmatprep.subr.bf16.mxu0 0
    %2232 = vmatpush1.bf16.msra.mxu0 0
    %2233 = vmatprep.subr.bf16.mxu0 0
    %2234 = vmatpush1.bf16.msra.mxu0 0
    %2235 = vmatprep.subr.bf16.mxu0 0
    %2236 = vmatpush1.bf16.msra.mxu0 0
    %2237 = vmatprep.subr.bf16.mxu0 0
    %2238 = vmatpush1.bf16.msra.mxu0 0
    %2239 = vmatprep.subr.bf16.mxu0 0
    %2240 = vmatpush1.bf16.msra.mxu0 0
    %2241 = vmatprep.subr.bf16.mxu0 0
    %2242 = vmatpush1.bf16.msra.mxu0 0
    %2243 = vmatprep.subr.bf16.mxu0 0
    %2244 = vmatpush1.bf16.msra.mxu0 0
    %2245 = vmatprep.mubr.bf16.mxu0 0
    %2246 = vmatmul.mubr.bf16.gmra.mrb[0].mxu0 %v2208
    %v2247 = vpop.f32.mrb[0].mxu0
    %v2248 = vadd.f32 0.0, %v2247
    %v2249 = vpop.f32.mrb[0].mxu0
    %v2250 = vpop.f32.mrb[0].mxu0
    %v2251 = vadd.f32 0.0, %v2250
    %v2252 = vpop.f32.mrb[0].mxu0
    %2253 = vmatprep.mubr.bf16.mxu0 0
    %2254 = vmatmul.mubr.bf16.gmra.mrb[0].mxu0 %v2211
    %v2255 = vpop.f32.mrb[0].mxu0
    %v2256 = vadd.f32 0.0, %v2255
    %v2257 = vpop.f32.mrb[0].mxu0
    %v2258 = vpop.f32.mrb[0].mxu0
    %v2259 = vadd.f32 0.0, %v2258
    %v2260 = vpop.f32.mrb[0].mxu0
    %2261 = vdwg.mxu0
    %s2262 = scalar_lea.vmem [#allocation5], 96
    %2263 = vst.msk [vmem:[%s2262] sm:$0xff] %vm120, %v2248
    %2264 = vst.msk [vmem:[%s2262 + $0x8] sm:$0xff] %vm120, %v2251
    %2265 = vst.msk [vmem:[%s2262 + $0x10] sm:$0xff] %vm120, %v2256
    %2266 = vst.msk [vmem:[%s2262 + $0x18] sm:$0xff] %vm120, %v2259
    %v2267 = vpack.c.bf16 %v2168, %v2165
    %v2268 = vpack.c.bf16 %v2176, %v2173
    %2269 = vmatprep.subr.bf16.mxu0 0
    %2270 = vmatpush1.bf16.msra.mxu0 %v2267
    %2271 = vmatprep.subr.bf16.mxu0 0
    %2272 = vmatpush1.bf16.msra.mxu0 %v2268
    %2273 = vmatprep.subr.bf16.mxu0 0
    %2274 = vmatpush1.bf16.msra.mxu0 0
    %2275 = vmatprep.subr.bf16.mxu0 0
    %2276 = vmatpush1.bf16.msra.mxu0 0
    %2277 = vmatprep.subr.bf16.mxu0 0
    %2278 = vmatpush1.bf16.msra.mxu0 0
    %2279 = vmatprep.subr.bf16.mxu0 0
    %2280 = vmatpush1.bf16.msra.mxu0 0
    %2281 = vmatprep.subr.bf16.mxu0 0
    %2282 = vmatpush1.bf16.msra.mxu0 0
    %2283 = vmatprep.subr.bf16.mxu0 0
    %2284 = vmatpush1.bf16.msra.mxu0 0
    %2285 = vmatprep.subr.bf16.mxu0 0
    %2286 = vmatpush1.bf16.msra.mxu0 0
    %2287 = vmatprep.subr.bf16.mxu0 0
    %2288 = vmatpush1.bf16.msra.mxu0 0
    %2289 = vmatprep.subr.bf16.mxu0 0
    %2290 = vmatpush1.bf16.msra.mxu0 0
    %2291 = vmatprep.subr.bf16.mxu0 0
    %2292 = vmatpush1.bf16.msra.mxu0 0
    %2293 = vmatprep.subr.bf16.mxu0 0
    %2294 = vmatpush1.bf16.msra.mxu0 0
    %2295 = vmatprep.subr.bf16.mxu0 0
    %2296 = vmatpush1.bf16.msra.mxu0 0
    %2297 = vmatprep.subr.bf16.mxu0 0
    %2298 = vmatpush1.bf16.msra.mxu0 0
    %2299 = vmatprep.subr.bf16.mxu0 0
    %2300 = vmatpush1.bf16.msra.mxu0 0
    %2301 = vmatprep.mubr.bf16.mxu0 0
    %2302 = vmatmul.mubr.bf16.gmra.mrb[0].mxu0 %v2208
    %v2303 = vpop.f32.mrb[0].mxu0
    %v2304 = vadd.f32 0.0, %v2303
    %v2305 = vpop.f32.mrb[0].mxu0
    %v2306 = vpop.f32.mrb[0].mxu0
    %v2307 = vadd.f32 0.0, %v2306
    %v2308 = vpop.f32.mrb[0].mxu0
    %2309 = vmatprep.mubr.bf16.mxu0 0
    %2310 = vmatmul.mubr.bf16.gmra.mrb[0].mxu0 %v2211
    %v2311 = vpop.f32.mrb[0].mxu0
    %v2312 = vadd.f32 0.0, %v2311
    %v2313 = vpop.f32.mrb[0].mxu0
    %v2314 = vpop.f32.mrb[0].mxu0
    %v2315 = vadd.f32 0.0, %v2314
    %v2316 = vpop.f32.mrb[0].mxu0
    %2317 = vdwg.mxu0
    %s2318 = scalar_lea.vmem [#allocation5], 128
    %2319 = vst.msk [vmem:[%s2318] sm:$0xff] %vm120, %v2304
    %2320 = vst.msk [vmem:[%s2318 + $0x8] sm:$0xff] %vm120, %v2307
    %2321 = vst.msk [vmem:[%s2318 + $0x10] sm:$0xff] %vm120, %v2312
    %2322 = vst.msk [vmem:[%s2318 + $0x18] sm:$0xff] %vm120, %v2315
    %v2323 = vpack.c.bf16 %v2184, %v2181
    %v2324 = vpack.c.bf16 %v2192, %v2189
    %2325 = vmatprep.subr.bf16.mxu0 0
    %2326 = vmatpush1.bf16.msra.mxu0 %v2323
    %2327 = vmatprep.subr.bf16.mxu0 0
    %2328 = vmatpush1.bf16.msra.mxu0 %v2324
    %2329 = vmatprep.subr.bf16.mxu0 0
    %2330 = vmatpush1.bf16.msra.mxu0 0
    %2331 = vmatprep.subr.bf16.mxu0 0
    %2332 = vmatpush1.bf16.msra.mxu0 0
    %2333 = vmatprep.subr.bf16.mxu0 0
    %2334 = vmatpush1.bf16.msra.mxu0 0
    %2335 = vmatprep.subr.bf16.mxu0 0
    %2336 = vmatpush1.bf16.msra.mxu0 0
    %2337 = vmatprep.subr.bf16.mxu0 0
    %2338 = vmatpush1.bf16.msra.mxu0 0
    %2339 = vmatprep.subr.bf16.mxu0 0
    %2340 = vmatpush1.bf16.msra.mxu0 0
    %2341 = vmatprep.subr.bf16.mxu0 0
    %2342 = vmatpush1.bf16.msra.mxu0 0
    %2343 = vmatprep.subr.bf16.mxu0 0
    %2344 = vmatpush1.bf16.msra.mxu0 0
    %2345 = vmatprep.subr.bf16.mxu0 0
    %2346 = vmatpush1.bf16.msra.mxu0 0
    %2347 = vmatprep.subr.bf16.mxu0 0
    %2348 = vmatpush1.bf16.msra.mxu0 0
    %2349 = vmatprep.subr.bf16.mxu0 0
    %2350 = vmatpush1.bf16.msra.mxu0 0
    %2351 = vmatprep.subr.bf16.mxu0 0
    %2352 = vmatpush1.bf16.msra.mxu0 0
    %2353 = vmatprep.subr.bf16.mxu0 0
    %2354 = vmatpush1.bf16.msra.mxu0 0
    %2355 = vmatprep.subr.bf16.mxu0 0
    %2356 = vmatpush1.bf16.msra.mxu0 0
    %2357 = vmatprep.mubr.bf16.mxu0 0
    %2358 = vmatmul.mubr.bf16.gmra.mrb[0].mxu0 %v2208
    %v2359 = vpop.f32.mrb[0].mxu0
    %v2360 = vadd.f32 0.0, %v2359
    %v2361 = vpop.f32.mrb[0].mxu0
    %v2362 = vpop.f32.mrb[0].mxu0
    %v2363 = vadd.f32 0.0, %v2362
    %v2364 = vpop.f32.mrb[0].mxu0
    %2365 = vmatprep.mubr.bf16.mxu0 0
    %2366 = vmatmul.mubr.bf16.gmra.mrb[0].mxu0 %v2211
    %v2367 = vpop.f32.mrb[0].mxu0
    %v2368 = vadd.f32 0.0, %v2367
    %v2369 = vpop.f32.mrb[0].mxu0
    %v2370 = vpop.f32.mrb[0].mxu0
    %v2371 = vadd.f32 0.0, %v2370
    %v2372 = vpop.f32.mrb[0].mxu0
    %2373 = vdwg.mxu0
    %s2374 = scalar_lea.vmem [#allocation5], 160
    %2375 = vst.msk [vmem:[%s2374] sm:$0xff] %vm120, %v2360
    %2376 = vst.msk [vmem:[%s2374 + $0x8] sm:$0xff] %vm120, %v2363
    %2377 = vst.msk [vmem:[%s2374 + $0x10] sm:$0xff] %vm120, %v2368
    %2378 = vst.msk [vmem:[%s2374 + $0x18] sm:$0xff] %vm120, %v2371
    // Predicated region
    $region30: #{augmentation_forward.4} parent=1 // pred_check
      _
    $region31: #{augmentation_forward.4} parent=1 // pred_check_branch
      %2380 = sbr.rel (0) target = $region33
    $region32: #{augmentation_forward.4} parent=1 // pred_region
      %s2382 = ssub.s32 3072, 3072
      %2383 = vsyncadd [#allocation3], %s2382
      %s2384 = sshll.u32 [#allocation5], 4
      %s2385 = int_to_ptr.vmem [resolvable:$true] %s2384
      %2390 = dma.vmem_to_hbm [thread:$0]  %s2385, 3072, %s6, [#allocation3], 128, 128, 8
    $region33: #{augmentation_forward.4} parent=1 // pred_fallthru
      _
    // Predicated region
    $region34: #{augmentation_forward.4} parent=1 // pred_check
      _
    $region35: #{augmentation_forward.4} parent=1 // pred_check_branch
      %2392 = sbr.rel (0) target = $region37
    $region36: #{augmentation_forward.4} parent=1 // pred_region
      %2393 = dma.done [#allocation3], 3072
    $region37: #{augmentation_forward.4} parent=1 // pred_fallthru
      _
    %2394 = vsyncpa [#allocation3], 1
    %2395 = vsyncpa [#allocation4], 1

</llo_original>
